<compile_context>
chip_gen: v7x
topology: tpu7x:2x2x1
jax: 0.10.0
libtpu: 0.0.40
codegen_flags: <defaults>
</compile_context>

<pallas_src>
import functools

import jax
import jax.numpy as jnp
from jax.experimental import pallas as pl
from jax.experimental.pallas import tpu as pltpu


OUT_STEP = 16  # per-step packed output row chunk: [dq_t (4) | dq_cov_lat (6) | pad (6)]


# ----------------------------- in-kernel math ------------------------------ #

def _quat_from_axis_angle(v3):
    # Quaternion(angle=||v||, axis=v).q  ->  [w, x, y, z],  w = cos(||v||/2)
    n2 = jnp.sum(v3 * v3, axis=-1, keepdims=True)
    nrm = jnp.sqrt(n2)
    half = 0.5 * nrm
    w = jnp.cos(half)
    # sin(n/2)/n -> 0.5 as n -> 0
    factor = jnp.where(nrm > 1e-8, jnp.sin(half) / jnp.maximum(nrm, 1e-8), 0.5)
    return jnp.concatenate([w, v3 * factor], axis=-1)


def _quat_mul(a, b):
    # Hamilton product, w-first convention: Quaternion.mul_(a, b);  (R,4)x(R,4)
    aw, ax, ay, az = a[:, 0:1], a[:, 1:2], a[:, 2:3], a[:, 3:4]
    bw, bx, by, bz = b[:, 0:1], b[:, 1:2], b[:, 2:3], b[:, 3:4]
    w = aw * bw - ax * bx - ay * by - az * bz
    x = aw * bx + ax * bw + ay * bz - az * by
    y = aw * by - ax * bz + ay * bw + az * bx
    z = aw * bz + ax * by - ay * bx + az * bw
    return jnp.concatenate([w, x, y, z], axis=-1)


# --------------------------------- kernel ----------------------------------- #

def _decoder_kernel(H, O, ph, out_lanes,
                    # per-block folded inputs (rows = R, batch folded into rows)
                    x_last_ref, x_init_ref, hz_ref, q0_ref,
                    # block-diagonal influence matrices (R, R), bf16
                    Gi_ref, Gg_ref, Gq_ref, Gc_ref,
                    # shared weights
                    Wi_ref, bi_ref,
                    Wxx_ref, Wxh_ref, bx_ref, Wh_ref, bh_ref,
                    Whd_ref, bhd_ref, Wto_ref, bto_ref,
                    # output: (R, out_lanes) lane-dense slab
                    out_ref):
    f32 = jnp.float32

    def mm(a, w):
        # bf16 MXU path with f32 accumulation; carries stay f32 between steps.
        return jnp.dot(a.astype(w.dtype), w, preferred_element_type=f32)

    x_t = x_last_ref[...]              # (R, F)   F == 8 (q | dq)
    x_init = x_init_ref[...]           # (R, F+L+I)
    hz = hz_ref[...]                   # (R, L+I)
    q_t = q0_ref[...]                  # (R, 4)
    R = q_t.shape[0]

    Gi = Gi_ref[...]; Gg = Gg_ref[...]; Gq = Gq_ref[...]; Gc = Gc_ref[...]
    Wi = Wi_ref[...]; bi = bi_ref[...]
    Wxx = Wxx_ref[...]; Wxh = Wxh_ref[...]; bx = bx_ref[...]
    Wh = Wh_ref[...]; bh = bh_ref[...]
    Whd = Whd_ref[...]; bhd = bhd_ref[...]
    Wto = Wto_ref[...]; bto = bto_ref[...]

    # ---- once per block (hoisted out of the ph recurrence) ------------------
    # initial_hidden_h :  h0 = Gi @ (cat([x_{t-1}, z, h]) @ Wi + bi)
    h_prev = mm(Gi, mm(x_init, Wi) + bi)        # (R, H)
    # loop-invariant GRU-input contribution:  h_z @ Wx[F:, :] + bx
    gx_hz = mm(hz, Wxh) + bx                    # (R, 3H)

    pad6 = jnp.zeros((R, OUT_STEP - 10), f32)   # hoisted

    chunks = []
    for _ in range(ph):   # ph is static & tiny -> unrolled; single dense store
        # ---- StaticGraphGRU cell (single layer, gate order [r | z | n]) ----
        pre_x = mm(x_t, Wxx) + gx_hz            # (R, 3H)
        pre_h = mm(h_prev, Wh) + bh             # (R, 3H)
        # One merged Gg push:  Gg @ [pre_x+pre_h | pre_h_n]  (4H = 128 lanes
        # for H=32).  Gg is linear, so Gg@A + Gg@B == Gg@(A+B).
        comb = jnp.concatenate([pre_x + pre_h, pre_h[:, 2 * H:3 * H]], axis=-1)
        ga = mm(Gg, comb)                       # (R, 4H)
        a = ga[:, 0:3 * H]
        gh_n = ga[:, 3 * H:4 * H]
        rz = jax.nn.sigmoid(a[:, 0:2 * H])      # one wide EUP call (r | z)
        r = rz[:, 0:H]
        zg = rz[:, H:2 * H]
        # gx_n + r*gh_n  ==  (gx_n + gh_n) + (r - 1)*gh_n
        n = jnp.tanh(a[:, 2 * H:3 * H] + (r - 1.0) * gh_n)
        h_new = (1.0 - zg) * n + zg * h_prev

        # ---- heads: fc_q|fc_cov_lat fused, to_q|to_q_cov_lat fused ---------
        y_t = jnp.tanh(h_new)                   # activation_fn; dropout = 0
        head = mm(y_t, Whd) + bhd               # (R, 2O) = [y@Wq+bq | y@Wc+bc]
        y2 = jnp.tanh(jnp.concatenate(
            [mm(Gq, head[:, 0:O]), mm(Gc, head[:, O:2 * O])], axis=-1))
        out9 = mm(y2, Wto) + bto                # (R, 9) = [dq3 | cov6]
        dq3 = out9[:, 0:3]
        cov6 = out9[:, 3:9]

        # ---- quaternion integration + autoregressive feedback --------------
        dq_t = _quat_from_axis_angle(dq3)       # (R, 4)
        q_new = _quat_mul(dq_t, q_t)            # (R, 4)  (no renorm, as ref)

        chunks.append(jnp.concatenate([dq_t, cov6, pad6], axis=-1))  # (R, 16)

        x_t = jnp.concatenate([q_new, dq_t], axis=-1)                # (R, 8)
        h_prev = h_new
        q_t = q_new

    used = ph * OUT_STEP
    if out_lanes > used:
        chunks.append(jnp.zeros((R, out_lanes - used), f32))
    # single lane-dense unmasked store
    out_ref[...] = jnp.concatenate(chunks, axis=-1).astype(out_ref.dtype)


# ------------------------------- wrapper ------------------------------------ #

def _default_num_blocks():
    # 2 grid blocks on v7x (2 TensorCores/chip), otherwise 1 (single TC).
    try:
        kind = jax.devices()[0].device_kind.lower()
        if ("v7" in kind) or ("7x" in kind):
            return 2
    except Exception:
        pass
    return 1


def decoder_forward(params, x, h, z, q_t, ph, state=None, *,
                    weight_dtype=jnp.bfloat16, num_blocks=None):
    """x: (B, T, N, F=8), h: (B, N, I), z: (B, N, L), q_t: (B, N, 4)."""
    B, T, N, F = x.shape
    H = params['Wh'].shape[0]
    O = params['Wq'].shape[1]
    assert F == 8, "feature_size must be 8 (q | dq) for autoregressive feedback"
    if state is None:
        assert T >= 2, "need >= 2 timesteps when no decoder state is provided"

    f32 = jnp.float32
    wd = weight_dtype

    if num_blocks is None:
        num_blocks = _default_num_blocks()
    num_blocks = max(1, min(B, int(num_blocks)))
    Bc = -(-B // num_blocks)                 # samples folded per grid block
    B_pad = Bc * num_blocks
    R = max(8, ((Bc * N + 7) // 8) * 8)      # sublane-aligned rows per block

    x_t = x[:, -1].astype(f32)                              # (B, N, F)
    x_t_s = x_t                                             # x_t.clone() equiv.
    x_t_1 = (x[:, -2] if state is None else state).astype(f32)
    h_z = jnp.concatenate([z, h], axis=-1).astype(f32)      # (B, N, L+I)
    x_init = jnp.concatenate([x_t_1, h_z], axis=-1)         # (B, N, F+L+I)
    q0 = q_t.astype(f32)

    def fold(a):
        # (B, N, C) -> (num_blocks*R, C), zero-padding batch and rows.
        C = a.shape[-1]
        if B_pad > B:
            a = jnp.concatenate([a, jnp.zeros((B_pad - B, N, C), a.dtype)], 0)
        a = a.reshape(num_blocks, Bc * N, C)
        if R > Bc * N:
            a = jnp.concatenate(
                [a, jnp.zeros((num_blocks, R - Bc * N, C), a.dtype)], 1)
        return a.reshape(num_blocks * R, C)

    batch_inputs = (fold(x_t), fold(x_init), fold(h_z), fold(q0))

    def blkdiag(G):
        # Block-diagonal influence matrix for Bc folded samples; padding rows
        # are zero (they never mix into real rows).
        M = jnp.zeros((R, R), f32)
        for i in range(Bc):
            M = M.at[i * N:(i + 1) * N, i * N:(i + 1) * N].set(G.astype(f32))
        return M.astype(wd)

    # Fused head weights: [Wq | Wc]  and  blkdiag(Wtq, Wtc) -> (2O, 9)
    W_head = jnp.concatenate([params['Wq'], params['Wc']], axis=1).astype(wd)
    b_head = jnp.concatenate([params['bq'], params['bc']], axis=1).astype(f32)
    W_to = jnp.zeros((2 * O, 9), f32)
    W_to = W_to.at[:O, 0:3].set(params['Wtq']).at[O:, 3:9].set(params['Wtc'])
    W_to = W_to.astype(wd)
    b_to = jnp.concatenate([params['btq'], params['btc']], axis=1).astype(f32)

    weight_inputs = (
        blkdiag(params['Gi']), blkdiag(params['Gg']),
        blkdiag(params['Gq']), blkdiag(params['Gc']),
        params['Wi'].astype(wd), params['bi'].astype(f32),
        params['Wx_x'].astype(wd), params['Wx_hz'].astype(wd), params['bx'].astype(f32),
        params['Wh'].astype(wd), params['bh'].astype(f32),
        W_head, b_head, W_to, b_to,
    )

    out_lanes = max(128, ((ph * OUT_STEP + 127) // 128) * 128)

    def batch_spec(a):
        return pl.BlockSpec((R, a.shape[-1]), lambda b: (b, 0))

    def const_spec(a):
        # Constant index_map: the same block is reused across grid steps, so
        # no re-DMA / no extra buffering is needed (grid is at most 2).
        return pl.BlockSpec(a.shape, lambda b: (0, 0))

    in_specs = ([batch_spec(a) for a in batch_inputs]
                + [const_spec(a) for a in weight_inputs])

    out = pl.pallas_call(
        functools.partial(_decoder_kernel, H, O, ph, out_lanes),
        out_shape=jax.ShapeDtypeStruct((num_blocks * R, out_lanes), f32),
        grid_spec=pltpu.PrefetchScalarGridSpec(
            num_scalar_prefetch=0,
            grid=(num_blocks,),               # 1 on v5e/v6e, 2 on v7x
            in_specs=in_specs,
            out_specs=pl.BlockSpec((R, out_lanes), lambda b: (b, 0)),
        ),
        compiler_params=pltpu.CompilerParams(
            dimension_semantics=("parallel",)),   # shards blocks across v7x TCs
    )(*batch_inputs, *weight_inputs)

    # Unpack the lane-dense slab: rows = (block, sample, node), lanes = (t, 16)
    out = out.reshape(num_blocks, R, out_lanes)[:, :Bc * N, :ph * OUT_STEP]
    out = out.reshape(B_pad, N, ph, OUT_STEP)[:B]     # (B, N, ph, 16)
    out = jnp.transpose(out, (0, 2, 1, 3))            # (B, ph, N, 16)
    dq = out[..., 0:4]          # (B, ph, N, 4)
    dq_cov = out[..., 4:10]     # (B, ph, N, 6)
    # position=False  =>  dp, dp_cov_lat are None
    return dq, dq_cov, None, None, x_t_s


# -------------------------- deterministic params ---------------------------- #

def init_params(key, N, F, I, L, H, O):
    ks = jax.random.split(key, 17)

    def w(k, shape, scale=0.1):
        return (scale * jax.random.normal(k, shape)).astype(jnp.float32)

    def g(k):
        G = jnp.eye(N, dtype=jnp.float32) + 0.05 * jax.random.uniform(k, (N, N))
        return (G / jnp.sum(jnp.abs(G), axis=1, keepdims=True)).astype(jnp.float32)

    return dict(
        # initial_hidden_h : rows ordered [x_{t-1}(F) | z(L) | h(I)] -> H
        Gi=g(ks[0]), Wi=w(ks[1], (F + L + I, H)), bi=w(ks[2], (1, H)),
        # rnn (GRU) gates packed [r | z | n]; input rows split as x(F) and h_z(L+I)
        Gg=g(ks[3]),
        Wx_x=w(ks[4], (F, 3 * H)), Wx_hz=w(ks[5], (L + I, 3 * H)), bx=w(ks[6], (1, 3 * H)),
        Wh=w(ks[7], (H, 3 * H)), bh=w(ks[8], (1, 3 * H)),
        # fc_q / fc_cov_lat : H -> O
        Gq=g(ks[9]), Wq=w(ks[10], (H, O)), bq=w(ks[11], (1, O)),
        Gc=g(ks[12]), Wc=w(ks[13], (H, O)), bc=w(ks[14], (1, O)),
        # to_q : O -> 3, to_q_cov_lat : O -> 6  (learn_influence=False -> G=I)
        Wtq=w(ks[15], (O, 3)), btq=jnp.zeros((1, 3), jnp.float32),
        Wtc=w(ks[16], (O, 6)), btc=jnp.zeros((1, 6), jnp.float32),
    )


if __name__ == "__main__":
    B, T, N = 2, 4, 4                  # batch, time, num_nodes
    F, I, L, H, O = 8, 16, 8, 32, 16   # feature (=2 quats), input, latent, hidden, output
    ph = 3                             # prediction horizon

    key = jax.random.PRNGKey(0)
    k1, k2, k3, k4, kp = jax.random.split(key, 5)
    x = jax.random.normal(k1, (B, T, N, F), jnp.float32)
    h = jax.random.normal(k2, (B, N, I), jnp.float32)
    z = jax.random.normal(k3, (B, N, L), jnp.float32)
    q = jax.random.normal(k4, (B, N, 4), jnp.float32)
    q = q / jnp.linalg.norm(q, axis=-1, keepdims=True)

    params = init_params(kp, N, F, I, L, H, O)

    fwd = jax.jit(decoder_forward, static_argnames=("ph",))
    dq, dq_cov, dp, dp_cov, x_t_s = fwd(params, x, h, z, q, ph=ph)
    jax.block_until_ready((dq, dq_cov, x_t_s))

    assert dq.shape == (B, ph, N, 4)
    assert dq_cov.shape == (B, ph, N, 6)
    assert x_t_s.shape == (B, N, F)
    assert dp is None and dp_cov is None
    assert bool(jnp.all(jnp.isfinite(dq))) and bool(jnp.all(jnp.isfinite(dq_cov)))
    print("KERNEL_OK")
</pallas_src>

<mosaic_0001>
module attributes {stable_mosaic.version = 11 : i64} {
  func.func @_decoder_kernel(%arg0: i32, %arg1: memref<8x8xf32, #tpu.memory_space<vmem>>, %arg2: memref<8x32xf32, #tpu.memory_space<vmem>>, %arg3: memref<8x24xf32, #tpu.memory_space<vmem>>, %arg4: memref<8x4xf32, #tpu.memory_space<vmem>>, %arg5: memref<8x8xbf16, #tpu.memory_space<vmem>>, %arg6: memref<8x8xbf16, #tpu.memory_space<vmem>>, %arg7: memref<8x8xbf16, #tpu.memory_space<vmem>>, %arg8: memref<8x8xbf16, #tpu.memory_space<vmem>>, %arg9: memref<32x32xbf16, #tpu.memory_space<vmem>>, %arg10: memref<1x32xf32, #tpu.memory_space<vmem>>, %arg11: memref<8x96xbf16, #tpu.memory_space<vmem>>, %arg12: memref<24x96xbf16, #tpu.memory_space<vmem>>, %arg13: memref<1x96xf32, #tpu.memory_space<vmem>>, %arg14: memref<32x96xbf16, #tpu.memory_space<vmem>>, %arg15: memref<1x96xf32, #tpu.memory_space<vmem>>, %arg16: memref<32x32xbf16, #tpu.memory_space<vmem>>, %arg17: memref<1x32xf32, #tpu.memory_space<vmem>>, %arg18: memref<32x9xbf16, #tpu.memory_space<vmem>>, %arg19: memref<1x9xf32, #tpu.memory_space<vmem>>, %arg20: memref<8x128xf32, #tpu.memory_space<vmem>>) attributes {dimension_semantics = [#tpu.dimension_semantics<parallel>], iteration_bounds = array<i64: 1>, scalar_prefetch = 0 : i64, scratch_operands = 0 : i64, tpu.core_type = #tpu.core_type<tc>, window_params = [{transform_indices = @transform_0, window_bounds = array<i64: 8, 8>}, {transform_indices = @transform_1, window_bounds = array<i64: 8, 32>}, {transform_indices = @transform_2, window_bounds = array<i64: 8, 24>}, {transform_indices = @transform_3, window_bounds = array<i64: 8, 4>}, {pipeline_mode = #tpu.pipeline_mode<synchronous>, transform_indices = @transform_4, window_bounds = array<i64: 8, 8>}, {pipeline_mode = #tpu.pipeline_mode<synchronous>, transform_indices = @transform_5, window_bounds = array<i64: 8, 8>}, {pipeline_mode = #tpu.pipeline_mode<synchronous>, transform_indices = @transform_6, window_bounds = array<i64: 8, 8>}, {pipeline_mode = #tpu.pipeline_mode<synchronous>, transform_indices = @transform_7, window_bounds = array<i64: 8, 8>}, {pipeline_mode = #tpu.pipeline_mode<synchronous>, transform_indices = @transform_8, window_bounds = array<i64: 32, 32>}, {pipeline_mode = #tpu.pipeline_mode<synchronous>, transform_indices = @transform_9, window_bounds = array<i64: 1, 32>}, {pipeline_mode = #tpu.pipeline_mode<synchronous>, transform_indices = @transform_10, window_bounds = array<i64: 8, 96>}, {pipeline_mode = #tpu.pipeline_mode<synchronous>, transform_indices = @transform_11, window_bounds = array<i64: 24, 96>}, {pipeline_mode = #tpu.pipeline_mode<synchronous>, transform_indices = @transform_12, window_bounds = array<i64: 1, 96>}, {pipeline_mode = #tpu.pipeline_mode<synchronous>, transform_indices = @transform_13, window_bounds = array<i64: 32, 96>}, {pipeline_mode = #tpu.pipeline_mode<synchronous>, transform_indices = @transform_14, window_bounds = array<i64: 1, 96>}, {pipeline_mode = #tpu.pipeline_mode<synchronous>, transform_indices = @transform_15, window_bounds = array<i64: 32, 32>}, {pipeline_mode = #tpu.pipeline_mode<synchronous>, transform_indices = @transform_16, window_bounds = array<i64: 1, 32>}, {pipeline_mode = #tpu.pipeline_mode<synchronous>, transform_indices = @transform_17, window_bounds = array<i64: 32, 9>}, {pipeline_mode = #tpu.pipeline_mode<synchronous>, transform_indices = @transform_18, window_bounds = array<i64: 1, 9>}, {transform_indices = @transform_19, window_bounds = array<i64: 8, 128>}]} {
    %c0 = arith.constant 0 : index
    %c0_0 = arith.constant 0 : index
    %0 = vector.load %arg1[%c0, %c0_0] : memref<8x8xf32, #tpu.memory_space<vmem>>, vector<8x8xf32>
    %c0_1 = arith.constant 0 : index
    %c0_2 = arith.constant 0 : index
    %1 = vector.load %arg2[%c0_1, %c0_2] : memref<8x32xf32, #tpu.memory_space<vmem>>, vector<8x32xf32>
    %c0_3 = arith.constant 0 : index
    %c0_4 = arith.constant 0 : index
    %2 = vector.load %arg3[%c0_3, %c0_4] : memref<8x24xf32, #tpu.memory_space<vmem>>, vector<8x24xf32>
    %c0_5 = arith.constant 0 : index
    %c0_6 = arith.constant 0 : index
    %3 = vector.load %arg4[%c0_5, %c0_6] : memref<8x4xf32, #tpu.memory_space<vmem>>, vector<8x4xf32>
    %c0_7 = arith.constant 0 : index
    %c0_8 = arith.constant 0 : index
    %4 = vector.load %arg5[%c0_7, %c0_8] : memref<8x8xbf16, #tpu.memory_space<vmem>>, vector<8x8xbf16>
    %c0_9 = arith.constant 0 : index
    %c0_10 = arith.constant 0 : index
    %5 = vector.load %arg6[%c0_9, %c0_10] : memref<8x8xbf16, #tpu.memory_space<vmem>>, vector<8x8xbf16>
    %c0_11 = arith.constant 0 : index
    %c0_12 = arith.constant 0 : index
    %6 = vector.load %arg7[%c0_11, %c0_12] : memref<8x8xbf16, #tpu.memory_space<vmem>>, vector<8x8xbf16>
    %c0_13 = arith.constant 0 : index
    %c0_14 = arith.constant 0 : index
    %7 = vector.load %arg8[%c0_13, %c0_14] : memref<8x8xbf16, #tpu.memory_space<vmem>>, vector<8x8xbf16>
    %c0_15 = arith.constant 0 : index
    %c0_16 = arith.constant 0 : index
    %8 = vector.load %arg9[%c0_15, %c0_16] : memref<32x32xbf16, #tpu.memory_space<vmem>>, vector<32x32xbf16>
    %c0_17 = arith.constant 0 : index
    %c0_18 = arith.constant 0 : index
    %9 = vector.load %arg10[%c0_17, %c0_18] : memref<1x32xf32, #tpu.memory_space<vmem>>, vector<1x32xf32>
    %c0_19 = arith.constant 0 : index
    %c0_20 = arith.constant 0 : index
    %10 = vector.load %arg11[%c0_19, %c0_20] : memref<8x96xbf16, #tpu.memory_space<vmem>>, vector<8x96xbf16>
    %c0_21 = arith.constant 0 : index
    %c0_22 = arith.constant 0 : index
    %11 = vector.load %arg12[%c0_21, %c0_22] : memref<24x96xbf16, #tpu.memory_space<vmem>>, vector<24x96xbf16>
    %c0_23 = arith.constant 0 : index
    %c0_24 = arith.constant 0 : index
    %12 = vector.load %arg13[%c0_23, %c0_24] : memref<1x96xf32, #tpu.memory_space<vmem>>, vector<1x96xf32>
    %c0_25 = arith.constant 0 : index
    %c0_26 = arith.constant 0 : index
    %13 = vector.load %arg14[%c0_25, %c0_26] : memref<32x96xbf16, #tpu.memory_space<vmem>>, vector<32x96xbf16>
    %c0_27 = arith.constant 0 : index
    %c0_28 = arith.constant 0 : index
    %14 = vector.load %arg15[%c0_27, %c0_28] : memref<1x96xf32, #tpu.memory_space<vmem>>, vector<1x96xf32>
    %c0_29 = arith.constant 0 : index
    %c0_30 = arith.constant 0 : index
    %15 = vector.load %arg16[%c0_29, %c0_30] : memref<32x32xbf16, #tpu.memory_space<vmem>>, vector<32x32xbf16>
    %c0_31 = arith.constant 0 : index
    %c0_32 = arith.constant 0 : index
    %16 = vector.load %arg17[%c0_31, %c0_32] : memref<1x32xf32, #tpu.memory_space<vmem>>, vector<1x32xf32>
    %c0_33 = arith.constant 0 : index
    %c0_34 = arith.constant 0 : index
    %17 = vector.load %arg18[%c0_33, %c0_34] : memref<32x9xbf16, #tpu.memory_space<vmem>>, vector<32x9xbf16>
    %c0_35 = arith.constant 0 : index
    %c0_36 = arith.constant 0 : index
    %18 = vector.load %arg19[%c0_35, %c0_36] : memref<1x9xf32, #tpu.memory_space<vmem>>, vector<1x9xf32>
    %19 = arith.truncf %1 : vector<8x32xf32> to vector<8x32xbf16>
    %cst = arith.constant dense<0.000000e+00> : vector<8x32xf32>
    %20 = tpu.matmul %19, %8, %cst {dimension_numbers = #tpu.dot_dimension_numbers<[1], [0], [0], [1], [0, 0, 1, 1], [], []>} : vector<8x32xbf16>, vector<32x32xbf16>, vector<8x32xf32> -> vector<8x32xf32>
    %21 = vector.broadcast %9 : vector<1x32xf32> to vector<8x32xf32>
    %22 = arith.addf %20, %21 : vector<8x32xf32>
    %23 = arith.extf %4 : vector<8x8xbf16> to vector<8x8xf32>
    %cst_37 = arith.constant dense<0.000000e+00> : vector<8x32xf32>
    %24 = tpu.matmul %23, %22, %cst_37 {dimension_numbers = #tpu.dot_dimension_numbers<[1], [0], [0], [1], [0, 0, 1, 1], [], []>} : vector<8x8xf32>, vector<8x32xf32>, vector<8x32xf32> -> vector<8x32xf32>
    %25 = arith.truncf %2 : vector<8x24xf32> to vector<8x24xbf16>
    %cst_38 = arith.constant dense<0.000000e+00> : vector<8x96xf32>
    %26 = tpu.matmul %25, %11, %cst_38 {dimension_numbers = #tpu.dot_dimension_numbers<[1], [0], [0], [1], [0, 0, 1, 1], [], []>} : vector<8x24xbf16>, vector<24x96xbf16>, vector<8x96xf32> -> vector<8x96xf32>
    %27 = vector.broadcast %12 : vector<1x96xf32> to vector<8x96xf32>
    %28 = arith.addf %26, %27 : vector<8x96xf32>
    %cst_39 = arith.constant 0.000000e+00 : f32
    %29 = vector.broadcast %cst_39 : f32 to vector<8x6xf32>
    %30 = arith.truncf %0 : vector<8x8xf32> to vector<8x8xbf16>
    %cst_40 = arith.constant dense<0.000000e+00> : vector<8x96xf32>
    %31 = tpu.matmul %30, %10, %cst_40 {dimension_numbers = #tpu.dot_dimension_numbers<[1], [0], [0], [1], [0, 0, 1, 1], [], []>} : vector<8x8xbf16>, vector<8x96xbf16>, vector<8x96xf32> -> vector<8x96xf32>
    %32 = arith.addf %31, %28 : vector<8x96xf32>
    %33 = arith.truncf %24 : vector<8x32xf32> to vector<8x32xbf16>
    %cst_41 = arith.constant dense<0.000000e+00> : vector<8x96xf32>
    %34 = tpu.matmul %33, %13, %cst_41 {dimension_numbers = #tpu.dot_dimension_numbers<[1], [0], [0], [1], [0, 0, 1, 1], [], []>} : vector<8x32xbf16>, vector<32x96xbf16>, vector<8x96xf32> -> vector<8x96xf32>
    %35 = vector.broadcast %14 : vector<1x96xf32> to vector<8x96xf32>
    %36 = arith.addf %34, %35 : vector<8x96xf32>
    %37 = arith.addf %32, %36 : vector<8x96xf32>
    %38 = vector.extract_strided_slice %36 {offsets = [0, 64], sizes = [8, 32], strides = [1, 1]} : vector<8x96xf32> to vector<8x32xf32>
    %39 = tpu.concatenate %37, %38 in 1 : vector<8x96xf32>, vector<8x32xf32> -> vector<8x128xf32>
    %40 = arith.extf %5 : vector<8x8xbf16> to vector<8x8xf32>
    %cst_42 = arith.constant dense<0.000000e+00> : vector<8x128xf32>
    %41 = tpu.matmul %40, %39, %cst_42 {dimension_numbers = #tpu.dot_dimension_numbers<[1], [0], [0], [1], [0, 0, 1, 1], [], []>} : vector<8x8xf32>, vector<8x128xf32>, vector<8x128xf32> -> vector<8x128xf32>
    %42 = vector.extract_strided_slice %41 {offsets = [0, 0], sizes = [8, 96], strides = [1, 1]} : vector<8x128xf32> to vector<8x96xf32>
    %43 = vector.extract_strided_slice %41 {offsets = [0, 96], sizes = [8, 32], strides = [1, 1]} : vector<8x128xf32> to vector<8x32xf32>
    %44 = vector.extract_strided_slice %42 {offsets = [0, 0], sizes = [8, 64], strides = [1, 1]} : vector<8x96xf32> to vector<8x64xf32>
    %45 = arith.negf %44 : vector<8x64xf32>
    %46 = math.exp %45 : vector<8x64xf32>
    %cst_43 = arith.constant 1.000000e+00 : f32
    %47 = vector.broadcast %cst_43 : f32 to vector<8x64xf32>
    %48 = arith.addf %47, %46 : vector<8x64xf32>
    %49 = arith.divf %47, %48 : vector<8x64xf32>
    %50 = vector.extract_strided_slice %49 {offsets = [0, 0], sizes = [8, 32], strides = [1, 1]} : vector<8x64xf32> to vector<8x32xf32>
    %51 = vector.extract_strided_slice %49 {offsets = [0, 32], sizes = [8, 32], strides = [1, 1]} : vector<8x64xf32> to vector<8x32xf32>
    %52 = vector.extract_strided_slice %42 {offsets = [0, 64], sizes = [8, 32], strides = [1, 1]} : vector<8x96xf32> to vector<8x32xf32>
    %cst_44 = arith.constant 1.000000e+00 : f32
    %53 = vector.broadcast %cst_44 : f32 to vector<8x32xf32>
    %54 = arith.subf %50, %53 : vector<8x32xf32>
    %55 = arith.mulf %54, %43 : vector<8x32xf32>
    %56 = arith.addf %52, %55 : vector<8x32xf32>
    %57 = math.tanh %56 : vector<8x32xf32>
    %cst_45 = arith.constant 1.000000e+00 : f32
    %58 = vector.broadcast %cst_45 : f32 to vector<8x32xf32>
    %59 = arith.subf %58, %51 : vector<8x32xf32>
    %60 = arith.mulf %59, %57 : vector<8x32xf32>
    %61 = arith.mulf %51, %24 : vector<8x32xf32>
    %62 = arith.addf %60, %61 : vector<8x32xf32>
    %63 = math.tanh %62 : vector<8x32xf32>
    %64 = arith.truncf %63 : vector<8x32xf32> to vector<8x32xbf16>
    %cst_46 = arith.constant dense<0.000000e+00> : vector<8x32xf32>
    %65 = tpu.matmul %64, %15, %cst_46 {dimension_numbers = #tpu.dot_dimension_numbers<[1], [0], [0], [1], [0, 0, 1, 1], [], []>} : vector<8x32xbf16>, vector<32x32xbf16>, vector<8x32xf32> -> vector<8x32xf32>
    %66 = vector.broadcast %16 : vector<1x32xf32> to vector<8x32xf32>
    %67 = arith.addf %65, %66 : vector<8x32xf32>
    %68 = vector.extract_strided_slice %67 {offsets = [0, 0], sizes = [8, 16], strides = [1, 1]} : vector<8x32xf32> to vector<8x16xf32>
    %69 = arith.extf %6 : vector<8x8xbf16> to vector<8x8xf32>
    %cst_47 = arith.constant dense<0.000000e+00> : vector<8x16xf32>
    %70 = tpu.matmul %69, %68, %cst_47 {dimension_numbers = #tpu.dot_dimension_numbers<[1], [0], [0], [1], [0, 0, 1, 1], [], []>} : vector<8x8xf32>, vector<8x16xf32>, vector<8x16xf32> -> vector<8x16xf32>
    %71 = vector.extract_strided_slice %67 {offsets = [0, 16], sizes = [8, 16], strides = [1, 1]} : vector<8x32xf32> to vector<8x16xf32>
    %72 = arith.extf %7 : vector<8x8xbf16> to vector<8x8xf32>
    %cst_48 = arith.constant dense<0.000000e+00> : vector<8x16xf32>
    %73 = tpu.matmul %72, %71, %cst_48 {dimension_numbers = #tpu.dot_dimension_numbers<[1], [0], [0], [1], [0, 0, 1, 1], [], []>} : vector<8x8xf32>, vector<8x16xf32>, vector<8x16xf32> -> vector<8x16xf32>
    %74 = tpu.concatenate %70, %73 in 1 : vector<8x16xf32>, vector<8x16xf32> -> vector<8x32xf32>
    %75 = math.tanh %74 : vector<8x32xf32>
    %76 = arith.truncf %75 : vector<8x32xf32> to vector<8x32xbf16>
    %cst_49 = arith.constant dense<0.000000e+00> : vector<8x9xf32>
    %77 = tpu.matmul %76, %17, %cst_49 {dimension_numbers = #tpu.dot_dimension_numbers<[1], [0], [0], [1], [0, 0, 1, 1], [], []>} : vector<8x32xbf16>, vector<32x9xbf16>, vector<8x9xf32> -> vector<8x9xf32>
    %78 = vector.broadcast %18 : vector<1x9xf32> to vector<8x9xf32>
    %79 = arith.addf %77, %78 : vector<8x9xf32>
    %80 = vector.extract_strided_slice %79 {offsets = [0, 0], sizes = [8, 3], strides = [1, 1]} : vector<8x9xf32> to vector<8x3xf32>
    %81 = vector.extract_strided_slice %79 {offsets = [0, 3], sizes = [8, 6], strides = [1, 1]} : vector<8x9xf32> to vector<8x6xf32>
    %82 = arith.mulf %80, %80 : vector<8x3xf32>
    %cst_50 = arith.constant dense<0.000000e+00> : vector<8xf32>
    %83 = vector.multi_reduction <add>, %82, %cst_50 [1] : vector<8x3xf32> to vector<8xf32>
    %84 = vector.shape_cast %83 : vector<8xf32> to vector<8x1xf32>
    %85 = math.sqrt %84 : vector<8x1xf32>
    %cst_51 = arith.constant 5.000000e-01 : f32
    %86 = vector.broadcast %cst_51 : f32 to vector<8x1xf32>
    %87 = arith.mulf %86, %85 : vector<8x1xf32>
    %88 = math.cos %87 : vector<8x1xf32>
    %cst_52 = arith.constant 9.99999993E-9 : f32
    %89 = vector.broadcast %cst_52 : f32 to vector<8x1xf32>
    %90 = arith.cmpf ogt, %85, %89 : vector<8x1xf32>
    %91 = math.sin %87 : vector<8x1xf32>
    %cst_53 = arith.constant 9.99999993E-9 : f32
    %92 = vector.broadcast %cst_53 : f32 to vector<8x1xf32>
    %93 = arith.maximumf %85, %92 : vector<8x1xf32>
    %94 = arith.divf %91, %93 : vector<8x1xf32>
    %cst_54 = arith.constant 5.000000e-01 : f32
    %95 = vector.broadcast %cst_54 : f32 to vector<8x1xf32>
    %96 = arith.select %90, %94, %95 : vector<8x1xi1>, vector<8x1xf32>
    %97 = vector.broadcast %96 : vector<8x1xf32> to vector<8x3xf32>
    %98 = arith.mulf %80, %97 : vector<8x3xf32>
    %99 = tpu.concatenate %88, %98 in 1 : vector<8x1xf32>, vector<8x3xf32> -> vector<8x4xf32>
    %100 = vector.extract_strided_slice %99 {offsets = [0, 0], sizes = [8, 1], strides = [1, 1]} : vector<8x4xf32> to vector<8x1xf32>
    %101 = vector.extract_strided_slice %99 {offsets = [0, 1], sizes = [8, 1], strides = [1, 1]} : vector<8x4xf32> to vector<8x1xf32>
    %102 = vector.extract_strided_slice %99 {offsets = [0, 2], sizes = [8, 1], strides = [1, 1]} : vector<8x4xf32> to vector<8x1xf32>
    %103 = vector.extract_strided_slice %99 {offsets = [0, 3], sizes = [8, 1], strides = [1, 1]} : vector<8x4xf32> to vector<8x1xf32>
    %104 = vector.extract_strided_slice %3 {offsets = [0, 0], sizes = [8, 1], strides = [1, 1]} : vector<8x4xf32> to vector<8x1xf32>
    %105 = vector.extract_strided_slice %3 {offsets = [0, 1], sizes = [8, 1], strides = [1, 1]} : vector<8x4xf32> to vector<8x1xf32>
    %106 = vector.extract_strided_slice %3 {offsets = [0, 2], sizes = [8, 1], strides = [1, 1]} : vector<8x4xf32> to vector<8x1xf32>
    %107 = vector.extract_strided_slice %3 {offsets = [0, 3], sizes = [8, 1], strides = [1, 1]} : vector<8x4xf32> to vector<8x1xf32>
    %108 = arith.mulf %100, %104 : vector<8x1xf32>
    %109 = arith.mulf %101, %105 : vector<8x1xf32>
    %110 = arith.subf %108, %109 : vector<8x1xf32>
    %111 = arith.mulf %102, %106 : vector<8x1xf32>
    %112 = arith.subf %110, %111 : vector<8x1xf32>
    %113 = arith.mulf %103, %107 : vector<8x1xf32>
    %114 = arith.subf %112, %113 : vector<8x1xf32>
    %115 = arith.mulf %100, %105 : vector<8x1xf32>
    %116 = arith.mulf %101, %104 : vector<8x1xf32>
    %117 = arith.addf %115, %116 : vector<8x1xf32>
    %118 = arith.mulf %102, %107 : vector<8x1xf32>
    %119 = arith.addf %117, %118 : vector<8x1xf32>
    %120 = arith.mulf %103, %106 : vector<8x1xf32>
    %121 = arith.subf %119, %120 : vector<8x1xf32>
    %122 = arith.mulf %100, %106 : vector<8x1xf32>
    %123 = arith.mulf %101, %107 : vector<8x1xf32>
    %124 = arith.subf %122, %123 : vector<8x1xf32>
    %125 = arith.mulf %102, %104 : vector<8x1xf32>
    %126 = arith.addf %124, %125 : vector<8x1xf32>
    %127 = arith.mulf %103, %105 : vector<8x1xf32>
    %128 = arith.addf %126, %127 : vector<8x1xf32>
    %129 = arith.mulf %100, %107 : vector<8x1xf32>
    %130 = arith.mulf %101, %106 : vector<8x1xf32>
    %131 = arith.addf %129, %130 : vector<8x1xf32>
    %132 = arith.mulf %102, %105 : vector<8x1xf32>
    %133 = arith.subf %131, %132 : vector<8x1xf32>
    %134 = arith.mulf %103, %104 : vector<8x1xf32>
    %135 = arith.addf %133, %134 : vector<8x1xf32>
    %136 = tpu.concatenate %114, %121, %128, %135 in 1 : vector<8x1xf32>, vector<8x1xf32>, vector<8x1xf32>, vector<8x1xf32> -> vector<8x4xf32>
    %137 = tpu.concatenate %99, %81, %29 in 1 : vector<8x4xf32>, vector<8x6xf32>, vector<8x6xf32> -> vector<8x16xf32>
    %138 = tpu.concatenate %136, %99 in 1 : vector<8x4xf32>, vector<8x4xf32> -> vector<8x8xf32>
    %139 = arith.truncf %138 : vector<8x8xf32> to vector<8x8xbf16>
    %cst_55 = arith.constant dense<0.000000e+00> : vector<8x96xf32>
    %140 = tpu.matmul %139, %10, %cst_55 {dimension_numbers = #tpu.dot_dimension_numbers<[1], [0], [0], [1], [0, 0, 1, 1], [], []>} : vector<8x8xbf16>, vector<8x96xbf16>, vector<8x96xf32> -> vector<8x96xf32>
    %141 = arith.addf %140, %28 : vector<8x96xf32>
    %142 = arith.truncf %62 : vector<8x32xf32> to vector<8x32xbf16>
    %cst_56 = arith.constant dense<0.000000e+00> : vector<8x96xf32>
    %143 = tpu.matmul %142, %13, %cst_56 {dimension_numbers = #tpu.dot_dimension_numbers<[1], [0], [0], [1], [0, 0, 1, 1], [], []>} : vector<8x32xbf16>, vector<32x96xbf16>, vector<8x96xf32> -> vector<8x96xf32>
    %144 = vector.broadcast %14 : vector<1x96xf32> to vector<8x96xf32>
    %145 = arith.addf %143, %144 : vector<8x96xf32>
    %146 = arith.addf %141, %145 : vector<8x96xf32>
    %147 = vector.extract_strided_slice %145 {offsets = [0, 64], sizes = [8, 32], strides = [1, 1]} : vector<8x96xf32> to vector<8x32xf32>
    %148 = tpu.concatenate %146, %147 in 1 : vector<8x96xf32>, vector<8x32xf32> -> vector<8x128xf32>
    %149 = arith.extf %5 : vector<8x8xbf16> to vector<8x8xf32>
    %cst_57 = arith.constant dense<0.000000e+00> : vector<8x128xf32>
    %150 = tpu.matmul %149, %148, %cst_57 {dimension_numbers = #tpu.dot_dimension_numbers<[1], [0], [0], [1], [0, 0, 1, 1], [], []>} : vector<8x8xf32>, vector<8x128xf32>, vector<8x128xf32> -> vector<8x128xf32>
    %151 = vector.extract_strided_slice %150 {offsets = [0, 0], sizes = [8, 96], strides = [1, 1]} : vector<8x128xf32> to vector<8x96xf32>
    %152 = vector.extract_strided_slice %150 {offsets = [0, 96], sizes = [8, 32], strides = [1, 1]} : vector<8x128xf32> to vector<8x32xf32>
    %153 = vector.extract_strided_slice %151 {offsets = [0, 0], sizes = [8, 64], strides = [1, 1]} : vector<8x96xf32> to vector<8x64xf32>
    %154 = arith.negf %153 : vector<8x64xf32>
    %155 = math.exp %154 : vector<8x64xf32>
    %cst_58 = arith.constant 1.000000e+00 : f32
    %156 = vector.broadcast %cst_58 : f32 to vector<8x64xf32>
    %157 = arith.addf %156, %155 : vector<8x64xf32>
    %158 = arith.divf %156, %157 : vector<8x64xf32>
    %159 = vector.extract_strided_slice %158 {offsets = [0, 0], sizes = [8, 32], strides = [1, 1]} : vector<8x64xf32> to vector<8x32xf32>
    %160 = vector.extract_strided_slice %158 {offsets = [0, 32], sizes = [8, 32], strides = [1, 1]} : vector<8x64xf32> to vector<8x32xf32>
    %161 = vector.extract_strided_slice %151 {offsets = [0, 64], sizes = [8, 32], strides = [1, 1]} : vector<8x96xf32> to vector<8x32xf32>
    %cst_59 = arith.constant 1.000000e+00 : f32
    %162 = vector.broadcast %cst_59 : f32 to vector<8x32xf32>
    %163 = arith.subf %159, %162 : vector<8x32xf32>
    %164 = arith.mulf %163, %152 : vector<8x32xf32>
    %165 = arith.addf %161, %164 : vector<8x32xf32>
    %166 = math.tanh %165 : vector<8x32xf32>
    %cst_60 = arith.constant 1.000000e+00 : f32
    %167 = vector.broadcast %cst_60 : f32 to vector<8x32xf32>
    %168 = arith.subf %167, %160 : vector<8x32xf32>
    %169 = arith.mulf %168, %166 : vector<8x32xf32>
    %170 = arith.mulf %160, %62 : vector<8x32xf32>
    %171 = arith.addf %169, %170 : vector<8x32xf32>
    %172 = math.tanh %171 : vector<8x32xf32>
    %173 = arith.truncf %172 : vector<8x32xf32> to vector<8x32xbf16>
    %cst_61 = arith.constant dense<0.000000e+00> : vector<8x32xf32>
    %174 = tpu.matmul %173, %15, %cst_61 {dimension_numbers = #tpu.dot_dimension_numbers<[1], [0], [0], [1], [0, 0, 1, 1], [], []>} : vector<8x32xbf16>, vector<32x32xbf16>, vector<8x32xf32> -> vector<8x32xf32>
    %175 = vector.broadcast %16 : vector<1x32xf32> to vector<8x32xf32>
    %176 = arith.addf %174, %175 : vector<8x32xf32>
    %177 = vector.extract_strided_slice %176 {offsets = [0, 0], sizes = [8, 16], strides = [1, 1]} : vector<8x32xf32> to vector<8x16xf32>
    %178 = arith.extf %6 : vector<8x8xbf16> to vector<8x8xf32>
    %cst_62 = arith.constant dense<0.000000e+00> : vector<8x16xf32>
    %179 = tpu.matmul %178, %177, %cst_62 {dimension_numbers = #tpu.dot_dimension_numbers<[1], [0], [0], [1], [0, 0, 1, 1], [], []>} : vector<8x8xf32>, vector<8x16xf32>, vector<8x16xf32> -> vector<8x16xf32>
    %180 = vector.extract_strided_slice %176 {offsets = [0, 16], sizes = [8, 16], strides = [1, 1]} : vector<8x32xf32> to vector<8x16xf32>
    %181 = arith.extf %7 : vector<8x8xbf16> to vector<8x8xf32>
    %cst_63 = arith.constant dense<0.000000e+00> : vector<8x16xf32>
    %182 = tpu.matmul %181, %180, %cst_63 {dimension_numbers = #tpu.dot_dimension_numbers<[1], [0], [0], [1], [0, 0, 1, 1], [], []>} : vector<8x8xf32>, vector<8x16xf32>, vector<8x16xf32> -> vector<8x16xf32>
    %183 = tpu.concatenate %179, %182 in 1 : vector<8x16xf32>, vector<8x16xf32> -> vector<8x32xf32>
    %184 = math.tanh %183 : vector<8x32xf32>
    %185 = arith.truncf %184 : vector<8x32xf32> to vector<8x32xbf16>
    %cst_64 = arith.constant dense<0.000000e+00> : vector<8x9xf32>
    %186 = tpu.matmul %185, %17, %cst_64 {dimension_numbers = #tpu.dot_dimension_numbers<[1], [0], [0], [1], [0, 0, 1, 1], [], []>} : vector<8x32xbf16>, vector<32x9xbf16>, vector<8x9xf32> -> vector<8x9xf32>
    %187 = vector.broadcast %18 : vector<1x9xf32> to vector<8x9xf32>
    %188 = arith.addf %186, %187 : vector<8x9xf32>
    %189 = vector.extract_strided_slice %188 {offsets = [0, 0], sizes = [8, 3], strides = [1, 1]} : vector<8x9xf32> to vector<8x3xf32>
    %190 = vector.extract_strided_slice %188 {offsets = [0, 3], sizes = [8, 6], strides = [1, 1]} : vector<8x9xf32> to vector<8x6xf32>
    %191 = arith.mulf %189, %189 : vector<8x3xf32>
    %cst_65 = arith.constant dense<0.000000e+00> : vector<8xf32>
    %192 = vector.multi_reduction <add>, %191, %cst_65 [1] : vector<8x3xf32> to vector<8xf32>
    %193 = vector.shape_cast %192 : vector<8xf32> to vector<8x1xf32>
    %194 = math.sqrt %193 : vector<8x1xf32>
    %cst_66 = arith.constant 5.000000e-01 : f32
    %195 = vector.broadcast %cst_66 : f32 to vector<8x1xf32>
    %196 = arith.mulf %195, %194 : vector<8x1xf32>
    %197 = math.cos %196 : vector<8x1xf32>
    %cst_67 = arith.constant 9.99999993E-9 : f32
    %198 = vector.broadcast %cst_67 : f32 to vector<8x1xf32>
    %199 = arith.cmpf ogt, %194, %198 : vector<8x1xf32>
    %200 = math.sin %196 : vector<8x1xf32>
    %cst_68 = arith.constant 9.99999993E-9 : f32
    %201 = vector.broadcast %cst_68 : f32 to vector<8x1xf32>
    %202 = arith.maximumf %194, %201 : vector<8x1xf32>
    %203 = arith.divf %200, %202 : vector<8x1xf32>
    %cst_69 = arith.constant 5.000000e-01 : f32
    %204 = vector.broadcast %cst_69 : f32 to vector<8x1xf32>
    %205 = arith.select %199, %203, %204 : vector<8x1xi1>, vector<8x1xf32>
    %206 = vector.broadcast %205 : vector<8x1xf32> to vector<8x3xf32>
    %207 = arith.mulf %189, %206 : vector<8x3xf32>
    %208 = tpu.concatenate %197, %207 in 1 : vector<8x1xf32>, vector<8x3xf32> -> vector<8x4xf32>
    %209 = vector.extract_strided_slice %208 {offsets = [0, 0], sizes = [8, 1], strides = [1, 1]} : vector<8x4xf32> to vector<8x1xf32>
    %210 = vector.extract_strided_slice %208 {offsets = [0, 1], sizes = [8, 1], strides = [1, 1]} : vector<8x4xf32> to vector<8x1xf32>
    %211 = vector.extract_strided_slice %208 {offsets = [0, 2], sizes = [8, 1], strides = [1, 1]} : vector<8x4xf32> to vector<8x1xf32>
    %212 = vector.extract_strided_slice %208 {offsets = [0, 3], sizes = [8, 1], strides = [1, 1]} : vector<8x4xf32> to vector<8x1xf32>
    %213 = vector.extract_strided_slice %136 {offsets = [0, 0], sizes = [8, 1], strides = [1, 1]} : vector<8x4xf32> to vector<8x1xf32>
    %214 = vector.extract_strided_slice %136 {offsets = [0, 1], sizes = [8, 1], strides = [1, 1]} : vector<8x4xf32> to vector<8x1xf32>
    %215 = vector.extract_strided_slice %136 {offsets = [0, 2], sizes = [8, 1], strides = [1, 1]} : vector<8x4xf32> to vector<8x1xf32>
    %216 = vector.extract_strided_slice %136 {offsets = [0, 3], sizes = [8, 1], strides = [1, 1]} : vector<8x4xf32> to vector<8x1xf32>
    %217 = arith.mulf %209, %213 : vector<8x1xf32>
    %218 = arith.mulf %210, %214 : vector<8x1xf32>
    %219 = arith.subf %217, %218 : vector<8x1xf32>
    %220 = arith.mulf %211, %215 : vector<8x1xf32>
    %221 = arith.subf %219, %220 : vector<8x1xf32>
    %222 = arith.mulf %212, %216 : vector<8x1xf32>
    %223 = arith.subf %221, %222 : vector<8x1xf32>
    %224 = arith.mulf %209, %214 : vector<8x1xf32>
    %225 = arith.mulf %210, %213 : vector<8x1xf32>
    %226 = arith.addf %224, %225 : vector<8x1xf32>
    %227 = arith.mulf %211, %216 : vector<8x1xf32>
    %228 = arith.addf %226, %227 : vector<8x1xf32>
    %229 = arith.mulf %212, %215 : vector<8x1xf32>
    %230 = arith.subf %228, %229 : vector<8x1xf32>
    %231 = arith.mulf %209, %215 : vector<8x1xf32>
    %232 = arith.mulf %210, %216 : vector<8x1xf32>
    %233 = arith.subf %231, %232 : vector<8x1xf32>
    %234 = arith.mulf %211, %213 : vector<8x1xf32>
    %235 = arith.addf %233, %234 : vector<8x1xf32>
    %236 = arith.mulf %212, %214 : vector<8x1xf32>
    %237 = arith.addf %235, %236 : vector<8x1xf32>
    %238 = arith.mulf %209, %216 : vector<8x1xf32>
    %239 = arith.mulf %210, %215 : vector<8x1xf32>
    %240 = arith.addf %238, %239 : vector<8x1xf32>
    %241 = arith.mulf %211, %214 : vector<8x1xf32>
    %242 = arith.subf %240, %241 : vector<8x1xf32>
    %243 = arith.mulf %212, %213 : vector<8x1xf32>
    %244 = arith.addf %242, %243 : vector<8x1xf32>
    %245 = tpu.concatenate %223, %230, %237, %244 in 1 : vector<8x1xf32>, vector<8x1xf32>, vector<8x1xf32>, vector<8x1xf32> -> vector<8x4xf32>
    %246 = tpu.concatenate %208, %190, %29 in 1 : vector<8x4xf32>, vector<8x6xf32>, vector<8x6xf32> -> vector<8x16xf32>
    %247 = tpu.concatenate %245, %208 in 1 : vector<8x4xf32>, vector<8x4xf32> -> vector<8x8xf32>
    %248 = arith.truncf %247 : vector<8x8xf32> to vector<8x8xbf16>
    %cst_70 = arith.constant dense<0.000000e+00> : vector<8x96xf32>
    %249 = tpu.matmul %248, %10, %cst_70 {dimension_numbers = #tpu.dot_dimension_numbers<[1], [0], [0], [1], [0, 0, 1, 1], [], []>} : vector<8x8xbf16>, vector<8x96xbf16>, vector<8x96xf32> -> vector<8x96xf32>
    %250 = arith.addf %249, %28 : vector<8x96xf32>
    %251 = arith.truncf %171 : vector<8x32xf32> to vector<8x32xbf16>
    %cst_71 = arith.constant dense<0.000000e+00> : vector<8x96xf32>
    %252 = tpu.matmul %251, %13, %cst_71 {dimension_numbers = #tpu.dot_dimension_numbers<[1], [0], [0], [1], [0, 0, 1, 1], [], []>} : vector<8x32xbf16>, vector<32x96xbf16>, vector<8x96xf32> -> vector<8x96xf32>
    %253 = vector.broadcast %14 : vector<1x96xf32> to vector<8x96xf32>
    %254 = arith.addf %252, %253 : vector<8x96xf32>
    %255 = arith.addf %250, %254 : vector<8x96xf32>
    %256 = vector.extract_strided_slice %254 {offsets = [0, 64], sizes = [8, 32], strides = [1, 1]} : vector<8x96xf32> to vector<8x32xf32>
    %257 = tpu.concatenate %255, %256 in 1 : vector<8x96xf32>, vector<8x32xf32> -> vector<8x128xf32>
    %258 = arith.extf %5 : vector<8x8xbf16> to vector<8x8xf32>
    %cst_72 = arith.constant dense<0.000000e+00> : vector<8x128xf32>
    %259 = tpu.matmul %258, %257, %cst_72 {dimension_numbers = #tpu.dot_dimension_numbers<[1], [0], [0], [1], [0, 0, 1, 1], [], []>} : vector<8x8xf32>, vector<8x128xf32>, vector<8x128xf32> -> vector<8x128xf32>
    %260 = vector.extract_strided_slice %259 {offsets = [0, 0], sizes = [8, 96], strides = [1, 1]} : vector<8x128xf32> to vector<8x96xf32>
    %261 = vector.extract_strided_slice %259 {offsets = [0, 96], sizes = [8, 32], strides = [1, 1]} : vector<8x128xf32> to vector<8x32xf32>
    %262 = vector.extract_strided_slice %260 {offsets = [0, 0], sizes = [8, 64], strides = [1, 1]} : vector<8x96xf32> to vector<8x64xf32>
    %263 = arith.negf %262 : vector<8x64xf32>
    %264 = math.exp %263 : vector<8x64xf32>
    %cst_73 = arith.constant 1.000000e+00 : f32
    %265 = vector.broadcast %cst_73 : f32 to vector<8x64xf32>
    %266 = arith.addf %265, %264 : vector<8x64xf32>
    %267 = arith.divf %265, %266 : vector<8x64xf32>
    %268 = vector.extract_strided_slice %267 {offsets = [0, 0], sizes = [8, 32], strides = [1, 1]} : vector<8x64xf32> to vector<8x32xf32>
    %269 = vector.extract_strided_slice %267 {offsets = [0, 32], sizes = [8, 32], strides = [1, 1]} : vector<8x64xf32> to vector<8x32xf32>
    %270 = vector.extract_strided_slice %260 {offsets = [0, 64], sizes = [8, 32], strides = [1, 1]} : vector<8x96xf32> to vector<8x32xf32>
    %cst_74 = arith.constant 1.000000e+00 : f32
    %271 = vector.broadcast %cst_74 : f32 to vector<8x32xf32>
    %272 = arith.subf %268, %271 : vector<8x32xf32>
    %273 = arith.mulf %272, %261 : vector<8x32xf32>
    %274 = arith.addf %270, %273 : vector<8x32xf32>
    %275 = math.tanh %274 : vector<8x32xf32>
    %cst_75 = arith.constant 1.000000e+00 : f32
    %276 = vector.broadcast %cst_75 : f32 to vector<8x32xf32>
    %277 = arith.subf %276, %269 : vector<8x32xf32>
    %278 = arith.mulf %277, %275 : vector<8x32xf32>
    %279 = arith.mulf %269, %171 : vector<8x32xf32>
    %280 = arith.addf %278, %279 : vector<8x32xf32>
    %281 = math.tanh %280 : vector<8x32xf32>
    %282 = arith.truncf %281 : vector<8x32xf32> to vector<8x32xbf16>
    %cst_76 = arith.constant dense<0.000000e+00> : vector<8x32xf32>
    %283 = tpu.matmul %282, %15, %cst_76 {dimension_numbers = #tpu.dot_dimension_numbers<[1], [0], [0], [1], [0, 0, 1, 1], [], []>} : vector<8x32xbf16>, vector<32x32xbf16>, vector<8x32xf32> -> vector<8x32xf32>
    %284 = vector.broadcast %16 : vector<1x32xf32> to vector<8x32xf32>
    %285 = arith.addf %283, %284 : vector<8x32xf32>
    %286 = vector.extract_strided_slice %285 {offsets = [0, 0], sizes = [8, 16], strides = [1, 1]} : vector<8x32xf32> to vector<8x16xf32>
    %287 = arith.extf %6 : vector<8x8xbf16> to vector<8x8xf32>
    %cst_77 = arith.constant dense<0.000000e+00> : vector<8x16xf32>
    %288 = tpu.matmul %287, %286, %cst_77 {dimension_numbers = #tpu.dot_dimension_numbers<[1], [0], [0], [1], [0, 0, 1, 1], [], []>} : vector<8x8xf32>, vector<8x16xf32>, vector<8x16xf32> -> vector<8x16xf32>
    %289 = vector.extract_strided_slice %285 {offsets = [0, 16], sizes = [8, 16], strides = [1, 1]} : vector<8x32xf32> to vector<8x16xf32>
    %290 = arith.extf %7 : vector<8x8xbf16> to vector<8x8xf32>
    %cst_78 = arith.constant dense<0.000000e+00> : vector<8x16xf32>
    %291 = tpu.matmul %290, %289, %cst_78 {dimension_numbers = #tpu.dot_dimension_numbers<[1], [0], [0], [1], [0, 0, 1, 1], [], []>} : vector<8x8xf32>, vector<8x16xf32>, vector<8x16xf32> -> vector<8x16xf32>
    %292 = tpu.concatenate %288, %291 in 1 : vector<8x16xf32>, vector<8x16xf32> -> vector<8x32xf32>
    %293 = math.tanh %292 : vector<8x32xf32>
    %294 = arith.truncf %293 : vector<8x32xf32> to vector<8x32xbf16>
    %cst_79 = arith.constant dense<0.000000e+00> : vector<8x9xf32>
    %295 = tpu.matmul %294, %17, %cst_79 {dimension_numbers = #tpu.dot_dimension_numbers<[1], [0], [0], [1], [0, 0, 1, 1], [], []>} : vector<8x32xbf16>, vector<32x9xbf16>, vector<8x9xf32> -> vector<8x9xf32>
    %296 = vector.broadcast %18 : vector<1x9xf32> to vector<8x9xf32>
    %297 = arith.addf %295, %296 : vector<8x9xf32>
    %298 = vector.extract_strided_slice %297 {offsets = [0, 0], sizes = [8, 3], strides = [1, 1]} : vector<8x9xf32> to vector<8x3xf32>
    %299 = vector.extract_strided_slice %297 {offsets = [0, 3], sizes = [8, 6], strides = [1, 1]} : vector<8x9xf32> to vector<8x6xf32>
    %300 = arith.mulf %298, %298 : vector<8x3xf32>
    %cst_80 = arith.constant dense<0.000000e+00> : vector<8xf32>
    %301 = vector.multi_reduction <add>, %300, %cst_80 [1] : vector<8x3xf32> to vector<8xf32>
    %302 = vector.shape_cast %301 : vector<8xf32> to vector<8x1xf32>
    %303 = math.sqrt %302 : vector<8x1xf32>
    %cst_81 = arith.constant 5.000000e-01 : f32
    %304 = vector.broadcast %cst_81 : f32 to vector<8x1xf32>
    %305 = arith.mulf %304, %303 : vector<8x1xf32>
    %306 = math.cos %305 : vector<8x1xf32>
    %cst_82 = arith.constant 9.99999993E-9 : f32
    %307 = vector.broadcast %cst_82 : f32 to vector<8x1xf32>
    %308 = arith.cmpf ogt, %303, %307 : vector<8x1xf32>
    %309 = math.sin %305 : vector<8x1xf32>
    %cst_83 = arith.constant 9.99999993E-9 : f32
    %310 = vector.broadcast %cst_83 : f32 to vector<8x1xf32>
    %311 = arith.maximumf %303, %310 : vector<8x1xf32>
    %312 = arith.divf %309, %311 : vector<8x1xf32>
    %cst_84 = arith.constant 5.000000e-01 : f32
    %313 = vector.broadcast %cst_84 : f32 to vector<8x1xf32>
    %314 = arith.select %308, %312, %313 : vector<8x1xi1>, vector<8x1xf32>
    %315 = vector.broadcast %314 : vector<8x1xf32> to vector<8x3xf32>
    %316 = arith.mulf %298, %315 : vector<8x3xf32>
    %317 = tpu.concatenate %306, %316 in 1 : vector<8x1xf32>, vector<8x3xf32> -> vector<8x4xf32>
    %318 = tpu.concatenate %317, %299, %29 in 1 : vector<8x4xf32>, vector<8x6xf32>, vector<8x6xf32> -> vector<8x16xf32>
    %cst_85 = arith.constant 0.000000e+00 : f32
    %319 = vector.broadcast %cst_85 : f32 to vector<8x80xf32>
    %320 = tpu.concatenate %137, %246, %318, %319 in 1 : vector<8x16xf32>, vector<8x16xf32>, vector<8x16xf32>, vector<8x80xf32> -> vector<8x128xf32>
    %c0_86 = arith.constant 0 : index
    %c0_87 = arith.constant 0 : index
    %321 = vector.load %arg20[%c0_86, %c0_87] : memref<8x128xf32, #tpu.memory_space<vmem>>, vector<8x128xf32>
    tpu.vector_store %arg20[%c0_86, %c0_87], %320 {strides = array<i32>} : memref<8x128xf32, #tpu.memory_space<vmem>>, vector<8x128xf32>,
    return
  }
  func.func @transform_0(%arg0: i32) -> (i32, i32) {
    %c0_i32 = arith.constant 0 : i32
    %c0_i32_0 = arith.constant 0 : i32
    return %arg0, %c0_i32 : i32, i32
  }
  func.func @transform_1(%arg0: i32) -> (i32, i32) {
    %c0_i32 = arith.constant 0 : i32
    %c0_i32_0 = arith.constant 0 : i32
    return %arg0, %c0_i32 : i32, i32
  }
  func.func @transform_2(%arg0: i32) -> (i32, i32) {
    %c0_i32 = arith.constant 0 : i32
    %c0_i32_0 = arith.constant 0 : i32
    return %arg0, %c0_i32 : i32, i32
  }
  func.func @transform_3(%arg0: i32) -> (i32, i32) {
    %c0_i32 = arith.constant 0 : i32
    %c0_i32_0 = arith.constant 0 : i32
    return %arg0, %c0_i32 : i32, i32
  }
  func.func @transform_4(%arg0: i32) -> (i32, i32) {
    %c0_i32 = arith.constant 0 : i32
    %c0_i32_0 = arith.constant 0 : i32
    %c0_i32_1 = arith.constant 0 : i32
    return %c0_i32, %c0_i32_0 : i32, i32
  }
  func.func @transform_5(%arg0: i32) -> (i32, i32) {
    %c0_i32 = arith.constant 0 : i32
    %c0_i32_0 = arith.constant 0 : i32
    %c0_i32_1 = arith.constant 0 : i32
    return %c0_i32, %c0_i32_0 : i32, i32
  }
  func.func @transform_6(%arg0: i32) -> (i32, i32) {
    %c0_i32 = arith.constant 0 : i32
    %c0_i32_0 = arith.constant 0 : i32
    %c0_i32_1 = arith.constant 0 : i32
    return %c0_i32, %c0_i32_0 : i32, i32
  }
  func.func @transform_7(%arg0: i32) -> (i32, i32) {
    %c0_i32 = arith.constant 0 : i32
    %c0_i32_0 = arith.constant 0 : i32
    %c0_i32_1 = arith.constant 0 : i32
    return %c0_i32, %c0_i32_0 : i32, i32
  }
  func.func @transform_8(%arg0: i32) -> (i32, i32) {
    %c0_i32 = arith.constant 0 : i32
    %c0_i32_0 = arith.constant 0 : i32
    %c0_i32_1 = arith.constant 0 : i32
    return %c0_i32, %c0_i32_0 : i32, i32
  }
  func.func @transform_9(%arg0: i32) -> (i32, i32) {
    %c0_i32 = arith.constant 0 : i32
    %c0_i32_0 = arith.constant 0 : i32
    %c0_i32_1 = arith.constant 0 : i32
    return %c0_i32, %c0_i32_0 : i32, i32
  }
  func.func @transform_10(%arg0: i32) -> (i32, i32) {
    %c0_i32 = arith.constant 0 : i32
    %c0_i32_0 = arith.constant 0 : i32
    %c0_i32_1 = arith.constant 0 : i32
    return %c0_i32, %c0_i32_0 : i32, i32
  }
  func.func @transform_11(%arg0: i32) -> (i32, i32) {
    %c0_i32 = arith.constant 0 : i32
    %c0_i32_0 = arith.constant 0 : i32
    %c0_i32_1 = arith.constant 0 : i32
    return %c0_i32, %c0_i32_0 : i32, i32
  }
  func.func @transform_12(%arg0: i32) -> (i32, i32) {
    %c0_i32 = arith.constant 0 : i32
    %c0_i32_0 = arith.constant 0 : i32
    %c0_i32_1 = arith.constant 0 : i32
    return %c0_i32, %c0_i32_0 : i32, i32
  }
  func.func @transform_13(%arg0: i32) -> (i32, i32) {
    %c0_i32 = arith.constant 0 : i32
    %c0_i32_0 = arith.constant 0 : i32
    %c0_i32_1 = arith.constant 0 : i32
    return %c0_i32, %c0_i32_0 : i32, i32
  }
  func.func @transform_14(%arg0: i32) -> (i32, i32) {
    %c0_i32 = arith.constant 0 : i32
    %c0_i32_0 = arith.constant 0 : i32
    %c0_i32_1 = arith.constant 0 : i32
    return %c0_i32, %c0_i32_0 : i32, i32
  }
  func.func @transform_15(%arg0: i32) -> (i32, i32) {
    %c0_i32 = arith.constant 0 : i32
    %c0_i32_0 = arith.constant 0 : i32
    %c0_i32_1 = arith.constant 0 : i32
    return %c0_i32, %c0_i32_0 : i32, i32
  }
  func.func @transform_16(%arg0: i32) -> (i32, i32) {
    %c0_i32 = arith.constant 0 : i32
    %c0_i32_0 = arith.constant 0 : i32
    %c0_i32_1 = arith.constant 0 : i32
    return %c0_i32, %c0_i32_0 : i32, i32
  }
  func.func @transform_17(%arg0: i32) -> (i32, i32) {
    %c0_i32 = arith.constant 0 : i32
    %c0_i32_0 = arith.constant 0 : i32
    %c0_i32_1 = arith.constant 0 : i32
    return %c0_i32, %c0_i32_0 : i32, i32
  }
  func.func @transform_18(%arg0: i32) -> (i32, i32) {
    %c0_i32 = arith.constant 0 : i32
    %c0_i32_0 = arith.constant 0 : i32
    %c0_i32_1 = arith.constant 0 : i32
    return %c0_i32, %c0_i32_0 : i32, i32
  }
  func.func @transform_19(%arg0: i32) -> (i32, i32) {
    %c0_i32 = arith.constant 0 : i32
    %c0_i32_0 = arith.constant 0 : i32
    return %arg0, %c0_i32 : i32, i32
  }
}

</mosaic_0001>

<llo_original>
// kernel: decoder_forward.1
$region0: #{decoder_forward.1}
  #allocation0 [shape = 'u32[]', space=smem, size = 0x4, offset = 0x4, fixed_abs, tag = 'smem constant byte address 0x4 - core index']
  #allocation1 [shape = 'u32[144,128]{1,0:T(1,128)}', space=vmem, size = 0x12000, scoped, tag = 'internal scratch']
  %s0 = inlined_call_operand.vmem [shape: f32[8,8], index: 0, kind: input, shape index: {}]
  %s1 = inlined_call_operand.vmem [shape: f32[8,32], index: 1, kind: input, shape index: {}]
  %s2 = inlined_call_operand.vmem [shape: f32[8,24], index: 2, kind: input, shape index: {}]
  %s3 = inlined_call_operand.vmem [shape: f32[8,4], index: 3, kind: input, shape index: {}]
  %s4 = inlined_call_operand.vmem [shape: bf16[8,8], index: 4, kind: input, shape index: {}]
  %s5 = inlined_call_operand.vmem [shape: bf16[8,8], index: 5, kind: input, shape index: {}]
  %s6 = inlined_call_operand.vmem [shape: bf16[8,8], index: 6, kind: input, shape index: {}]
  %s7 = inlined_call_operand.vmem [shape: bf16[8,8], index: 7, kind: input, shape index: {}]
  %s8 = inlined_call_operand.vmem [shape: bf16[32,32], index: 8, kind: input, shape index: {}]
  %s9 = inlined_call_operand.vmem [shape: f32[1,32], index: 9, kind: input, shape index: {}]
  %s10 = inlined_call_operand.vmem [shape: bf16[8,96], index: 10, kind: input, shape index: {}]
  %s11 = inlined_call_operand.vmem [shape: bf16[24,96], index: 11, kind: input, shape index: {}]
  %s12 = inlined_call_operand.vmem [shape: f32[1,96], index: 12, kind: input, shape index: {}]
  %s13 = inlined_call_operand.vmem [shape: bf16[32,96], index: 13, kind: input, shape index: {}]
  %s14 = inlined_call_operand.vmem [shape: f32[1,96], index: 14, kind: input, shape index: {}]
  %s15 = inlined_call_operand.vmem [shape: bf16[32,32], index: 15, kind: input, shape index: {}]
  %s16 = inlined_call_operand.vmem [shape: f32[1,32], index: 16, kind: input, shape index: {}]
  %s17 = inlined_call_operand.vmem [shape: bf16[32,9], index: 17, kind: input, shape index: {}]
  %s18 = inlined_call_operand.vmem [shape: f32[1,9], index: 18, kind: input, shape index: {}]
  %s19 = inlined_call_operand.vmem [shape: f32[8,128], index: 19, kind: output, shape index: {}]
  %s20 = sld [smem:[#allocation0]]
  $region86: #{decoder_forward.1} parent=0
    _
  %s22 = ssub.s32 1, %s20
  %s23 = scalar_select 0, %s22, %s20
  // Predicated region
  $region2: #{decoder_forward.1} parent=0 // pred_check
    _
  $region3: #{decoder_forward.1} parent=0 // pred_check_branch
    %25 = sbr.rel (0) target = $region5
  $region4: #{decoder_forward.1} parent=0 // pred_region
    _
  $region5: #{decoder_forward.1} parent=0 // pred_fallthru
    _
  // Predicated region
  $region6: #{decoder_forward.1} parent=0 // pred_check
    _
  $region7: #{decoder_forward.1} parent=0 // pred_check_branch
    %27 = sbr.rel (0) target = $region9
  $region8: #{decoder_forward.1} parent=0 // pred_region
    _
  $region9: #{decoder_forward.1} parent=0 // pred_fallthru
    _
  // Predicated region
  $region10: #{decoder_forward.1} parent=0 // pred_check
    _
  $region11: #{decoder_forward.1} parent=0 // pred_check_branch
    %29 = sbr.rel (0) target = $region13
  $region12: #{decoder_forward.1} parent=0 // pred_region
    _
  $region13: #{decoder_forward.1} parent=0 // pred_fallthru
    _
  // Predicated region
  $region14: #{decoder_forward.1} parent=0 // pred_check
    _
  $region15: #{decoder_forward.1} parent=0 // pred_check_branch
    %31 = sbr.rel (0) target = $region17
  $region16: #{decoder_forward.1} parent=0 // pred_region
    _
  $region17: #{decoder_forward.1} parent=0 // pred_fallthru
    _
  // Predicated region
  $region18: #{decoder_forward.1} parent=0 // pred_check
    _
  $region19: #{decoder_forward.1} parent=0 // pred_check_branch
    %33 = sbr.rel (0) target = $region21
  $region20: #{decoder_forward.1} parent=0 // pred_region
    _
  $region21: #{decoder_forward.1} parent=0 // pred_fallthru
    _
  // Predicated region
  $region22: #{decoder_forward.1} parent=0 // pred_check
    _
  $region23: #{decoder_forward.1} parent=0 // pred_check_branch
    %35 = sbr.rel (0) target = $region25
  $region24: #{decoder_forward.1} parent=0 // pred_region
    _
  $region25: #{decoder_forward.1} parent=0 // pred_fallthru
    _
  // Predicated region
  $region26: #{decoder_forward.1} parent=0 // pred_check
    _
  $region27: #{decoder_forward.1} parent=0 // pred_check_branch
    %37 = sbr.rel (0) target = $region29
  $region28: #{decoder_forward.1} parent=0 // pred_region
    _
  $region29: #{decoder_forward.1} parent=0 // pred_fallthru
    _
  // Predicated region
  $region30: #{decoder_forward.1} parent=0 // pred_check
    _
  $region31: #{decoder_forward.1} parent=0 // pred_check_branch
    %39 = sbr.rel (0) target = $region33
  $region32: #{decoder_forward.1} parent=0 // pred_region
    _
  $region33: #{decoder_forward.1} parent=0 // pred_fallthru
    _
  // Predicated region
  $region34: #{decoder_forward.1} parent=0 // pred_check
    _
  $region35: #{decoder_forward.1} parent=0 // pred_check_branch
    %41 = sbr.rel (0) target = $region37
  $region36: #{decoder_forward.1} parent=0 // pred_region
    _
  $region37: #{decoder_forward.1} parent=0 // pred_fallthru
    _
  // Predicated region
  $region38: #{decoder_forward.1} parent=0 // pred_check
    _
  $region39: #{decoder_forward.1} parent=0 // pred_check_branch
    %43 = sbr.rel (0) target = $region41
  $region40: #{decoder_forward.1} parent=0 // pred_region
    _
  $region41: #{decoder_forward.1} parent=0 // pred_fallthru
    _
  // Predicated region
  $region42: #{decoder_forward.1} parent=0 // pred_check
    _
  $region43: #{decoder_forward.1} parent=0 // pred_check_branch
    %45 = sbr.rel (0) target = $region45
  $region44: #{decoder_forward.1} parent=0 // pred_region
    _
  $region45: #{decoder_forward.1} parent=0 // pred_fallthru
    _
  // Predicated region
  $region46: #{decoder_forward.1} parent=0 // pred_check
    _
  $region47: #{decoder_forward.1} parent=0 // pred_check_branch
    %47 = sbr.rel (0) target = $region49
  $region48: #{decoder_forward.1} parent=0 // pred_region
    _
  $region49: #{decoder_forward.1} parent=0 // pred_fallthru
    _
  // Predicated region
  $region50: #{decoder_forward.1} parent=0 // pred_check
    _
  $region51: #{decoder_forward.1} parent=0 // pred_check_branch
    %49 = sbr.rel (0) target = $region53
  $region52: #{decoder_forward.1} parent=0 // pred_region
    _
  $region53: #{decoder_forward.1} parent=0 // pred_fallthru
    _
  // Predicated region
  $region54: #{decoder_forward.1} parent=0 // pred_check
    _
  $region55: #{decoder_forward.1} parent=0 // pred_check_branch
    %51 = sbr.rel (0) target = $region57
  $region56: #{decoder_forward.1} parent=0 // pred_region
    _
  $region57: #{decoder_forward.1} parent=0 // pred_fallthru
    _
  // Predicated region
  $region58: #{decoder_forward.1} parent=0 // pred_check
    _
  $region59: #{decoder_forward.1} parent=0 // pred_check_branch
    %53 = sbr.rel (0) target = $region61
  $region60: #{decoder_forward.1} parent=0 // pred_region
    _
  $region61: #{decoder_forward.1} parent=0 // pred_fallthru
    _
  // Predicated region
  $region62: #{decoder_forward.1} parent=0 // pred_check
    _
  $region63: #{decoder_forward.1} parent=0 // pred_check_branch
    %55 = sbr.rel (0) target = $region65
  $region64: #{decoder_forward.1} parent=0 // pred_region
    _
  $region65: #{decoder_forward.1} parent=0 // pred_fallthru
    _
  // Predicated region
  $region66: #{decoder_forward.1} parent=0 // pred_check
    _
  $region67: #{decoder_forward.1} parent=0 // pred_check_branch
    %57 = sbr.rel (0) target = $region69
  $region68: #{decoder_forward.1} parent=0 // pred_region
    _
  $region69: #{decoder_forward.1} parent=0 // pred_fallthru
    _
  // Predicated region
  $region70: #{decoder_forward.1} parent=0 // pred_check
    _
  $region71: #{decoder_forward.1} parent=0 // pred_check_branch
    %59 = sbr.rel (0) target = $region73
  $region72: #{decoder_forward.1} parent=0 // pred_region
    _
  $region73: #{decoder_forward.1} parent=0 // pred_fallthru
    _
  // Predicated region
  $region74: #{decoder_forward.1} parent=0 // pred_check
    _
  $region75: #{decoder_forward.1} parent=0 // pred_check_branch
    %61 = sbr.rel (0) target = $region77
  $region76: #{decoder_forward.1} parent=0 // pred_region
    _
  $region77: #{decoder_forward.1} parent=0 // pred_fallthru
    _
  %v63 = vld [vmem:[%s0] sm:$0xff]
  %v64 = vld [vmem:[%s1] sm:$0xff]
  %v65 = vld [vmem:[%s2] sm:$0xff]
  %v66 = vld [vmem:[%s3] sm:$0xff]
  %v67 = vld [vmem:[%s4] sm:$0xf]
  %v68 = vld [vmem:[%s5] sm:$0xf]
  %v69 = vld [vmem:[%s6] sm:$0xf]
  %v70 = vld [vmem:[%s7] sm:$0xf]
  %v71 = vld [vmem:[%s8] sm:$0xf]
  %v72 = vld [vmem:[%s8 + $0x4] sm:$0xf]
  %v73 = vld [vmem:[%s8 + $0x8] sm:$0xf]
  %v74 = vld [vmem:[%s8 + $0xc] sm:$0xf]
  %v75 = vld [vmem:[%s9] sm:$0x1]
  %v76 = vld [vmem:[%s10] sm:$0xf]
  %v77 = vld [vmem:[%s11] sm:$0xf]
  %v78 = vld [vmem:[%s11 + $0x4] sm:$0xf]
  %v79 = vld [vmem:[%s11 + $0x8] sm:$0xf]
  %v80 = vld [vmem:[%s12] sm:$0x1]
  %v81 = vld [vmem:[%s13] sm:$0xf]
  %v82 = vld [vmem:[%s13 + $0x4] sm:$0xf]
  %v83 = vld [vmem:[%s13 + $0x8] sm:$0xf]
  %v84 = vld [vmem:[%s13 + $0xc] sm:$0xf]
  %v85 = vld [vmem:[%s14] sm:$0x1]
  %v86 = vld [vmem:[%s15] sm:$0xf]
  %v87 = vld [vmem:[%s15 + $0x4] sm:$0xf]
  %v88 = vld [vmem:[%s15 + $0x8] sm:$0xf]
  %v89 = vld [vmem:[%s15 + $0xc] sm:$0xf]
  %v90 = vld [vmem:[%s16] sm:$0x1]
  %v91 = vld [vmem:[%s17] sm:$0xf]
  %v92 = vld [vmem:[%s17 + $0x4] sm:$0xf]
  %v93 = vld [vmem:[%s17 + $0x8] sm:$0xf]
  %v94 = vld [vmem:[%s17 + $0xc] sm:$0xf]
  %v95 = vld [vmem:[%s18] sm:$0x1]
  %v96 = vpack.c.bf16 %v64, %v64
  %v98 = vlaneseq
  %v99 = vshrl.u32 %v98, 7
  %v100 = vsub.s32 0, %v99
  %v101 = vrot.slane %v75, %v100
  %v107 = vunpack.c.l.b16 %v71
  %v108 = vunpack.c.l.b16 %v72
  %v109 = vunpack.c.l.b16 %v73
  %v110 = vunpack.c.l.b16 %v74
  %v111 = vpack.c.b16 %v108, %v107
  %v112 = vpack.c.b16 %v110, %v109
  %vm115 = vcmask 261120
  %v117 = vsel %vm115, %v96, 0
  %119 = vmatprep.subr.bf16.mxu0 0
  %120 = vmatpush1.bf16.msra.mxu0 %v111
  %121 = vmatprep.subr.bf16.mxu0 0
  %122 = vmatpush1.bf16.msra.mxu0 %v112
  %123 = vmatprep.subr.bf16.mxu0 0
  %124 = vmatpush1.bf16.msra.mxu0 0
  %125 = vmatprep.subr.bf16.mxu0 0
  %126 = vmatpush1.bf16.msra.mxu0 0
  %127 = vmatprep.subr.bf16.mxu0 0
  %128 = vmatpush1.bf16.msra.mxu0 0
  %129 = vmatprep.subr.bf16.mxu0 0
  %130 = vmatpush1.bf16.msra.mxu0 0
  %131 = vmatprep.subr.bf16.mxu0 0
  %132 = vmatpush1.bf16.msra.mxu0 0
  %133 = vmatprep.subr.bf16.mxu0 0
  %134 = vmatpush1.bf16.msra.mxu0 0
  %135 = vmatprep.subr.bf16.mxu0 0
  %136 = vmatpush1.bf16.msra.mxu0 0
  %137 = vmatprep.subr.bf16.mxu0 0
  %138 = vmatpush1.bf16.msra.mxu0 0
  %139 = vmatprep.subr.bf16.mxu0 0
  %140 = vmatpush1.bf16.msra.mxu0 0
  %141 = vmatprep.subr.bf16.mxu0 0
  %142 = vmatpush1.bf16.msra.mxu0 0
  %143 = vmatprep.subr.bf16.mxu0 0
  %144 = vmatpush1.bf16.msra.mxu0 0
  %145 = vmatprep.subr.bf16.mxu0 0
  %146 = vmatpush1.bf16.msra.mxu0 0
  %147 = vmatprep.subr.bf16.mxu0 0
  %148 = vmatpush1.bf16.msra.mxu0 0
  %149 = vmatprep.subr.bf16.mxu0 0
  %150 = vmatpush1.bf16.msra.mxu0 0
  %151 = vmatprep.mubr.bf16.mxu0 0
  %152 = vmatmul.mubr.bf16.gmra.mrb[0].mxu0 %v117
  %v153 = vpop.f32.mrb[0].mxu0
  %v154 = vadd.f32 %v101, %v153
  %v155 = vpop.f32.mrb[0].mxu0
  %v156 = vpop.f32.mrb[0].mxu0
  %v157 = vpop.f32.mrb[0].mxu0
  %158 = vdwg.mxu0
  %v159 = vunpack.c.l.bf16 %v67
  %vm160 = vcmask 64512
  %v162 = vsel %vm160, %v159, 0
  %164 = vmatprep.subr.mxu0 0.0
  %165 = vmatpush1.msra.mxu0 %v154
  %166 = vmatprep.subr.mxu0 0.0
  %167 = vmatpush1.msra.mxu0 0.0
  %168 = vmatprep.subr.mxu0 0.0
  %169 = vmatpush1.msra.mxu0 0.0
  %170 = vmatprep.subr.mxu0 0.0
  %171 = vmatpush1.msra.mxu0 0.0
  %172 = vmatprep.subr.mxu0 0.0
  %173 = vmatpush1.msra.mxu0 0.0
  %174 = vmatprep.subr.mxu0 0.0
  %175 = vmatpush1.msra.mxu0 0.0
  %176 = vmatprep.subr.mxu0 0.0
  %177 = vmatpush1.msra.mxu0 0.0
  %178 = vmatprep.subr.mxu0 0.0
  %179 = vmatpush1.msra.mxu0 0.0
  %180 = vmatprep.subr.mxu0 0.0
  %181 = vmatpush1.msra.mxu0 0.0
  %182 = vmatprep.subr.mxu0 0.0
  %183 = vmatpush1.msra.mxu0 0.0
  %184 = vmatprep.subr.mxu0 0.0
  %185 = vmatpush1.msra.mxu0 0.0
  %186 = vmatprep.subr.mxu0 0.0
  %187 = vmatpush1.msra.mxu0 0.0
  %188 = vmatprep.subr.mxu0 0.0
  %189 = vmatpush1.msra.mxu0 0.0
  %190 = vmatprep.subr.mxu0 0.0
  %191 = vmatpush1.msra.mxu0 0.0
  %192 = vmatprep.subr.mxu0 0.0
  %193 = vmatpush1.msra.mxu0 0.0
  %194 = vmatprep.subr.mxu0 0.0
  %195 = vmatpush1.msra.mxu0 0.0
  %196 = vmatprep.subr.mxu0 0.0
  %197 = vmatpush1.msra.mxu0 0.0
  %198 = vmatprep.subr.mxu0 0.0
  %199 = vmatpush1.msra.mxu0 0.0
  %200 = vmatprep.subr.mxu0 0.0
  %201 = vmatpush1.msra.mxu0 0.0
  %202 = vmatprep.subr.mxu0 0.0
  %203 = vmatpush1.msra.mxu0 0.0
  %204 = vmatprep.subr.mxu0 0.0
  %205 = vmatpush1.msra.mxu0 0.0
  %206 = vmatprep.subr.mxu0 0.0
  %207 = vmatpush1.msra.mxu0 0.0
  %208 = vmatprep.subr.mxu0 0.0
  %209 = vmatpush1.msra.mxu0 0.0
  %210 = vmatprep.subr.mxu0 0.0
  %211 = vmatpush1.msra.mxu0 0.0
  %212 = vmatprep.subr.mxu0 0.0
  %213 = vmatpush1.msra.mxu0 0.0
  %214 = vmatprep.subr.mxu0 0.0
  %215 = vmatpush1.msra.mxu0 0.0
  %216 = vmatprep.subr.mxu0 0.0
  %217 = vmatpush1.msra.mxu0 0.0
  %218 = vmatprep.subr.mxu0 0.0
  %219 = vmatpush1.msra.mxu0 0.0
  %220 = vmatprep.subr.mxu0 0.0
  %221 = vmatpush1.msra.mxu0 0.0
  %222 = vmatprep.subr.mxu0 0.0
  %223 = vmatpush1.msra.mxu0 0.0
  %224 = vmatprep.subr.mxu0 0.0
  %225 = vmatpush1.msra.mxu0 0.0
  %226 = vmatprep.subr.mxu0 0.0
  %227 = vmatpush1.msra.mxu0 0.0
  %228 = vmatprep.mubr.f32.mxu0 0.0
  %229 = vmatmul.mubr.f32.gmra.mrb[0].mxu0 %v162
  %v230 = vpop.f32.mrb[0].mxu0
  %v231 = vadd.f32 0.0, %v230
  %v232 = vpop.f32.mrb[0].mxu0
  %233 = vdwg.mxu0
  %v234 = vpack.c.bf16 %v65, %v65
  %v236 = vlaneseq
  %v237 = vshrl.u32 %v236, 7
  %v238 = vsub.s32 0, %v237
  %v239 = vrot.slane %v80, %v238
  %v244 = vunpack.c.l.b16 %v77
  %v245 = vunpack.c.l.b16 %v78
  %v246 = vunpack.c.l.b16 %v79
  %v247 = vpack.c.b16 %v245, %v244
  %v248 = vpack.c.b16 %v246, %v246
  %vm250 = vcmask 195584
  %v252 = vsel %vm250, %v234, 0
  %vm254 = vcmask 1043456
  %v256 = vsel %vm254, %v248, 0
  %258 = vmatprep.subr.bf16.mxu0 0
  %259 = vmatpush1.bf16.msra.mxu0 %v247
  %260 = vmatprep.subr.bf16.mxu0 0
  %261 = vmatpush1.bf16.msra.mxu0 %v256
  %262 = vmatprep.subr.bf16.mxu0 0
  %263 = vmatpush1.bf16.msra.mxu0 0
  %264 = vmatprep.subr.bf16.mxu0 0
  %265 = vmatpush1.bf16.msra.mxu0 0
  %266 = vmatprep.subr.bf16.mxu0 0
  %267 = vmatpush1.bf16.msra.mxu0 0
  %268 = vmatprep.subr.bf16.mxu0 0
  %269 = vmatpush1.bf16.msra.mxu0 0
  %270 = vmatprep.subr.bf16.mxu0 0
  %271 = vmatpush1.bf16.msra.mxu0 0
  %272 = vmatprep.subr.bf16.mxu0 0
  %273 = vmatpush1.bf16.msra.mxu0 0
  %274 = vmatprep.subr.bf16.mxu0 0
  %275 = vmatpush1.bf16.msra.mxu0 0
  %276 = vmatprep.subr.bf16.mxu0 0
  %277 = vmatpush1.bf16.msra.mxu0 0
  %278 = vmatprep.subr.bf16.mxu0 0
  %279 = vmatpush1.bf16.msra.mxu0 0
  %280 = vmatprep.subr.bf16.mxu0 0
  %281 = vmatpush1.bf16.msra.mxu0 0
  %282 = vmatprep.subr.bf16.mxu0 0
  %283 = vmatpush1.bf16.msra.mxu0 0
  %284 = vmatprep.subr.bf16.mxu0 0
  %285 = vmatpush1.bf16.msra.mxu0 0
  %286 = vmatprep.subr.bf16.mxu0 0
  %287 = vmatpush1.bf16.msra.mxu0 0
  %288 = vmatprep.subr.bf16.mxu0 0
  %289 = vmatpush1.bf16.msra.mxu0 0
  %290 = vmatprep.mubr.bf16.mxu0 0
  %291 = vmatmul.mubr.bf16.gmra.mrb[0].mxu0 %v252
  %v292 = vpop.f32.mrb[0].mxu0
  %v293 = vadd.f32 %v239, %v292
  %v294 = vpop.f32.mrb[0].mxu0
  %v295 = vpop.f32.mrb[0].mxu0
  %v296 = vpop.f32.mrb[0].mxu0
  %297 = vdwg.mxu0
  %v298 = vpack.c.bf16 %v63, %v63
  %v300 = vsel %vm160, %v298, 0
  %v303 = vsel %vm254, %v76, 0
  %305 = vmatprep.subr.bf16.mxu0 0
  %306 = vmatpush1.bf16.msra.mxu0 %v303
  %307 = vmatprep.subr.bf16.mxu0 0
  %308 = vmatpush1.bf16.msra.mxu0 0
  %309 = vmatprep.subr.bf16.mxu0 0
  %310 = vmatpush1.bf16.msra.mxu0 0
  %311 = vmatprep.subr.bf16.mxu0 0
  %312 = vmatpush1.bf16.msra.mxu0 0
  %313 = vmatprep.subr.bf16.mxu0 0
  %314 = vmatpush1.bf16.msra.mxu0 0
  %315 = vmatprep.subr.bf16.mxu0 0
  %316 = vmatpush1.bf16.msra.mxu0 0
  %317 = vmatprep.subr.bf16.mxu0 0
  %318 = vmatpush1.bf16.msra.mxu0 0
  %319 = vmatprep.subr.bf16.mxu0 0
  %320 = vmatpush1.bf16.msra.mxu0 0
  %321 = vmatprep.subr.bf16.mxu0 0
  %322 = vmatpush1.bf16.msra.mxu0 0
  %323 = vmatprep.subr.bf16.mxu0 0
  %324 = vmatpush1.bf16.msra.mxu0 0
  %325 = vmatprep.subr.bf16.mxu0 0
  %326 = vmatpush1.bf16.msra.mxu0 0
  %327 = vmatprep.subr.bf16.mxu0 0
  %328 = vmatpush1.bf16.msra.mxu0 0
  %329 = vmatprep.subr.bf16.mxu0 0
  %330 = vmatpush1.bf16.msra.mxu0 0
  %331 = vmatprep.subr.bf16.mxu0 0
  %332 = vmatpush1.bf16.msra.mxu0 0
  %333 = vmatprep.subr.bf16.mxu0 0
  %334 = vmatpush1.bf16.msra.mxu0 0
  %335 = vmatprep.subr.bf16.mxu0 0
  %336 = vmatpush1.bf16.msra.mxu0 0
  %337 = vmatprep.mubr.bf16.mxu0 0
  %338 = vmatmul.mubr.bf16.gmra.mrb[0].mxu0 %v300
  %v339 = vpop.f32.mrb[0].mxu0
  %v340 = vadd.f32 %v293, %v339
  %v341 = vpop.f32.mrb[0].mxu0
  %v342 = vpop.f32.mrb[0].mxu0
  %v343 = vpop.f32.mrb[0].mxu0
  %344 = vdwg.mxu0
  %v345 = vpack.c.bf16 %v231, %v231
  %v347 = vlaneseq
  %v348 = vshrl.u32 %v347, 7
  %v349 = vsub.s32 0, %v348
  %v350 = vrot.slane %v85, %v349
  %v356 = vunpack.c.l.b16 %v81
  %v357 = vunpack.c.l.b16 %v82
  %v358 = vunpack.c.l.b16 %v83
  %v359 = vunpack.c.l.b16 %v84
  %v360 = vpack.c.b16 %v357, %v356
  %v361 = vpack.c.b16 %v359, %v358
  %v365 = vsel %vm115, %v345, 0
  %367 = vmatprep.subr.bf16.mxu0 0
  %368 = vmatpush1.bf16.msra.mxu0 %v360
  %369 = vmatprep.subr.bf16.mxu0 0
  %370 = vmatpush1.bf16.msra.mxu0 %v361
  %371 = vmatprep.subr.bf16.mxu0 0
  %372 = vmatpush1.bf16.msra.mxu0 0
  %373 = vmatprep.subr.bf16.mxu0 0
  %374 = vmatpush1.bf16.msra.mxu0 0
  %375 = vmatprep.subr.bf16.mxu0 0
  %376 = vmatpush1.bf16.msra.mxu0 0
  %377 = vmatprep.subr.bf16.mxu0 0
  %378 = vmatpush1.bf16.msra.mxu0 0
  %379 = vmatprep.subr.bf16.mxu0 0
  %380 = vmatpush1.bf16.msra.mxu0 0
  %381 = vmatprep.subr.bf16.mxu0 0
  %382 = vmatpush1.bf16.msra.mxu0 0
  %383 = vmatprep.subr.bf16.mxu0 0
  %384 = vmatpush1.bf16.msra.mxu0 0
  %385 = vmatprep.subr.bf16.mxu0 0
  %386 = vmatpush1.bf16.msra.mxu0 0
  %387 = vmatprep.subr.bf16.mxu0 0
  %388 = vmatpush1.bf16.msra.mxu0 0
  %389 = vmatprep.subr.bf16.mxu0 0
  %390 = vmatpush1.bf16.msra.mxu0 0
  %391 = vmatprep.subr.bf16.mxu0 0
  %392 = vmatpush1.bf16.msra.mxu0 0
  %393 = vmatprep.subr.bf16.mxu0 0
  %394 = vmatpush1.bf16.msra.mxu0 0
  %395 = vmatprep.subr.bf16.mxu0 0
  %396 = vmatpush1.bf16.msra.mxu0 0
  %397 = vmatprep.subr.bf16.mxu0 0
  %398 = vmatpush1.bf16.msra.mxu0 0
  %399 = vmatprep.mubr.bf16.mxu0 0
  %400 = vmatmul.mubr.bf16.gmra.mrb[0].mxu0 %v365
  %v401 = vpop.f32.mrb[0].mxu0
  %v402 = vadd.f32 %v350, %v401
  %v403 = vpop.f32.mrb[0].mxu0
  %v404 = vpop.f32.mrb[0].mxu0
  %v405 = vpop.f32.mrb[0].mxu0
  %406 = vdwg.mxu0
  %v407 = vadd.f32 %v340, %v402
  %409 = vrot.lane.b32.xlu0 %v402, 32
  %v410 = vpop.permute.xlu0 %409
  %vm412 = vcmask 785408
  %v413 = vsel %vm412, %v407, %v410
  %v414 = vunpack.c.l.bf16 %v68
  %v416 = vsel %vm160, %v414, 0
  %418 = vmatprep.subr.mxu0 0.0
  %419 = vmatpush1.msra.mxu0 %v413
  %420 = vmatprep.subr.mxu0 0.0
  %421 = vmatpush1.msra.mxu0 0.0
  %422 = vmatprep.subr.mxu0 0.0
  %423 = vmatpush1.msra.mxu0 0.0
  %424 = vmatprep.subr.mxu0 0.0
  %425 = vmatpush1.msra.mxu0 0.0
  %426 = vmatprep.subr.mxu0 0.0
  %427 = vmatpush1.msra.mxu0 0.0
  %428 = vmatprep.subr.mxu0 0.0
  %429 = vmatpush1.msra.mxu0 0.0
  %430 = vmatprep.subr.mxu0 0.0
  %431 = vmatpush1.msra.mxu0 0.0
  %432 = vmatprep.subr.mxu0 0.0
  %433 = vmatpush1.msra.mxu0 0.0
  %434 = vmatprep.subr.mxu0 0.0
  %435 = vmatpush1.msra.mxu0 0.0
  %436 = vmatprep.subr.mxu0 0.0
  %437 = vmatpush1.msra.mxu0 0.0
  %438 = vmatprep.subr.mxu0 0.0
  %439 = vmatpush1.msra.mxu0 0.0
  %440 = vmatprep.subr.mxu0 0.0
  %441 = vmatpush1.msra.mxu0 0.0
  %442 = vmatprep.subr.mxu0 0.0
  %443 = vmatpush1.msra.mxu0 0.0
  %444 = vmatprep.subr.mxu0 0.0
  %445 = vmatpush1.msra.mxu0 0.0
  %446 = vmatprep.subr.mxu0 0.0
  %447 = vmatpush1.msra.mxu0 0.0
  %448 = vmatprep.subr.mxu0 0.0
  %449 = vmatpush1.msra.mxu0 0.0
  %450 = vmatprep.subr.mxu0 0.0
  %451 = vmatpush1.msra.mxu0 0.0
  %452 = vmatprep.subr.mxu0 0.0
  %453 = vmatpush1.msra.mxu0 0.0
  %454 = vmatprep.subr.mxu0 0.0
  %455 = vmatpush1.msra.mxu0 0.0
  %456 = vmatprep.subr.mxu0 0.0
  %457 = vmatpush1.msra.mxu0 0.0
  %458 = vmatprep.subr.mxu0 0.0
  %459 = vmatpush1.msra.mxu0 0.0
  %460 = vmatprep.subr.mxu0 0.0
  %461 = vmatpush1.msra.mxu0 0.0
  %462 = vmatprep.subr.mxu0 0.0
  %463 = vmatpush1.msra.mxu0 0.0
  %464 = vmatprep.subr.mxu0 0.0
  %465 = vmatpush1.msra.mxu0 0.0
  %466 = vmatprep.subr.mxu0 0.0
  %467 = vmatpush1.msra.mxu0 0.0
  %468 = vmatprep.subr.mxu0 0.0
  %469 = vmatpush1.msra.mxu0 0.0
  %470 = vmatprep.subr.mxu0 0.0
  %471 = vmatpush1.msra.mxu0 0.0
  %472 = vmatprep.subr.mxu0 0.0
  %473 = vmatpush1.msra.mxu0 0.0
  %474 = vmatprep.subr.mxu0 0.0
  %475 = vmatpush1.msra.mxu0 0.0
  %476 = vmatprep.subr.mxu0 0.0
  %477 = vmatpush1.msra.mxu0 0.0
  %478 = vmatprep.subr.mxu0 0.0
  %479 = vmatpush1.msra.mxu0 0.0
  %480 = vmatprep.subr.mxu0 0.0
  %481 = vmatpush1.msra.mxu0 0.0
  %482 = vmatprep.mubr.f32.mxu0 0.0
  %483 = vmatmul.mubr.f32.gmra.mrb[0].mxu0 %v416
  %v484 = vpop.f32.mrb[0].mxu0
  %v485 = vadd.f32 0.0, %v484
  %v486 = vpop.f32.mrb[0].mxu0
  %487 = vdwg.mxu0
  %v488 = vxor.u32 %v485, 2147483648
  %v489 = vmul.f32 %v488, 1.442695
  %v490 = vpow.pop %v489
  %v491 = vadd.f32 %v490, 1.0
  %v492 = vrcp.pop %v491
  %v493 = vmul.f32 1.0, %v492
  %v494 = vsub.f32 %v493, 1.0
  %496 = vrot.lane.b32.xlu0 %v485, 32
  %v497 = vpop.permute.xlu0 %496
  %v499 = vmul.f32 %v494, %v497
  %501 = vrot.lane.b32.xlu0 %v499, 64
  %v502 = vpop.permute.xlu0 %501
  %v504 = vadd.f32 %v485, %v502
  %v505 = vtanh.pop %v504
  %v506 = vsub.f32 1.0, %v493
  %508 = vrot.lane.b32.xlu0 %v505, 96
  %v509 = vpop.permute.xlu0 %508
  %v511 = vmul.f32 %v506, %v509
  %513 = vrot.lane.b32.xlu0 %v231, 32
  %v514 = vpop.permute.xlu0 %513
  %v516 = vmul.f32 %v493, %v514
  %v517 = vadd.f32 %v511, %v516
  %v518 = vtanh.pop %v517
  %v519 = vpack.c.bf16 %v518, %v518
  %v521 = vlaneseq
  %v522 = vshrl.u32 %v521, 7
  %v523 = vsub.s32 0, %v522
  %v524 = vrot.slane %v90, %v523
  %527 = vrot.lane.b32.xlu0 %v519, 96
  %v528 = vpop.permute.xlu0 %527
  %v533 = vunpack.c.l.b16 %v86
  %v534 = vunpack.c.l.b16 %v87
  %v535 = vunpack.c.l.b16 %v88
  %v536 = vunpack.c.l.b16 %v89
  %v537 = vpack.c.b16 %v534, %v533
  %v538 = vpack.c.b16 %v536, %v535
  %v542 = vsel %vm115, %v528, 0
  %544 = vmatprep.subr.bf16.mxu0 0
  %545 = vmatpush1.bf16.msra.mxu0 %v537
  %546 = vmatprep.subr.bf16.mxu0 0
  %547 = vmatpush1.bf16.msra.mxu0 %v538
  %548 = vmatprep.subr.bf16.mxu0 0
  %549 = vmatpush1.bf16.msra.mxu0 0
  %550 = vmatprep.subr.bf16.mxu0 0
  %551 = vmatpush1.bf16.msra.mxu0 0
  %552 = vmatprep.subr.bf16.mxu0 0
  %553 = vmatpush1.bf16.msra.mxu0 0
  %554 = vmatprep.subr.bf16.mxu0 0
  %555 = vmatpush1.bf16.msra.mxu0 0
  %556 = vmatprep.subr.bf16.mxu0 0
  %557 = vmatpush1.bf16.msra.mxu0 0
  %558 = vmatprep.subr.bf16.mxu0 0
  %559 = vmatpush1.bf16.msra.mxu0 0
  %560 = vmatprep.subr.bf16.mxu0 0
  %561 = vmatpush1.bf16.msra.mxu0 0
  %562 = vmatprep.subr.bf16.mxu0 0
  %563 = vmatpush1.bf16.msra.mxu0 0
  %564 = vmatprep.subr.bf16.mxu0 0
  %565 = vmatpush1.bf16.msra.mxu0 0
  %566 = vmatprep.subr.bf16.mxu0 0
  %567 = vmatpush1.bf16.msra.mxu0 0
  %568 = vmatprep.subr.bf16.mxu0 0
  %569 = vmatpush1.bf16.msra.mxu0 0
  %570 = vmatprep.subr.bf16.mxu0 0
  %571 = vmatpush1.bf16.msra.mxu0 0
  %572 = vmatprep.subr.bf16.mxu0 0
  %573 = vmatpush1.bf16.msra.mxu0 0
  %574 = vmatprep.subr.bf16.mxu0 0
  %575 = vmatpush1.bf16.msra.mxu0 0
  %576 = vmatprep.mubr.bf16.mxu0 0
  %577 = vmatmul.mubr.bf16.gmra.mrb[0].mxu0 %v542
  %v578 = vpop.f32.mrb[0].mxu0
  %v579 = vadd.f32 %v524, %v578
  %v580 = vpop.f32.mrb[0].mxu0
  %v581 = vpop.f32.mrb[0].mxu0
  %v582 = vpop.f32.mrb[0].mxu0
  %583 = vdwg.mxu0
  %v584 = vunpack.c.l.bf16 %v69
  %v586 = vsel %vm160, %v584, 0
  %588 = vmatprep.subr.mxu0 0.0
  %589 = vmatpush1.msra.mxu0 %v579
  %590 = vmatprep.subr.mxu0 0.0
  %591 = vmatpush1.msra.mxu0 0.0
  %592 = vmatprep.subr.mxu0 0.0
  %593 = vmatpush1.msra.mxu0 0.0
  %594 = vmatprep.subr.mxu0 0.0
  %595 = vmatpush1.msra.mxu0 0.0
  %596 = vmatprep.subr.mxu0 0.0
  %597 = vmatpush1.msra.mxu0 0.0
  %598 = vmatprep.subr.mxu0 0.0
  %599 = vmatpush1.msra.mxu0 0.0
  %600 = vmatprep.subr.mxu0 0.0
  %601 = vmatpush1.msra.mxu0 0.0
  %602 = vmatprep.subr.mxu0 0.0
  %603 = vmatpush1.msra.mxu0 0.0
  %604 = vmatprep.subr.mxu0 0.0
  %605 = vmatpush1.msra.mxu0 0.0
  %606 = vmatprep.subr.mxu0 0.0
  %607 = vmatpush1.msra.mxu0 0.0
  %608 = vmatprep.subr.mxu0 0.0
  %609 = vmatpush1.msra.mxu0 0.0
  %610 = vmatprep.subr.mxu0 0.0
  %611 = vmatpush1.msra.mxu0 0.0
  %612 = vmatprep.subr.mxu0 0.0
  %613 = vmatpush1.msra.mxu0 0.0
  %614 = vmatprep.subr.mxu0 0.0
  %615 = vmatpush1.msra.mxu0 0.0
  %616 = vmatprep.subr.mxu0 0.0
  %617 = vmatpush1.msra.mxu0 0.0
  %618 = vmatprep.subr.mxu0 0.0
  %619 = vmatpush1.msra.mxu0 0.0
  %620 = vmatprep.subr.mxu0 0.0
  %621 = vmatpush1.msra.mxu0 0.0
  %622 = vmatprep.subr.mxu0 0.0
  %623 = vmatpush1.msra.mxu0 0.0
  %624 = vmatprep.subr.mxu0 0.0
  %625 = vmatpush1.msra.mxu0 0.0
  %626 = vmatprep.subr.mxu0 0.0
  %627 = vmatpush1.msra.mxu0 0.0
  %628 = vmatprep.subr.mxu0 0.0
  %629 = vmatpush1.msra.mxu0 0.0
  %630 = vmatprep.subr.mxu0 0.0
  %631 = vmatpush1.msra.mxu0 0.0
  %632 = vmatprep.subr.mxu0 0.0
  %633 = vmatpush1.msra.mxu0 0.0
  %634 = vmatprep.subr.mxu0 0.0
  %635 = vmatpush1.msra.mxu0 0.0
  %636 = vmatprep.subr.mxu0 0.0
  %637 = vmatpush1.msra.mxu0 0.0
  %638 = vmatprep.subr.mxu0 0.0
  %639 = vmatpush1.msra.mxu0 0.0
  %640 = vmatprep.subr.mxu0 0.0
  %641 = vmatpush1.msra.mxu0 0.0
  %642 = vmatprep.subr.mxu0 0.0
  %643 = vmatpush1.msra.mxu0 0.0
  %644 = vmatprep.subr.mxu0 0.0
  %645 = vmatpush1.msra.mxu0 0.0
  %646 = vmatprep.subr.mxu0 0.0
  %647 = vmatpush1.msra.mxu0 0.0
  %648 = vmatprep.subr.mxu0 0.0
  %649 = vmatpush1.msra.mxu0 0.0
  %650 = vmatprep.subr.mxu0 0.0
  %651 = vmatpush1.msra.mxu0 0.0
  %652 = vmatprep.mubr.f32.mxu0 0.0
  %653 = vmatmul.mubr.f32.gmra.mrb[0].mxu0 %v586
  %v654 = vpop.f32.mrb[0].mxu0
  %v655 = vadd.f32 0.0, %v654
  %v656 = vpop.f32.mrb[0].mxu0
  %657 = vdwg.mxu0
  %v658 = vunpack.c.l.bf16 %v70
  %660 = vrot.lane.b32.xlu0 %v579, 112
  %v661 = vpop.permute.xlu0 %660
  %v664 = vsel %vm160, %v658, 0
  %666 = vmatprep.subr.mxu0 0.0
  %667 = vmatpush1.msra.mxu0 %v661
  %668 = vmatprep.subr.mxu0 0.0
  %669 = vmatpush1.msra.mxu0 0.0
  %670 = vmatprep.subr.mxu0 0.0
  %671 = vmatpush1.msra.mxu0 0.0
  %672 = vmatprep.subr.mxu0 0.0
  %673 = vmatpush1.msra.mxu0 0.0
  %674 = vmatprep.subr.mxu0 0.0
  %675 = vmatpush1.msra.mxu0 0.0
  %676 = vmatprep.subr.mxu0 0.0
  %677 = vmatpush1.msra.mxu0 0.0
  %678 = vmatprep.subr.mxu0 0.0
  %679 = vmatpush1.msra.mxu0 0.0
  %680 = vmatprep.subr.mxu0 0.0
  %681 = vmatpush1.msra.mxu0 0.0
  %682 = vmatprep.subr.mxu0 0.0
  %683 = vmatpush1.msra.mxu0 0.0
  %684 = vmatprep.subr.mxu0 0.0
  %685 = vmatpush1.msra.mxu0 0.0
  %686 = vmatprep.subr.mxu0 0.0
  %687 = vmatpush1.msra.mxu0 0.0
  %688 = vmatprep.subr.mxu0 0.0
  %689 = vmatpush1.msra.mxu0 0.0
  %690 = vmatprep.subr.mxu0 0.0
  %691 = vmatpush1.msra.mxu0 0.0
  %692 = vmatprep.subr.mxu0 0.0
  %693 = vmatpush1.msra.mxu0 0.0
  %694 = vmatprep.subr.mxu0 0.0
  %695 = vmatpush1.msra.mxu0 0.0
  %696 = vmatprep.subr.mxu0 0.0
  %697 = vmatpush1.msra.mxu0 0.0
  %698 = vmatprep.subr.mxu0 0.0
  %699 = vmatpush1.msra.mxu0 0.0
  %700 = vmatprep.subr.mxu0 0.0
  %701 = vmatpush1.msra.mxu0 0.0
  %702 = vmatprep.subr.mxu0 0.0
  %703 = vmatpush1.msra.mxu0 0.0
  %704 = vmatprep.subr.mxu0 0.0
  %705 = vmatpush1.msra.mxu0 0.0
  %706 = vmatprep.subr.mxu0 0.0
  %707 = vmatpush1.msra.mxu0 0.0
  %708 = vmatprep.subr.mxu0 0.0
  %709 = vmatpush1.msra.mxu0 0.0
  %710 = vmatprep.subr.mxu0 0.0
  %711 = vmatpush1.msra.mxu0 0.0
  %712 = vmatprep.subr.mxu0 0.0
  %713 = vmatpush1.msra.mxu0 0.0
  %714 = vmatprep.subr.mxu0 0.0
  %715 = vmatpush1.msra.mxu0 0.0
  %716 = vmatprep.subr.mxu0 0.0
  %717 = vmatpush1.msra.mxu0 0.0
  %718 = vmatprep.subr.mxu0 0.0
  %719 = vmatpush1.msra.mxu0 0.0
  %720 = vmatprep.subr.mxu0 0.0
  %721 = vmatpush1.msra.mxu0 0.0
  %722 = vmatprep.subr.mxu0 0.0
  %723 = vmatpush1.msra.mxu0 0.0
  %724 = vmatprep.subr.mxu0 0.0
  %725 = vmatpush1.msra.mxu0 0.0
  %726 = vmatprep.subr.mxu0 0.0
  %727 = vmatpush1.msra.mxu0 0.0
  %728 = vmatprep.subr.mxu0 0.0
  %729 = vmatpush1.msra.mxu0 0.0
  %730 = vmatprep.mubr.f32.mxu0 0.0
  %731 = vmatmul.mubr.f32.gmra.mrb[0].mxu0 %v664
  %v732 = vpop.f32.mrb[0].mxu0
  %v733 = vadd.f32 0.0, %v732
  %v734 = vpop.f32.mrb[0].mxu0
  %735 = vdwg.mxu0
  %737 = vrot.lane.b32.xlu0 %v733, 16
  %v738 = vpop.permute.xlu0 %737
  %vm740 = vcmask 130048
  %v741 = vsel %vm740, %v655, %v738
  %v742 = vtanh.pop %v741
  %v743 = vpack.c.bf16 %v742, %v742
  %v745 = vlaneseq
  %v746 = vshrl.u32 %v745, 7
  %v747 = vsub.s32 0, %v746
  %v748 = vrot.slane %v95, %v747
  %v754 = vunpack.c.l.b16 %v91
  %v755 = vunpack.c.l.b16 %v92
  %v756 = vunpack.c.l.b16 %v93
  %v757 = vunpack.c.l.b16 %v94
  %v758 = vpack.c.b16 %v755, %v754
  %v759 = vpack.c.b16 %v757, %v756
  %v763 = vsel %vm115, %v743, 0
  %765 = vmatprep.subr.bf16.mxu0 0
  %766 = vmatpush1.bf16.msra.mxu0 %v758
  %767 = vmatprep.subr.bf16.mxu0 0
  %768 = vmatpush1.bf16.msra.mxu0 %v759
  %769 = vmatprep.subr.bf16.mxu0 0
  %770 = vmatpush1.bf16.msra.mxu0 0
  %771 = vmatprep.subr.bf16.mxu0 0
  %772 = vmatpush1.bf16.msra.mxu0 0
  %773 = vmatprep.subr.bf16.mxu0 0
  %774 = vmatpush1.bf16.msra.mxu0 0
  %775 = vmatprep.subr.bf16.mxu0 0
  %776 = vmatpush1.bf16.msra.mxu0 0
  %777 = vmatprep.subr.bf16.mxu0 0
  %778 = vmatpush1.bf16.msra.mxu0 0
  %779 = vmatprep.subr.bf16.mxu0 0
  %780 = vmatpush1.bf16.msra.mxu0 0
  %781 = vmatprep.subr.bf16.mxu0 0
  %782 = vmatpush1.bf16.msra.mxu0 0
  %783 = vmatprep.subr.bf16.mxu0 0
  %784 = vmatpush1.bf16.msra.mxu0 0
  %785 = vmatprep.subr.bf16.mxu0 0
  %786 = vmatpush1.bf16.msra.mxu0 0
  %787 = vmatprep.subr.bf16.mxu0 0
  %788 = vmatpush1.bf16.msra.mxu0 0
  %789 = vmatprep.subr.bf16.mxu0 0
  %790 = vmatpush1.bf16.msra.mxu0 0
  %791 = vmatprep.subr.bf16.mxu0 0
  %792 = vmatpush1.bf16.msra.mxu0 0
  %793 = vmatprep.subr.bf16.mxu0 0
  %794 = vmatpush1.bf16.msra.mxu0 0
  %795 = vmatprep.subr.bf16.mxu0 0
  %796 = vmatpush1.bf16.msra.mxu0 0
  %797 = vmatprep.mubr.bf16.mxu0 0
  %798 = vmatmul.mubr.bf16.gmra.mrb[0].mxu0 %v763
  %v799 = vpop.f32.mrb[0].mxu0
  %v800 = vadd.f32 %v748, %v799
  %v801 = vpop.f32.mrb[0].mxu0
  %v802 = vpop.f32.mrb[0].mxu0
  %v803 = vpop.f32.mrb[0].mxu0
  %804 = vdwg.mxu0
  %v805 = vmul.f32 %v800, %v800
  %vm806 = vcmask 23552
  %v807 = vsel %vm806, %v805, 0.0
  %808 = vadd.xlane.f32.xlu0 %v807
  %v809 = vpop.xlane.xlu0 %808
  %v810 = vrsqrt.pop %v809
  %v811 = vmul.f32 %v809, %v810
  %vm812 = vcmp.eq.f32.partialorder %v809, inf
  %v813 = vsel %vm812, %v809, %v811
  %vm814 = vcmp.eq.f32.partialorder %v809, 0.0
  %v815 = vand.u32 %v809, 2147483648
  %v816 = vsel %vm814, %v815, %v813
  %v817 = vmul.f32 %v816, 0.5
  %v818 = vand.u32 2147483647, %v817
  %vm819 = vcmp.le.f32.partialorder %v818, 0.7853982
  %vm820 = vcmp.lt.s32.totalorder %v817, 0
  %v821 = vand.u32 %v817, 2139095040
  %v822 = vshrl.u32 %v821, 23
  %v823 = vsub.s32 %v822, 127
  %v824 = vand.u32 2147483647, %v817
  %v825 = vand.u32 %v824, 8388607
  %v826 = vor.u32 %v825, 8388608
  %v827 = vsub.s32 0, %v826
  %v828 = vadd.s32 %v823, 1
  %vm829 = vcmp.gt.s32.totalorder %v828, 0
  %v830 = vsel %vm829, %v828, 0
  %v831 = vshrl.u32 %v830, 5
  %v832 = vand.u32 %v830, 31
  %v833 = vsub.s32 32, %v832
  %v834 = vshrl.u32 683565275, %v833
  %v835 = vshll.u32 683565275, %v832
  %v836 = vshrl.u32 2475754826, %v833
  %v837 = vor.u32 %v835, %v836
  %v838 = vshll.u32 2475754826, %v832
  %v839 = vshrl.u32 2131351028, %v833
  %v840 = vor.u32 %v838, %v839
  %v841 = vshll.u32 2131351028, %v832
  %v842 = vshrl.u32 2102212464, %v833
  %v843 = vor.u32 %v841, %v842
  %v844 = vshll.u32 2102212464, %v832
  %v845 = vshrl.u32 920167782, %v833
  %v846 = vor.u32 %v844, %v845
  %v847 = vshll.u32 920167782, %v832
  %v848 = vshrl.u32 1326507024, %v833
  %v849 = vor.u32 %v847, %v848
  %vm850 = vcmp.lt.s32.totalorder %v831, 1
  %vm851 = vcmp.lt.s32.totalorder %v831, 2
  %vm852 = vcmp.lt.s32.totalorder %v831, 3
  %vm853 = vcmp.lt.s32.totalorder %v831, 4
  %v854 = vsel %vm850, %v834, %v837
  %v855 = vsel %vm853, %v843, 2102212464
  %v856 = vsel %vm852, %v840, %v855
  %v857 = vsel %vm851, %v854, %v856
  %v858 = vsel %vm850, %v837, %v840
  %v859 = vsel %vm853, %v846, 920167782
  %v860 = vsel %vm852, %v843, %v859
  %v861 = vsel %vm851, %v858, %v860
  %v862 = vsel %vm850, %v840, %v843
  %v863 = vsel %vm853, %v849, 1326507024
  %v864 = vsel %vm852, %v846, %v863
  %v865 = vsel %vm851, %v862, %v864
  %v866 = vshll.u32 %v826, 8
  %v867 = vmul.u32.u64.compose %v866, %v865
  %v868 = vextract.low.u32 %v867
  %v869 = vextract.high.u32 %v867
  %v870 = vmul.u32.u64.compose %v866, %v861
  %v871 = vextract.low.u32 %v870
  %v872 = vextract.high.u32 %v870
  %v873 = vmul.u32 %v866, %v857
  %v874 = vadd.s32 %v869, %v871
  %vm875 = vc.u32 %v869, %v871
  %v876 = vadd.s32 %v872, 1
  %v877 = vsel %vm875, %v876, %v872
  %v878 = vadd.s32 %v873, %v877
  %v879 = vadd.s32 %v878, 536870912
  %v880 = vshrl.u32 %v879, 30
  %v881 = vshll.u32 %v880, 30
  %v882 = vsub.s32 %v878, %v881
  %vm883 = vcmp.lt.s32.totalorder %v882, 0
  %v884 = vsub.s32 0, %v882
  %v885 = vsel %vm883, %v884, %v882
  %v886 = vclz %v885
  %v887 = vsub.s32 %v886, 2
  %vm888 = vcmp.gt.s32.totalorder 0, %v887
  %v889 = vsel %vm888, 0, %v887
  %v890 = vsub.s32 32, %v889
  %v891 = vshll.u32 %v882, %v889
  %v892 = vshrl.u32 %v874, %v890
  %v893 = vor.u32 %v891, %v892
  %v894 = vsub.s32 4294967266, %v889
  %v895 = vadd.s32 %v894, 127
  %v896 = vshll.u32 %v895, 23
  %v897 = vor.u32 4788187, %v896
  %v898 = vand.u32 2147483647, %v897
  %v900 = vcvt.s32.f32 %v893
  %v901 = vmul.f32 %v900, %v898
  %v902 = vxor.u32 %v901, 2147483648
  %v903 = vsel %vm820, %v902, %v901
  %v904 = vsub.s32 4, %v880
  %v905 = vsel %vm820, %v904, %v880
  %v906 = vsel %vm819, %v817, %v903
  %v907 = vsel %vm819, 0, %v905
  %v908 = vcosq.f32.pop %v906
  %v909 = vsinq.f32.pop %v906
  %vm910 = vweird.f32 %v817
  %v911 = vand.u32 %v907, 3
  %vm912 = vcmp.lt.s32.totalorder %v911, 2
  %vm913 = vcmp.eq.s32.totalorder %v911, 0
  %v914 = vxor.u32 %v909, 2147483648
  %v915 = vsel %vm913, %v908, %v914
  %vm916 = vcmp.eq.s32.totalorder %v911, 2
  %v917 = vxor.u32 %v908, 2147483648
  %v918 = vsel %vm916, %v917, %v909
  %v919 = vsel %vm912, %v915, %v918
  %v920 = vsel %vm910, nan, %v919
  %vm921 = vcmp.gt.f32.partialorder %v816, 1e-08
  %v922 = vand.u32 2147483647, %v817
  %vm923 = vcmp.le.f32.partialorder %v922, 0.7853982
  %vm924 = vcmp.lt.s32.totalorder %v817, 0
  %v925 = vand.u32 %v817, 2139095040
  %v926 = vshrl.u32 %v925, 23
  %v927 = vsub.s32 %v926, 127
  %v928 = vand.u32 2147483647, %v817
  %v929 = vand.u32 %v928, 8388607
  %v930 = vor.u32 %v929, 8388608
  %v931 = vsub.s32 0, %v930
  %v932 = vadd.s32 %v927, 1
  %vm933 = vcmp.gt.s32.totalorder %v932, 0
  %v934 = vsel %vm933, %v932, 0
  %v935 = vshrl.u32 %v934, 5
  %v936 = vand.u32 %v934, 31
  %v937 = vsub.s32 32, %v936
  %v938 = vshrl.u32 683565275, %v937
  %v939 = vshll.u32 683565275, %v936
  %v940 = vshrl.u32 2475754826, %v937
  %v941 = vor.u32 %v939, %v940
  %v942 = vshll.u32 2475754826, %v936
  %v943 = vshrl.u32 2131351028, %v937
  %v944 = vor.u32 %v942, %v943
  %v945 = vshll.u32 2131351028, %v936
  %v946 = vshrl.u32 2102212464, %v937
  %v947 = vor.u32 %v945, %v946
  %v948 = vshll.u32 2102212464, %v936
  %v949 = vshrl.u32 920167782, %v937
  %v950 = vor.u32 %v948, %v949
  %v951 = vshll.u32 920167782, %v936
  %v952 = vshrl.u32 1326507024, %v937
  %v953 = vor.u32 %v951, %v952
  %vm954 = vcmp.lt.s32.totalorder %v935, 1
  %vm955 = vcmp.lt.s32.totalorder %v935, 2
  %vm956 = vcmp.lt.s32.totalorder %v935, 3
  %vm957 = vcmp.lt.s32.totalorder %v935, 4
  %v958 = vsel %vm954, %v938, %v941
  %v959 = vsel %vm957, %v947, 2102212464
  %v960 = vsel %vm956, %v944, %v959
  %v961 = vsel %vm955, %v958, %v960
  %v962 = vsel %vm954, %v941, %v944
  %v963 = vsel %vm957, %v950, 920167782
  %v964 = vsel %vm956, %v947, %v963
  %v965 = vsel %vm955, %v962, %v964
  %v966 = vsel %vm954, %v944, %v947
  %v967 = vsel %vm957, %v953, 1326507024
  %v968 = vsel %vm956, %v950, %v967
  %v969 = vsel %vm955, %v966, %v968
  %v970 = vshll.u32 %v930, 8
  %v971 = vmul.u32.u64.compose %v970, %v969
  %v972 = vextract.low.u32 %v971
  %v973 = vextract.high.u32 %v971
  %v974 = vmul.u32.u64.compose %v970, %v965
  %v975 = vextract.low.u32 %v974
  %v976 = vextract.high.u32 %v974
  %v977 = vmul.u32 %v970, %v961
  %v978 = vadd.s32 %v973, %v975
  %vm979 = vc.u32 %v973, %v975
  %v980 = vadd.s32 %v976, 1
  %v981 = vsel %vm979, %v980, %v976
  %v982 = vadd.s32 %v977, %v981
  %v983 = vadd.s32 %v982, 536870912
  %v984 = vshrl.u32 %v983, 30
  %v985 = vshll.u32 %v984, 30
  %v986 = vsub.s32 %v982, %v985
  %vm987 = vcmp.lt.s32.totalorder %v986, 0
  %v988 = vsub.s32 0, %v986
  %v989 = vsel %vm987, %v988, %v986
  %v990 = vclz %v989
  %v991 = vsub.s32 %v990, 2
  %vm992 = vcmp.gt.s32.totalorder 0, %v991
  %v993 = vsel %vm992, 0, %v991
  %v994 = vsub.s32 32, %v993
  %v995 = vshll.u32 %v986, %v993
  %v996 = vshrl.u32 %v978, %v994
  %v997 = vor.u32 %v995, %v996
  %v998 = vsub.s32 4294967266, %v993
  %v999 = vadd.s32 %v998, 127
  %v1000 = vshll.u32 %v999, 23
  %v1001 = vor.u32 4788187, %v1000
  %v1002 = vand.u32 2147483647, %v1001
  %v1004 = vcvt.s32.f32 %v997
  %v1005 = vmul.f32 %v1004, %v1002
  %v1006 = vxor.u32 %v1005, 2147483648
  %v1007 = vsel %vm924, %v1006, %v1005
  %v1008 = vsub.s32 4, %v984
  %v1009 = vsel %vm924, %v1008, %v984
  %v1010 = vsel %vm923, %v817, %v1007
  %v1011 = vsel %vm923, 0, %v1009
  %v1012 = vcosq.f32.pop %v1010
  %v1013 = vsinq.f32.pop %v1010
  %vm1014 = vweird.f32 %v817
  %v1015 = vadd.s32 %v1011, 3
  %v1016 = vand.u32 %v1015, 3
  %vm1017 = vcmp.lt.s32.totalorder %v1016, 2
  %vm1018 = vcmp.eq.s32.totalorder %v1016, 0
  %v1019 = vxor.u32 %v1013, 2147483648
  %v1020 = vsel %vm1018, %v1012, %v1019
  %vm1021 = vcmp.eq.s32.totalorder %v1016, 2
  %v1022 = vxor.u32 %v1012, 2147483648
  %v1023 = vsel %vm1021, %v1022, %v1013
  %v1024 = vsel %vm1017, %v1020, %v1023
  %v1025 = vsel %vm1014, nan, %v1024
  %v1026 = vmax.f32 %v816, 1e-08
  %v1027 = vrcp.pop %v1026
  %v1028 = vmul.f32 %v1025, %v1027
  %v1029 = vsel %vm921, %v1028, 0.5
  %v1030 = vmul.f32 %v800, %v1029
  %1032 = vrot.lane.b32.xlu0 %v1030, 1
  %v1033 = vpop.permute.xlu0 %1032
  %vm1035 = vcmask 7168
  %v1036 = vsel %vm1035, %v920, %v1033
  %v1037 = vmul.f32 %v1036, %v66
  %1039 = vrot.lane.b32.xlu0 %v1037, 127
  %v1040 = vpop.permute.xlu0 %1039
  %v1042 = vsub.f32 %v1037, %v1040
  %1043 = vrot.lane.b32.xlu0 %v1037, 126
  %v1044 = vpop.permute.xlu0 %1043
  %v1046 = vsub.f32 %v1042, %v1044
  %1047 = vrot.lane.b32.xlu0 %v1037, 125
  %v1048 = vpop.permute.xlu0 %1047
  %v1050 = vsub.f32 %v1046, %v1048
  %1052 = vrot.lane.b32.xlu0 %v66, 127
  %v1053 = vpop.permute.xlu0 %1052
  %v1055 = vmul.f32 %v1036, %v1053
  %1056 = vrot.lane.b32.xlu0 %v66, 1
  %v1057 = vpop.permute.xlu0 %1056
  %v1059 = vmul.f32 %v1036, %v1057
  %1061 = vrot.lane.b32.xlu0 %v1059, 127
  %v1062 = vpop.permute.xlu0 %1061
  %v1064 = vadd.f32 %v1055, %v1062
  %1066 = vrot.lane.b32.xlu0 %v1055, 126
  %v1067 = vpop.permute.xlu0 %1066
  %v1069 = vadd.f32 %v1064, %v1067
  %1070 = vrot.lane.b32.xlu0 %v1059, 125
  %v1071 = vpop.permute.xlu0 %1070
  %v1073 = vsub.f32 %v1069, %v1071
  %1074 = vrot.lane.b32.xlu0 %v66, 126
  %v1075 = vpop.permute.xlu0 %1074
  %v1077 = vmul.f32 %v1036, %v1075
  %1079 = vrot.lane.b32.xlu0 %v1077, 127
  %v1080 = vpop.permute.xlu0 %1079
  %v1082 = vsub.f32 %v1077, %v1080
  %1083 = vrot.lane.b32.xlu0 %v66, 2
  %v1084 = vpop.permute.xlu0 %1083
  %v1086 = vmul.f32 %v1036, %v1084
  %1088 = vrot.lane.b32.xlu0 %v1086, 126
  %v1089 = vpop.permute.xlu0 %1088
  %v1091 = vadd.f32 %v1082, %v1089
  %1092 = vrot.lane.b32.xlu0 %v1086, 125
  %v1093 = vpop.permute.xlu0 %1092
  %v1095 = vadd.f32 %v1091, %v1093
  %1096 = vrot.lane.b32.xlu0 %v66, 125
  %v1097 = vpop.permute.xlu0 %1096
  %v1099 = vmul.f32 %v1036, %v1097
  %1100 = vrot.lane.b32.xlu0 %v1055, 127
  %v1101 = vpop.permute.xlu0 %1100
  %v1103 = vadd.f32 %v1099, %v1101
  %1104 = vrot.lane.b32.xlu0 %v1059, 126
  %v1105 = vpop.permute.xlu0 %1104
  %v1107 = vsub.f32 %v1103, %v1105
  %1108 = vrot.lane.b32.xlu0 %v66, 3
  %v1109 = vpop.permute.xlu0 %1108
  %v1111 = vmul.f32 %v1036, %v1109
  %1113 = vrot.lane.b32.xlu0 %v1111, 125
  %v1114 = vpop.permute.xlu0 %1113
  %v1116 = vadd.f32 %v1107, %v1114
  %1118 = vrot.lane.b32.xlu0 %v1073, 1
  %v1119 = vpop.permute.xlu0 %1118
  %1122 = vrot.lane.b32.xlu0 %v1095, 2
  %v1123 = vpop.permute.xlu0 %1122
  %1126 = vrot.lane.b32.xlu0 %v1116, 3
  %v1127 = vpop.permute.xlu0 %1126
  %v1129 = vsel %vm1035, %v1050, %v1119
  %vm1130 = vcmask 15360
  %v1131 = vsel %vm1130, %v1129, %v1123
  %v1132 = vsel %vm806, %v1131, %v1127
  %1134 = vrot.lane.b32.xlu0 %v800, 1
  %v1135 = vpop.permute.xlu0 %1134
  %vm1137 = vcmask 31744
  %v1138 = vsel %vm1137, %v1036, %v1135
  %vm1139 = vcmask 80896
  %v1140 = vsel %vm1139, %v1138, 0.0
  %1142 = vrot.lane.b32.xlu0 %v1036, 4
  %v1143 = vpop.permute.xlu0 %1142
  %v1145 = vsel %vm1137, %v1132, %v1143
  %v1146 = vpack.c.bf16 %v1145, %v1145
  %v1148 = vsel %vm160, %v1146, 0
  %1150 = vmatprep.subr.bf16.mxu0 0
  %1151 = vmatpush1.bf16.msra.mxu0 %v303
  %1152 = vmatprep.subr.bf16.mxu0 0
  %1153 = vmatpush1.bf16.msra.mxu0 0
  %1154 = vmatprep.subr.bf16.mxu0 0
  %1155 = vmatpush1.bf16.msra.mxu0 0
  %1156 = vmatprep.subr.bf16.mxu0 0
  %1157 = vmatpush1.bf16.msra.mxu0 0
  %1158 = vmatprep.subr.bf16.mxu0 0
  %1159 = vmatpush1.bf16.msra.mxu0 0
  %1160 = vmatprep.subr.bf16.mxu0 0
  %1161 = vmatpush1.bf16.msra.mxu0 0
  %1162 = vmatprep.subr.bf16.mxu0 0
  %1163 = vmatpush1.bf16.msra.mxu0 0
  %1164 = vmatprep.subr.bf16.mxu0 0
  %1165 = vmatpush1.bf16.msra.mxu0 0
  %1166 = vmatprep.subr.bf16.mxu0 0
  %1167 = vmatpush1.bf16.msra.mxu0 0
  %1168 = vmatprep.subr.bf16.mxu0 0
  %1169 = vmatpush1.bf16.msra.mxu0 0
  %1170 = vmatprep.subr.bf16.mxu0 0
  %1171 = vmatpush1.bf16.msra.mxu0 0
  %1172 = vmatprep.subr.bf16.mxu0 0
  %1173 = vmatpush1.bf16.msra.mxu0 0
  %1174 = vmatprep.subr.bf16.mxu0 0
  %1175 = vmatpush1.bf16.msra.mxu0 0
  %1176 = vmatprep.subr.bf16.mxu0 0
  %1177 = vmatpush1.bf16.msra.mxu0 0
  %1178 = vmatprep.subr.bf16.mxu0 0
  %1179 = vmatpush1.bf16.msra.mxu0 0
  %1180 = vmatprep.subr.bf16.mxu0 0
  %1181 = vmatpush1.bf16.msra.mxu0 0
  %1182 = vmatprep.mubr.bf16.mxu0 0
  %1183 = vmatmul.mubr.bf16.gmra.mrb[0].mxu0 %v1148
  %v1184 = vpop.f32.mrb[0].mxu0
  %v1185 = vadd.f32 %v293, %v1184
  %v1186 = vpop.f32.mrb[0].mxu0
  %v1187 = vpop.f32.mrb[0].mxu0
  %v1188 = vpop.f32.mrb[0].mxu0
  %1189 = vdwg.mxu0
  %v1190 = vpack.c.bf16 %v517, %v517
  %1192 = vrot.lane.b32.xlu0 %v1190, 96
  %v1193 = vpop.permute.xlu0 %1192
  %v1195 = vsel %vm115, %v1193, 0
  %1197 = vmatprep.subr.bf16.mxu0 0
  %1198 = vmatpush1.bf16.msra.mxu0 %v360
  %1199 = vmatprep.subr.bf16.mxu0 0
  %1200 = vmatpush1.bf16.msra.mxu0 %v361
  %1201 = vmatprep.subr.bf16.mxu0 0
  %1202 = vmatpush1.bf16.msra.mxu0 0
  %1203 = vmatprep.subr.bf16.mxu0 0
  %1204 = vmatpush1.bf16.msra.mxu0 0
  %1205 = vmatprep.subr.bf16.mxu0 0
  %1206 = vmatpush1.bf16.msra.mxu0 0
  %1207 = vmatprep.subr.bf16.mxu0 0
  %1208 = vmatpush1.bf16.msra.mxu0 0
  %1209 = vmatprep.subr.bf16.mxu0 0
  %1210 = vmatpush1.bf16.msra.mxu0 0
  %1211 = vmatprep.subr.bf16.mxu0 0
  %1212 = vmatpush1.bf16.msra.mxu0 0
  %1213 = vmatprep.subr.bf16.mxu0 0
  %1214 = vmatpush1.bf16.msra.mxu0 0
  %1215 = vmatprep.subr.bf16.mxu0 0
  %1216 = vmatpush1.bf16.msra.mxu0 0
  %1217 = vmatprep.subr.bf16.mxu0 0
  %1218 = vmatpush1.bf16.msra.mxu0 0
  %1219 = vmatprep.subr.bf16.mxu0 0
  %1220 = vmatpush1.bf16.msra.mxu0 0
  %1221 = vmatprep.subr.bf16.mxu0 0
  %1222 = vmatpush1.bf16.msra.mxu0 0
  %1223 = vmatprep.subr.bf16.mxu0 0
  %1224 = vmatpush1.bf16.msra.mxu0 0
  %1225 = vmatprep.subr.bf16.mxu0 0
  %1226 = vmatpush1.bf16.msra.mxu0 0
  %1227 = vmatprep.subr.bf16.mxu0 0
  %1228 = vmatpush1.bf16.msra.mxu0 0
  %1229 = vmatprep.mubr.bf16.mxu0 0
  %1230 = vmatmul.mubr.bf16.gmra.mrb[0].mxu0 %v1195
  %v1231 = vpop.f32.mrb[0].mxu0
  %v1232 = vadd.f32 %v350, %v1231
  %v1233 = vpop.f32.mrb[0].mxu0
  %v1234 = vpop.f32.mrb[0].mxu0
  %v1235 = vpop.f32.mrb[0].mxu0
  %1236 = vdwg.mxu0
  %v1237 = vadd.f32 %v1185, %v1232
  %1239 = vrot.lane.b32.xlu0 %v1232, 32
  %v1240 = vpop.permute.xlu0 %1239
  %v1242 = vsel %vm412, %v1237, %v1240
  %1243 = vmatprep.subr.mxu0 0.0
  %1244 = vmatpush1.msra.mxu0 %v1242
  %1245 = vmatprep.subr.mxu0 0.0
  %1246 = vmatpush1.msra.mxu0 0.0
  %1247 = vmatprep.subr.mxu0 0.0
  %1248 = vmatpush1.msra.mxu0 0.0
  %1249 = vmatprep.subr.mxu0 0.0
  %1250 = vmatpush1.msra.mxu0 0.0
  %1251 = vmatprep.subr.mxu0 0.0
  %1252 = vmatpush1.msra.mxu0 0.0
  %1253 = vmatprep.subr.mxu0 0.0
  %1254 = vmatpush1.msra.mxu0 0.0
  %1255 = vmatprep.subr.mxu0 0.0
  %1256 = vmatpush1.msra.mxu0 0.0
  %1257 = vmatprep.subr.mxu0 0.0
  %1258 = vmatpush1.msra.mxu0 0.0
  %1259 = vmatprep.subr.mxu0 0.0
  %1260 = vmatpush1.msra.mxu0 0.0
  %1261 = vmatprep.subr.mxu0 0.0
  %1262 = vmatpush1.msra.mxu0 0.0
  %1263 = vmatprep.subr.mxu0 0.0
  %1264 = vmatpush1.msra.mxu0 0.0
  %1265 = vmatprep.subr.mxu0 0.0
  %1266 = vmatpush1.msra.mxu0 0.0
  %1267 = vmatprep.subr.mxu0 0.0
  %1268 = vmatpush1.msra.mxu0 0.0
  %1269 = vmatprep.subr.mxu0 0.0
  %1270 = vmatpush1.msra.mxu0 0.0
  %1271 = vmatprep.subr.mxu0 0.0
  %1272 = vmatpush1.msra.mxu0 0.0
  %1273 = vmatprep.subr.mxu0 0.0
  %1274 = vmatpush1.msra.mxu0 0.0
  %1275 = vmatprep.subr.mxu0 0.0
  %1276 = vmatpush1.msra.mxu0 0.0
  %1277 = vmatprep.subr.mxu0 0.0
  %1278 = vmatpush1.msra.mxu0 0.0
  %1279 = vmatprep.subr.mxu0 0.0
  %1280 = vmatpush1.msra.mxu0 0.0
  %1281 = vmatprep.subr.mxu0 0.0
  %1282 = vmatpush1.msra.mxu0 0.0
  %1283 = vmatprep.subr.mxu0 0.0
  %1284 = vmatpush1.msra.mxu0 0.0
  %1285 = vmatprep.subr.mxu0 0.0
  %1286 = vmatpush1.msra.mxu0 0.0
  %1287 = vmatprep.subr.mxu0 0.0
  %1288 = vmatpush1.msra.mxu0 0.0
  %1289 = vmatprep.subr.mxu0 0.0
  %1290 = vmatpush1.msra.mxu0 0.0
  %1291 = vmatprep.subr.mxu0 0.0
  %1292 = vmatpush1.msra.mxu0 0.0
  %1293 = vmatprep.subr.mxu0 0.0
  %1294 = vmatpush1.msra.mxu0 0.0
  %1295 = vmatprep.subr.mxu0 0.0
  %1296 = vmatpush1.msra.mxu0 0.0
  %1297 = vmatprep.subr.mxu0 0.0
  %1298 = vmatpush1.msra.mxu0 0.0
  %1299 = vmatprep.subr.mxu0 0.0
  %1300 = vmatpush1.msra.mxu0 0.0
  %1301 = vmatprep.subr.mxu0 0.0
  %1302 = vmatpush1.msra.mxu0 0.0
  %1303 = vmatprep.subr.mxu0 0.0
  %1304 = vmatpush1.msra.mxu0 0.0
  %1305 = vmatprep.subr.mxu0 0.0
  %1306 = vmatpush1.msra.mxu0 0.0
  %1307 = vmatprep.mubr.f32.mxu0 0.0
  %1308 = vmatmul.mubr.f32.gmra.mrb[0].mxu0 %v416
  %v1309 = vpop.f32.mrb[0].mxu0
  %v1310 = vadd.f32 0.0, %v1309
  %v1311 = vpop.f32.mrb[0].mxu0
  %1312 = vdwg.mxu0
  %v1313 = vxor.u32 %v1310, 2147483648
  %v1314 = vmul.f32 %v1313, 1.442695
  %v1315 = vpow.pop %v1314
  %v1316 = vadd.f32 %v1315, 1.0
  %v1317 = vrcp.pop %v1316
  %v1318 = vmul.f32 1.0, %v1317
  %v1319 = vsub.f32 %v1318, 1.0
  %1321 = vrot.lane.b32.xlu0 %v1310, 32
  %v1322 = vpop.permute.xlu0 %1321
  %v1324 = vmul.f32 %v1319, %v1322
  %1326 = vrot.lane.b32.xlu0 %v1324, 64
  %v1327 = vpop.permute.xlu0 %1326
  %v1329 = vadd.f32 %v1310, %v1327
  %v1330 = vtanh.pop %v1329
  %v1331 = vsub.f32 1.0, %v1318
  %1333 = vrot.lane.b32.xlu0 %v1330, 96
  %v1334 = vpop.permute.xlu0 %1333
  %v1336 = vmul.f32 %v1331, %v1334
  %v1337 = vmul.f32 %v1318, %v517
  %v1338 = vadd.f32 %v1336, %v1337
  %v1339 = vtanh.pop %v1338
  %v1340 = vpack.c.bf16 %v1339, %v1339
  %1342 = vrot.lane.b32.xlu0 %v1340, 96
  %v1343 = vpop.permute.xlu0 %1342
  %v1345 = vsel %vm115, %v1343, 0
  %1347 = vmatprep.subr.bf16.mxu0 0
  %1348 = vmatpush1.bf16.msra.mxu0 %v537
  %1349 = vmatprep.subr.bf16.mxu0 0
  %1350 = vmatpush1.bf16.msra.mxu0 %v538
  %1351 = vmatprep.subr.bf16.mxu0 0
  %1352 = vmatpush1.bf16.msra.mxu0 0
  %1353 = vmatprep.subr.bf16.mxu0 0
  %1354 = vmatpush1.bf16.msra.mxu0 0
  %1355 = vmatprep.subr.bf16.mxu0 0
  %1356 = vmatpush1.bf16.msra.mxu0 0
  %1357 = vmatprep.subr.bf16.mxu0 0
  %1358 = vmatpush1.bf16.msra.mxu0 0
  %1359 = vmatprep.subr.bf16.mxu0 0
  %1360 = vmatpush1.bf16.msra.mxu0 0
  %1361 = vmatprep.subr.bf16.mxu0 0
  %1362 = vmatpush1.bf16.msra.mxu0 0
  %1363 = vmatprep.subr.bf16.mxu0 0
  %1364 = vmatpush1.bf16.msra.mxu0 0
  %1365 = vmatprep.subr.bf16.mxu0 0
  %1366 = vmatpush1.bf16.msra.mxu0 0
  %1367 = vmatprep.subr.bf16.mxu0 0
  %1368 = vmatpush1.bf16.msra.mxu0 0
  %1369 = vmatprep.subr.bf16.mxu0 0
  %1370 = vmatpush1.bf16.msra.mxu0 0
  %1371 = vmatprep.subr.bf16.mxu0 0
  %1372 = vmatpush1.bf16.msra.mxu0 0
  %1373 = vmatprep.subr.bf16.mxu0 0
  %1374 = vmatpush1.bf16.msra.mxu0 0
  %1375 = vmatprep.subr.bf16.mxu0 0
  %1376 = vmatpush1.bf16.msra.mxu0 0
  %1377 = vmatprep.subr.bf16.mxu0 0
  %1378 = vmatpush1.bf16.msra.mxu0 0
  %1379 = vmatprep.mubr.bf16.mxu0 0
  %1380 = vmatmul.mubr.bf16.gmra.mrb[0].mxu0 %v1345
  %v1381 = vpop.f32.mrb[0].mxu0
  %v1382 = vadd.f32 %v524, %v1381
  %v1383 = vpop.f32.mrb[0].mxu0
  %v1384 = vpop.f32.mrb[0].mxu0
  %v1385 = vpop.f32.mrb[0].mxu0
  %1386 = vdwg.mxu0
  %1387 = vmatprep.subr.mxu0 0.0
  %1388 = vmatpush1.msra.mxu0 %v1382
  %1389 = vmatprep.subr.mxu0 0.0
  %1390 = vmatpush1.msra.mxu0 0.0
  %1391 = vmatprep.subr.mxu0 0.0
  %1392 = vmatpush1.msra.mxu0 0.0
  %1393 = vmatprep.subr.mxu0 0.0
  %1394 = vmatpush1.msra.mxu0 0.0
  %1395 = vmatprep.subr.mxu0 0.0
  %1396 = vmatpush1.msra.mxu0 0.0
  %1397 = vmatprep.subr.mxu0 0.0
  %1398 = vmatpush1.msra.mxu0 0.0
  %1399 = vmatprep.subr.mxu0 0.0
  %1400 = vmatpush1.msra.mxu0 0.0
  %1401 = vmatprep.subr.mxu0 0.0
  %1402 = vmatpush1.msra.mxu0 0.0
  %1403 = vmatprep.subr.mxu0 0.0
  %1404 = vmatpush1.msra.mxu0 0.0
  %1405 = vmatprep.subr.mxu0 0.0
  %1406 = vmatpush1.msra.mxu0 0.0
  %1407 = vmatprep.subr.mxu0 0.0
  %1408 = vmatpush1.msra.mxu0 0.0
  %1409 = vmatprep.subr.mxu0 0.0
  %1410 = vmatpush1.msra.mxu0 0.0
  %1411 = vmatprep.subr.mxu0 0.0
  %1412 = vmatpush1.msra.mxu0 0.0
  %1413 = vmatprep.subr.mxu0 0.0
  %1414 = vmatpush1.msra.mxu0 0.0
  %1415 = vmatprep.subr.mxu0 0.0
  %1416 = vmatpush1.msra.mxu0 0.0
  %1417 = vmatprep.subr.mxu0 0.0
  %1418 = vmatpush1.msra.mxu0 0.0
  %1419 = vmatprep.subr.mxu0 0.0
  %1420 = vmatpush1.msra.mxu0 0.0
  %1421 = vmatprep.subr.mxu0 0.0
  %1422 = vmatpush1.msra.mxu0 0.0
  %1423 = vmatprep.subr.mxu0 0.0
  %1424 = vmatpush1.msra.mxu0 0.0
  %1425 = vmatprep.subr.mxu0 0.0
  %1426 = vmatpush1.msra.mxu0 0.0
  %1427 = vmatprep.subr.mxu0 0.0
  %1428 = vmatpush1.msra.mxu0 0.0
  %1429 = vmatprep.subr.mxu0 0.0
  %1430 = vmatpush1.msra.mxu0 0.0
  %1431 = vmatprep.subr.mxu0 0.0
  %1432 = vmatpush1.msra.mxu0 0.0
  %1433 = vmatprep.subr.mxu0 0.0
  %1434 = vmatpush1.msra.mxu0 0.0
  %1435 = vmatprep.subr.mxu0 0.0
  %1436 = vmatpush1.msra.mxu0 0.0
  %1437 = vmatprep.subr.mxu0 0.0
  %1438 = vmatpush1.msra.mxu0 0.0
  %1439 = vmatprep.subr.mxu0 0.0
  %1440 = vmatpush1.msra.mxu0 0.0
  %1441 = vmatprep.subr.mxu0 0.0
  %1442 = vmatpush1.msra.mxu0 0.0
  %1443 = vmatprep.subr.mxu0 0.0
  %1444 = vmatpush1.msra.mxu0 0.0
  %1445 = vmatprep.subr.mxu0 0.0
  %1446 = vmatpush1.msra.mxu0 0.0
  %1447 = vmatprep.subr.mxu0 0.0
  %1448 = vmatpush1.msra.mxu0 0.0
  %1449 = vmatprep.subr.mxu0 0.0
  %1450 = vmatpush1.msra.mxu0 0.0
  %1451 = vmatprep.mubr.f32.mxu0 0.0
  %1452 = vmatmul.mubr.f32.gmra.mrb[0].mxu0 %v586
  %v1453 = vpop.f32.mrb[0].mxu0
  %v1454 = vadd.f32 0.0, %v1453
  %v1455 = vpop.f32.mrb[0].mxu0
  %1456 = vdwg.mxu0
  %1458 = vrot.lane.b32.xlu0 %v1382, 112
  %v1459 = vpop.permute.xlu0 %1458
  %1461 = vmatprep.subr.mxu0 0.0
  %1462 = vmatpush1.msra.mxu0 %v1459
  %1463 = vmatprep.subr.mxu0 0.0
  %1464 = vmatpush1.msra.mxu0 0.0
  %1465 = vmatprep.subr.mxu0 0.0
  %1466 = vmatpush1.msra.mxu0 0.0
  %1467 = vmatprep.subr.mxu0 0.0
  %1468 = vmatpush1.msra.mxu0 0.0
  %1469 = vmatprep.subr.mxu0 0.0
  %1470 = vmatpush1.msra.mxu0 0.0
  %1471 = vmatprep.subr.mxu0 0.0
  %1472 = vmatpush1.msra.mxu0 0.0
  %1473 = vmatprep.subr.mxu0 0.0
  %1474 = vmatpush1.msra.mxu0 0.0
  %1475 = vmatprep.subr.mxu0 0.0
  %1476 = vmatpush1.msra.mxu0 0.0
  %1477 = vmatprep.subr.mxu0 0.0
  %1478 = vmatpush1.msra.mxu0 0.0
  %1479 = vmatprep.subr.mxu0 0.0
  %1480 = vmatpush1.msra.mxu0 0.0
  %1481 = vmatprep.subr.mxu0 0.0
  %1482 = vmatpush1.msra.mxu0 0.0
  %1483 = vmatprep.subr.mxu0 0.0
  %1484 = vmatpush1.msra.mxu0 0.0
  %1485 = vmatprep.subr.mxu0 0.0
  %1486 = vmatpush1.msra.mxu0 0.0
  %1487 = vmatprep.subr.mxu0 0.0
  %1488 = vmatpush1.msra.mxu0 0.0
  %1489 = vmatprep.subr.mxu0 0.0
  %1490 = vmatpush1.msra.mxu0 0.0
  %1491 = vmatprep.subr.mxu0 0.0
  %1492 = vmatpush1.msra.mxu0 0.0
  %1493 = vmatprep.subr.mxu0 0.0
  %1494 = vmatpush1.msra.mxu0 0.0
  %1495 = vmatprep.subr.mxu0 0.0
  %1496 = vmatpush1.msra.mxu0 0.0
  %1497 = vmatprep.subr.mxu0 0.0
  %1498 = vmatpush1.msra.mxu0 0.0
  %1499 = vmatprep.subr.mxu0 0.0
  %1500 = vmatpush1.msra.mxu0 0.0
  %1501 = vmatprep.subr.mxu0 0.0
  %1502 = vmatpush1.msra.mxu0 0.0
  %1503 = vmatprep.subr.mxu0 0.0
  %1504 = vmatpush1.msra.mxu0 0.0
  %1505 = vmatprep.subr.mxu0 0.0
  %1506 = vmatpush1.msra.mxu0 0.0
  %1507 = vmatprep.subr.mxu0 0.0
  %1508 = vmatpush1.msra.mxu0 0.0
  %1509 = vmatprep.subr.mxu0 0.0
  %1510 = vmatpush1.msra.mxu0 0.0
  %1511 = vmatprep.subr.mxu0 0.0
  %1512 = vmatpush1.msra.mxu0 0.0
  %1513 = vmatprep.subr.mxu0 0.0
  %1514 = vmatpush1.msra.mxu0 0.0
  %1515 = vmatprep.subr.mxu0 0.0
  %1516 = vmatpush1.msra.mxu0 0.0
  %1517 = vmatprep.subr.mxu0 0.0
  %1518 = vmatpush1.msra.mxu0 0.0
  %1519 = vmatprep.subr.mxu0 0.0
  %1520 = vmatpush1.msra.mxu0 0.0
  %1521 = vmatprep.subr.mxu0 0.0
  %1522 = vmatpush1.msra.mxu0 0.0
  %1523 = vmatprep.subr.mxu0 0.0
  %1524 = vmatpush1.msra.mxu0 0.0
  %1525 = vmatprep.mubr.f32.mxu0 0.0
  %1526 = vmatmul.mubr.f32.gmra.mrb[0].mxu0 %v664
  %v1527 = vpop.f32.mrb[0].mxu0
  %v1528 = vadd.f32 0.0, %v1527
  %v1529 = vpop.f32.mrb[0].mxu0
  %1530 = vdwg.mxu0
  %1532 = vrot.lane.b32.xlu0 %v1528, 16
  %v1533 = vpop.permute.xlu0 %1532
  %v1535 = vsel %vm740, %v1454, %v1533
  %v1536 = vtanh.pop %v1535
  %v1537 = vpack.c.bf16 %v1536, %v1536
  %v1539 = vsel %vm115, %v1537, 0
  %1541 = vmatprep.subr.bf16.mxu0 0
  %1542 = vmatpush1.bf16.msra.mxu0 %v758
  %1543 = vmatprep.subr.bf16.mxu0 0
  %1544 = vmatpush1.bf16.msra.mxu0 %v759
  %1545 = vmatprep.subr.bf16.mxu0 0
  %1546 = vmatpush1.bf16.msra.mxu0 0
  %1547 = vmatprep.subr.bf16.mxu0 0
  %1548 = vmatpush1.bf16.msra.mxu0 0
  %1549 = vmatprep.subr.bf16.mxu0 0
  %1550 = vmatpush1.bf16.msra.mxu0 0
  %1551 = vmatprep.subr.bf16.mxu0 0
  %1552 = vmatpush1.bf16.msra.mxu0 0
  %1553 = vmatprep.subr.bf16.mxu0 0
  %1554 = vmatpush1.bf16.msra.mxu0 0
  %1555 = vmatprep.subr.bf16.mxu0 0
  %1556 = vmatpush1.bf16.msra.mxu0 0
  %1557 = vmatprep.subr.bf16.mxu0 0
  %1558 = vmatpush1.bf16.msra.mxu0 0
  %1559 = vmatprep.subr.bf16.mxu0 0
  %1560 = vmatpush1.bf16.msra.mxu0 0
  %1561 = vmatprep.subr.bf16.mxu0 0
  %1562 = vmatpush1.bf16.msra.mxu0 0
  %1563 = vmatprep.subr.bf16.mxu0 0
  %1564 = vmatpush1.bf16.msra.mxu0 0
  %1565 = vmatprep.subr.bf16.mxu0 0
  %1566 = vmatpush1.bf16.msra.mxu0 0
  %1567 = vmatprep.subr.bf16.mxu0 0
  %1568 = vmatpush1.bf16.msra.mxu0 0
  %1569 = vmatprep.subr.bf16.mxu0 0
  %1570 = vmatpush1.bf16.msra.mxu0 0
  %1571 = vmatprep.subr.bf16.mxu0 0
  %1572 = vmatpush1.bf16.msra.mxu0 0
  %1573 = vmatprep.mubr.bf16.mxu0 0
  %1574 = vmatmul.mubr.bf16.gmra.mrb[0].mxu0 %v1539
  %v1575 = vpop.f32.mrb[0].mxu0
  %v1576 = vadd.f32 %v748, %v1575
  %v1577 = vpop.f32.mrb[0].mxu0
  %v1578 = vpop.f32.mrb[0].mxu0
  %v1579 = vpop.f32.mrb[0].mxu0
  %1580 = vdwg.mxu0
  %v1581 = vmul.f32 %v1576, %v1576
  %v1582 = vsel %vm806, %v1581, 0.0
  %1583 = vadd.xlane.f32.xlu0 %v1582
  %v1584 = vpop.xlane.xlu0 %1583
  %v1585 = vrsqrt.pop %v1584
  %v1586 = vmul.f32 %v1584, %v1585
  %vm1587 = vcmp.eq.f32.partialorder %v1584, inf
  %v1588 = vsel %vm1587, %v1584, %v1586
  %vm1589 = vcmp.eq.f32.partialorder %v1584, 0.0
  %v1590 = vand.u32 %v1584, 2147483648
  %v1591 = vsel %vm1589, %v1590, %v1588
  %v1592 = vmul.f32 %v1591, 0.5
  %v1593 = vand.u32 2147483647, %v1592
  %vm1594 = vcmp.le.f32.partialorder %v1593, 0.7853982
  %vm1595 = vcmp.lt.s32.totalorder %v1592, 0
  %v1596 = vand.u32 %v1592, 2139095040
  %v1597 = vshrl.u32 %v1596, 23
  %v1598 = vsub.s32 %v1597, 127
  %v1599 = vand.u32 2147483647, %v1592
  %v1600 = vand.u32 %v1599, 8388607
  %v1601 = vor.u32 %v1600, 8388608
  %v1602 = vsub.s32 0, %v1601
  %v1603 = vadd.s32 %v1598, 1
  %vm1604 = vcmp.gt.s32.totalorder %v1603, 0
  %v1605 = vsel %vm1604, %v1603, 0
  %v1606 = vshrl.u32 %v1605, 5
  %v1607 = vand.u32 %v1605, 31
  %v1608 = vsub.s32 32, %v1607
  %v1609 = vshrl.u32 683565275, %v1608
  %v1610 = vshll.u32 683565275, %v1607
  %v1611 = vshrl.u32 2475754826, %v1608
  %v1612 = vor.u32 %v1610, %v1611
  %v1613 = vshll.u32 2475754826, %v1607
  %v1614 = vshrl.u32 2131351028, %v1608
  %v1615 = vor.u32 %v1613, %v1614
  %v1616 = vshll.u32 2131351028, %v1607
  %v1617 = vshrl.u32 2102212464, %v1608
  %v1618 = vor.u32 %v1616, %v1617
  %v1619 = vshll.u32 2102212464, %v1607
  %v1620 = vshrl.u32 920167782, %v1608
  %v1621 = vor.u32 %v1619, %v1620
  %v1622 = vshll.u32 920167782, %v1607
  %v1623 = vshrl.u32 1326507024, %v1608
  %v1624 = vor.u32 %v1622, %v1623
  %vm1625 = vcmp.lt.s32.totalorder %v1606, 1
  %vm1626 = vcmp.lt.s32.totalorder %v1606, 2
  %vm1627 = vcmp.lt.s32.totalorder %v1606, 3
  %vm1628 = vcmp.lt.s32.totalorder %v1606, 4
  %v1629 = vsel %vm1625, %v1609, %v1612
  %v1630 = vsel %vm1628, %v1618, 2102212464
  %v1631 = vsel %vm1627, %v1615, %v1630
  %v1632 = vsel %vm1626, %v1629, %v1631
  %v1633 = vsel %vm1625, %v1612, %v1615
  %v1634 = vsel %vm1628, %v1621, 920167782
  %v1635 = vsel %vm1627, %v1618, %v1634
  %v1636 = vsel %vm1626, %v1633, %v1635
  %v1637 = vsel %vm1625, %v1615, %v1618
  %v1638 = vsel %vm1628, %v1624, 1326507024
  %v1639 = vsel %vm1627, %v1621, %v1638
  %v1640 = vsel %vm1626, %v1637, %v1639
  %v1641 = vshll.u32 %v1601, 8
  %v1642 = vmul.u32.u64.compose %v1641, %v1640
  %v1643 = vextract.low.u32 %v1642
  %v1644 = vextract.high.u32 %v1642
  %v1645 = vmul.u32.u64.compose %v1641, %v1636
  %v1646 = vextract.low.u32 %v1645
  %v1647 = vextract.high.u32 %v1645
  %v1648 = vmul.u32 %v1641, %v1632
  %v1649 = vadd.s32 %v1644, %v1646
  %vm1650 = vc.u32 %v1644, %v1646
  %v1651 = vadd.s32 %v1647, 1
  %v1652 = vsel %vm1650, %v1651, %v1647
  %v1653 = vadd.s32 %v1648, %v1652
  %v1654 = vadd.s32 %v1653, 536870912
  %v1655 = vshrl.u32 %v1654, 30
  %v1656 = vshll.u32 %v1655, 30
  %v1657 = vsub.s32 %v1653, %v1656
  %vm1658 = vcmp.lt.s32.totalorder %v1657, 0
  %v1659 = vsub.s32 0, %v1657
  %v1660 = vsel %vm1658, %v1659, %v1657
  %v1661 = vclz %v1660
  %v1662 = vsub.s32 %v1661, 2
  %vm1663 = vcmp.gt.s32.totalorder 0, %v1662
  %v1664 = vsel %vm1663, 0, %v1662
  %v1665 = vsub.s32 32, %v1664
  %v1666 = vshll.u32 %v1657, %v1664
  %v1667 = vshrl.u32 %v1649, %v1665
  %v1668 = vor.u32 %v1666, %v1667
  %v1669 = vsub.s32 4294967266, %v1664
  %v1670 = vadd.s32 %v1669, 127
  %v1671 = vshll.u32 %v1670, 23
  %v1672 = vor.u32 4788187, %v1671
  %v1673 = vand.u32 2147483647, %v1672
  %v1675 = vcvt.s32.f32 %v1668
  %v1676 = vmul.f32 %v1675, %v1673
  %v1677 = vxor.u32 %v1676, 2147483648
  %v1678 = vsel %vm1595, %v1677, %v1676
  %v1679 = vsub.s32 4, %v1655
  %v1680 = vsel %vm1595, %v1679, %v1655
  %v1681 = vsel %vm1594, %v1592, %v1678
  %v1682 = vsel %vm1594, 0, %v1680
  %v1683 = vcosq.f32.pop %v1681
  %v1684 = vsinq.f32.pop %v1681
  %vm1685 = vweird.f32 %v1592
  %v1686 = vand.u32 %v1682, 3
  %vm1687 = vcmp.lt.s32.totalorder %v1686, 2
  %vm1688 = vcmp.eq.s32.totalorder %v1686, 0
  %v1689 = vxor.u32 %v1684, 2147483648
  %v1690 = vsel %vm1688, %v1683, %v1689
  %vm1691 = vcmp.eq.s32.totalorder %v1686, 2
  %v1692 = vxor.u32 %v1683, 2147483648
  %v1693 = vsel %vm1691, %v1692, %v1684
  %v1694 = vsel %vm1687, %v1690, %v1693
  %v1695 = vsel %vm1685, nan, %v1694
  %vm1696 = vcmp.gt.f32.partialorder %v1591, 1e-08
  %v1697 = vand.u32 2147483647, %v1592
  %vm1698 = vcmp.le.f32.partialorder %v1697, 0.7853982
  %vm1699 = vcmp.lt.s32.totalorder %v1592, 0
  %v1700 = vand.u32 %v1592, 2139095040
  %v1701 = vshrl.u32 %v1700, 23
  %v1702 = vsub.s32 %v1701, 127
  %v1703 = vand.u32 2147483647, %v1592
  %v1704 = vand.u32 %v1703, 8388607
  %v1705 = vor.u32 %v1704, 8388608
  %v1706 = vsub.s32 0, %v1705
  %v1707 = vadd.s32 %v1702, 1
  %vm1708 = vcmp.gt.s32.totalorder %v1707, 0
  %v1709 = vsel %vm1708, %v1707, 0
  %v1710 = vshrl.u32 %v1709, 5
  %v1711 = vand.u32 %v1709, 31
  %v1712 = vsub.s32 32, %v1711
  %v1713 = vshrl.u32 683565275, %v1712
  %v1714 = vshll.u32 683565275, %v1711
  %v1715 = vshrl.u32 2475754826, %v1712
  %v1716 = vor.u32 %v1714, %v1715
  %v1717 = vshll.u32 2475754826, %v1711
  %v1718 = vshrl.u32 2131351028, %v1712
  %v1719 = vor.u32 %v1717, %v1718
  %v1720 = vshll.u32 2131351028, %v1711
  %v1721 = vshrl.u32 2102212464, %v1712
  %v1722 = vor.u32 %v1720, %v1721
  %v1723 = vshll.u32 2102212464, %v1711
  %v1724 = vshrl.u32 920167782, %v1712
  %v1725 = vor.u32 %v1723, %v1724
  %v1726 = vshll.u32 920167782, %v1711
  %v1727 = vshrl.u32 1326507024, %v1712
  %v1728 = vor.u32 %v1726, %v1727
  %vm1729 = vcmp.lt.s32.totalorder %v1710, 1
  %vm1730 = vcmp.lt.s32.totalorder %v1710, 2
  %vm1731 = vcmp.lt.s32.totalorder %v1710, 3
  %vm1732 = vcmp.lt.s32.totalorder %v1710, 4
  %v1733 = vsel %vm1729, %v1713, %v1716
  %v1734 = vsel %vm1732, %v1722, 2102212464
  %v1735 = vsel %vm1731, %v1719, %v1734
  %v1736 = vsel %vm1730, %v1733, %v1735
  %v1737 = vsel %vm1729, %v1716, %v1719
  %v1738 = vsel %vm1732, %v1725, 920167782
  %v1739 = vsel %vm1731, %v1722, %v1738
  %v1740 = vsel %vm1730, %v1737, %v1739
  %v1741 = vsel %vm1729, %v1719, %v1722
  %v1742 = vsel %vm1732, %v1728, 1326507024
  %v1743 = vsel %vm1731, %v1725, %v1742
  %v1744 = vsel %vm1730, %v1741, %v1743
  %v1745 = vshll.u32 %v1705, 8
  %v1746 = vmul.u32.u64.compose %v1745, %v1744
  %v1747 = vextract.low.u32 %v1746
  %v1748 = vextract.high.u32 %v1746
  %v1749 = vmul.u32.u64.compose %v1745, %v1740
  %v1750 = vextract.low.u32 %v1749
  %v1751 = vextract.high.u32 %v1749
  %v1752 = vmul.u32 %v1745, %v1736
  %v1753 = vadd.s32 %v1748, %v1750
  %vm1754 = vc.u32 %v1748, %v1750
  %v1755 = vadd.s32 %v1751, 1
  %v1756 = vsel %vm1754, %v1755, %v1751
  %v1757 = vadd.s32 %v1752, %v1756
  %v1758 = vadd.s32 %v1757, 536870912
  %v1759 = vshrl.u32 %v1758, 30
  %v1760 = vshll.u32 %v1759, 30
  %v1761 = vsub.s32 %v1757, %v1760
  %vm1762 = vcmp.lt.s32.totalorder %v1761, 0
  %v1763 = vsub.s32 0, %v1761
  %v1764 = vsel %vm1762, %v1763, %v1761
  %v1765 = vclz %v1764
  %v1766 = vsub.s32 %v1765, 2
  %vm1767 = vcmp.gt.s32.totalorder 0, %v1766
  %v1768 = vsel %vm1767, 0, %v1766
  %v1769 = vsub.s32 32, %v1768
  %v1770 = vshll.u32 %v1761, %v1768
  %v1771 = vshrl.u32 %v1753, %v1769
  %v1772 = vor.u32 %v1770, %v1771
  %v1773 = vsub.s32 4294967266, %v1768
  %v1774 = vadd.s32 %v1773, 127
  %v1775 = vshll.u32 %v1774, 23
  %v1776 = vor.u32 4788187, %v1775
  %v1777 = vand.u32 2147483647, %v1776
  %v1779 = vcvt.s32.f32 %v1772
  %v1780 = vmul.f32 %v1779, %v1777
  %v1781 = vxor.u32 %v1780, 2147483648
  %v1782 = vsel %vm1699, %v1781, %v1780
  %v1783 = vsub.s32 4, %v1759
  %v1784 = vsel %vm1699, %v1783, %v1759
  %v1785 = vsel %vm1698, %v1592, %v1782
  %v1786 = vsel %vm1698, 0, %v1784
  %v1787 = vcosq.f32.pop %v1785
  %v1788 = vsinq.f32.pop %v1785
  %vm1789 = vweird.f32 %v1592
  %v1790 = vadd.s32 %v1786, 3
  %v1791 = vand.u32 %v1790, 3
  %vm1792 = vcmp.lt.s32.totalorder %v1791, 2
  %vm1793 = vcmp.eq.s32.totalorder %v1791, 0
  %v1794 = vxor.u32 %v1788, 2147483648
  %v1795 = vsel %vm1793, %v1787, %v1794
  %vm1796 = vcmp.eq.s32.totalorder %v1791, 2
  %v1797 = vxor.u32 %v1787, 2147483648
  %v1798 = vsel %vm1796, %v1797, %v1788
  %v1799 = vsel %vm1792, %v1795, %v1798
  %v1800 = vsel %vm1789, nan, %v1799
  %v1801 = vmax.f32 %v1591, 1e-08
  %v1802 = vrcp.pop %v1801
  %v1803 = vmul.f32 %v1800, %v1802
  %v1804 = vsel %vm1696, %v1803, 0.5
  %v1805 = vmul.f32 %v1576, %v1804
  %1807 = vrot.lane.b32.xlu0 %v1805, 1
  %v1808 = vpop.permute.xlu0 %1807
  %v1810 = vsel %vm1035, %v1695, %v1808
  %v1811 = vmul.f32 %v1810, %v1132
  %1813 = vrot.lane.b32.xlu0 %v1811, 127
  %v1814 = vpop.permute.xlu0 %1813
  %v1816 = vsub.f32 %v1811, %v1814
  %1817 = vrot.lane.b32.xlu0 %v1811, 126
  %v1818 = vpop.permute.xlu0 %1817
  %v1820 = vsub.f32 %v1816, %v1818
  %1821 = vrot.lane.b32.xlu0 %v1811, 125
  %v1822 = vpop.permute.xlu0 %1821
  %v1824 = vsub.f32 %v1820, %v1822
  %1826 = vrot.lane.b32.xlu0 %v1132, 127
  %v1827 = vpop.permute.xlu0 %1826
  %v1829 = vmul.f32 %v1810, %v1827
  %1830 = vrot.lane.b32.xlu0 %v1132, 1
  %v1831 = vpop.permute.xlu0 %1830
  %v1833 = vmul.f32 %v1810, %v1831
  %1835 = vrot.lane.b32.xlu0 %v1833, 127
  %v1836 = vpop.permute.xlu0 %1835
  %v1838 = vadd.f32 %v1829, %v1836
  %1840 = vrot.lane.b32.xlu0 %v1829, 126
  %v1841 = vpop.permute.xlu0 %1840
  %v1843 = vadd.f32 %v1838, %v1841
  %1844 = vrot.lane.b32.xlu0 %v1833, 125
  %v1845 = vpop.permute.xlu0 %1844
  %v1847 = vsub.f32 %v1843, %v1845
  %1848 = vrot.lane.b32.xlu0 %v1132, 126
  %v1849 = vpop.permute.xlu0 %1848
  %v1851 = vmul.f32 %v1810, %v1849
  %1853 = vrot.lane.b32.xlu0 %v1851, 127
  %v1854 = vpop.permute.xlu0 %1853
  %v1856 = vsub.f32 %v1851, %v1854
  %1857 = vrot.lane.b32.xlu0 %v1132, 2
  %v1858 = vpop.permute.xlu0 %1857
  %v1860 = vmul.f32 %v1810, %v1858
  %1862 = vrot.lane.b32.xlu0 %v1860, 126
  %v1863 = vpop.permute.xlu0 %1862
  %v1865 = vadd.f32 %v1856, %v1863
  %1866 = vrot.lane.b32.xlu0 %v1860, 125
  %v1867 = vpop.permute.xlu0 %1866
  %v1869 = vadd.f32 %v1865, %v1867
  %1870 = vrot.lane.b32.xlu0 %v1132, 125
  %v1871 = vpop.permute.xlu0 %1870
  %v1873 = vmul.f32 %v1810, %v1871
  %1874 = vrot.lane.b32.xlu0 %v1829, 127
  %v1875 = vpop.permute.xlu0 %1874
  %v1877 = vadd.f32 %v1873, %v1875
  %1878 = vrot.lane.b32.xlu0 %v1833, 126
  %v1879 = vpop.permute.xlu0 %1878
  %v1881 = vsub.f32 %v1877, %v1879
  %1882 = vrot.lane.b32.xlu0 %v1132, 3
  %v1883 = vpop.permute.xlu0 %1882
  %v1885 = vmul.f32 %v1810, %v1883
  %1887 = vrot.lane.b32.xlu0 %v1885, 125
  %v1888 = vpop.permute.xlu0 %1887
  %v1890 = vadd.f32 %v1881, %v1888
  %1892 = vrot.lane.b32.xlu0 %v1847, 1
  %v1893 = vpop.permute.xlu0 %1892
  %1896 = vrot.lane.b32.xlu0 %v1869, 2
  %v1897 = vpop.permute.xlu0 %1896
  %1900 = vrot.lane.b32.xlu0 %v1890, 3
  %v1901 = vpop.permute.xlu0 %1900
  %v1903 = vsel %vm1035, %v1824, %v1893
  %v1904 = vsel %vm1130, %v1903, %v1897
  %v1905 = vsel %vm806, %v1904, %v1901
  %1907 = vrot.lane.b32.xlu0 %v1576, 1
  %v1908 = vpop.permute.xlu0 %1907
  %v1910 = vsel %vm1137, %v1810, %v1908
  %v1911 = vsel %vm1139, %v1910, 0.0
  %1913 = vrot.lane.b32.xlu0 %v1810, 4
  %v1914 = vpop.permute.xlu0 %1913
  %v1916 = vsel %vm1137, %v1905, %v1914
  %v1917 = vpack.c.bf16 %v1916, %v1916
  %v1919 = vsel %vm160, %v1917, 0
  %1921 = vmatprep.subr.bf16.mxu0 0
  %1922 = vmatpush1.bf16.msra.mxu0 %v303
  %1923 = vmatprep.subr.bf16.mxu0 0
  %1924 = vmatpush1.bf16.msra.mxu0 0
  %1925 = vmatprep.subr.bf16.mxu0 0
  %1926 = vmatpush1.bf16.msra.mxu0 0
  %1927 = vmatprep.subr.bf16.mxu0 0
  %1928 = vmatpush1.bf16.msra.mxu0 0
  %1929 = vmatprep.subr.bf16.mxu0 0
  %1930 = vmatpush1.bf16.msra.mxu0 0
  %1931 = vmatprep.subr.bf16.mxu0 0
  %1932 = vmatpush1.bf16.msra.mxu0 0
  %1933 = vmatprep.subr.bf16.mxu0 0
  %1934 = vmatpush1.bf16.msra.mxu0 0
  %1935 = vmatprep.subr.bf16.mxu0 0
  %1936 = vmatpush1.bf16.msra.mxu0 0
  %1937 = vmatprep.subr.bf16.mxu0 0
  %1938 = vmatpush1.bf16.msra.mxu0 0
  %1939 = vmatprep.subr.bf16.mxu0 0
  %1940 = vmatpush1.bf16.msra.mxu0 0
  %1941 = vmatprep.subr.bf16.mxu0 0
  %1942 = vmatpush1.bf16.msra.mxu0 0
  %1943 = vmatprep.subr.bf16.mxu0 0
  %1944 = vmatpush1.bf16.msra.mxu0 0
  %1945 = vmatprep.subr.bf16.mxu0 0
  %1946 = vmatpush1.bf16.msra.mxu0 0
  %1947 = vmatprep.subr.bf16.mxu0 0
  %1948 = vmatpush1.bf16.msra.mxu0 0
  %1949 = vmatprep.subr.bf16.mxu0 0
  %1950 = vmatpush1.bf16.msra.mxu0 0
  %1951 = vmatprep.subr.bf16.mxu0 0
  %1952 = vmatpush1.bf16.msra.mxu0 0
  %1953 = vmatprep.mubr.bf16.mxu0 0
  %1954 = vmatmul.mubr.bf16.gmra.mrb[0].mxu0 %v1919
  %v1955 = vpop.f32.mrb[0].mxu0
  %v1956 = vadd.f32 %v293, %v1955
  %v1957 = vpop.f32.mrb[0].mxu0
  %v1958 = vpop.f32.mrb[0].mxu0
  %v1959 = vpop.f32.mrb[0].mxu0
  %1960 = vdwg.mxu0
  %v1961 = vpack.c.bf16 %v1338, %v1338
  %1963 = vrot.lane.b32.xlu0 %v1961, 96
  %v1964 = vpop.permute.xlu0 %1963
  %v1966 = vsel %vm115, %v1964, 0
  %1968 = vmatprep.subr.bf16.mxu0 0
  %1969 = vmatpush1.bf16.msra.mxu0 %v360
  %1970 = vmatprep.subr.bf16.mxu0 0
  %1971 = vmatpush1.bf16.msra.mxu0 %v361
  %1972 = vmatprep.subr.bf16.mxu0 0
  %1973 = vmatpush1.bf16.msra.mxu0 0
  %1974 = vmatprep.subr.bf16.mxu0 0
  %1975 = vmatpush1.bf16.msra.mxu0 0
  %1976 = vmatprep.subr.bf16.mxu0 0
  %1977 = vmatpush1.bf16.msra.mxu0 0
  %1978 = vmatprep.subr.bf16.mxu0 0
  %1979 = vmatpush1.bf16.msra.mxu0 0
  %1980 = vmatprep.subr.bf16.mxu0 0
  %1981 = vmatpush1.bf16.msra.mxu0 0
  %1982 = vmatprep.subr.bf16.mxu0 0
  %1983 = vmatpush1.bf16.msra.mxu0 0
  %1984 = vmatprep.subr.bf16.mxu0 0
  %1985 = vmatpush1.bf16.msra.mxu0 0
  %1986 = vmatprep.subr.bf16.mxu0 0
  %1987 = vmatpush1.bf16.msra.mxu0 0
  %1988 = vmatprep.subr.bf16.mxu0 0
  %1989 = vmatpush1.bf16.msra.mxu0 0
  %1990 = vmatprep.subr.bf16.mxu0 0
  %1991 = vmatpush1.bf16.msra.mxu0 0
  %1992 = vmatprep.subr.bf16.mxu0 0
  %1993 = vmatpush1.bf16.msra.mxu0 0
  %1994 = vmatprep.subr.bf16.mxu0 0
  %1995 = vmatpush1.bf16.msra.mxu0 0
  %1996 = vmatprep.subr.bf16.mxu0 0
  %1997 = vmatpush1.bf16.msra.mxu0 0
  %1998 = vmatprep.subr.bf16.mxu0 0
  %1999 = vmatpush1.bf16.msra.mxu0 0
  %2000 = vmatprep.mubr.bf16.mxu0 0
  %2001 = vmatmul.mubr.bf16.gmra.mrb[0].mxu0 %v1966
  %v2002 = vpop.f32.mrb[0].mxu0
  %v2003 = vadd.f32 %v350, %v2002
  %v2004 = vpop.f32.mrb[0].mxu0
  %v2005 = vpop.f32.mrb[0].mxu0
  %v2006 = vpop.f32.mrb[0].mxu0
  %2007 = vdwg.mxu0
  %v2008 = vadd.f32 %v1956, %v2003
  %2010 = vrot.lane.b32.xlu0 %v2003, 32
  %v2011 = vpop.permute.xlu0 %2010
  %v2013 = vsel %vm412, %v2008, %v2011
  %2014 = vmatprep.subr.mxu0 0.0
  %2015 = vmatpush1.msra.mxu0 %v2013
  %2016 = vmatprep.subr.mxu0 0.0
  %2017 = vmatpush1.msra.mxu0 0.0
  %2018 = vmatprep.subr.mxu0 0.0
  %2019 = vmatpush1.msra.mxu0 0.0
  %2020 = vmatprep.subr.mxu0 0.0
  %2021 = vmatpush1.msra.mxu0 0.0
  %2022 = vmatprep.subr.mxu0 0.0
  %2023 = vmatpush1.msra.mxu0 0.0
  %2024 = vmatprep.subr.mxu0 0.0
  %2025 = vmatpush1.msra.mxu0 0.0
  %2026 = vmatprep.subr.mxu0 0.0
  %2027 = vmatpush1.msra.mxu0 0.0
  %2028 = vmatprep.subr.mxu0 0.0
  %2029 = vmatpush1.msra.mxu0 0.0
  %2030 = vmatprep.subr.mxu0 0.0
  %2031 = vmatpush1.msra.mxu0 0.0
  %2032 = vmatprep.subr.mxu0 0.0
  %2033 = vmatpush1.msra.mxu0 0.0
  %2034 = vmatprep.subr.mxu0 0.0
  %2035 = vmatpush1.msra.mxu0 0.0
  %2036 = vmatprep.subr.mxu0 0.0
  %2037 = vmatpush1.msra.mxu0 0.0
  %2038 = vmatprep.subr.mxu0 0.0
  %2039 = vmatpush1.msra.mxu0 0.0
  %2040 = vmatprep.subr.mxu0 0.0
  %2041 = vmatpush1.msra.mxu0 0.0
  %2042 = vmatprep.subr.mxu0 0.0
  %2043 = vmatpush1.msra.mxu0 0.0
  %2044 = vmatprep.subr.mxu0 0.0
  %2045 = vmatpush1.msra.mxu0 0.0
  %2046 = vmatprep.subr.mxu0 0.0
  %2047 = vmatpush1.msra.mxu0 0.0
  %2048 = vmatprep.subr.mxu0 0.0
  %2049 = vmatpush1.msra.mxu0 0.0
  %2050 = vmatprep.subr.mxu0 0.0
  %2051 = vmatpush1.msra.mxu0 0.0
  %2052 = vmatprep.subr.mxu0 0.0
  %2053 = vmatpush1.msra.mxu0 0.0
  %2054 = vmatprep.subr.mxu0 0.0
  %2055 = vmatpush1.msra.mxu0 0.0
  %2056 = vmatprep.subr.mxu0 0.0
  %2057 = vmatpush1.msra.mxu0 0.0
  %2058 = vmatprep.subr.mxu0 0.0
  %2059 = vmatpush1.msra.mxu0 0.0
  %2060 = vmatprep.subr.mxu0 0.0
  %2061 = vmatpush1.msra.mxu0 0.0
  %2062 = vmatprep.subr.mxu0 0.0
  %2063 = vmatpush1.msra.mxu0 0.0
  %2064 = vmatprep.subr.mxu0 0.0
  %2065 = vmatpush1.msra.mxu0 0.0
  %2066 = vmatprep.subr.mxu0 0.0
  %2067 = vmatpush1.msra.mxu0 0.0
  %2068 = vmatprep.subr.mxu0 0.0
  %2069 = vmatpush1.msra.mxu0 0.0
  %2070 = vmatprep.subr.mxu0 0.0
  %2071 = vmatpush1.msra.mxu0 0.0
  %2072 = vmatprep.subr.mxu0 0.0
  %2073 = vmatpush1.msra.mxu0 0.0
  %2074 = vmatprep.subr.mxu0 0.0
  %2075 = vmatpush1.msra.mxu0 0.0
  %2076 = vmatprep.subr.mxu0 0.0
  %2077 = vmatpush1.msra.mxu0 0.0
  %2078 = vmatprep.mubr.f32.mxu0 0.0
  %2079 = vmatmul.mubr.f32.gmra.mrb[0].mxu0 %v416
  %v2080 = vpop.f32.mrb[0].mxu0
  %v2081 = vadd.f32 0.0, %v2080
  %v2082 = vpop.f32.mrb[0].mxu0
  %2083 = vdwg.mxu0
  %v2084 = vxor.u32 %v2081, 2147483648
  %v2085 = vmul.f32 %v2084, 1.442695
  %v2086 = vpow.pop %v2085
  %v2087 = vadd.f32 %v2086, 1.0
  %v2088 = vrcp.pop %v2087
  %v2089 = vmul.f32 1.0, %v2088
  %v2090 = vsub.f32 %v2089, 1.0
  %2092 = vrot.lane.b32.xlu0 %v2081, 32
  %v2093 = vpop.permute.xlu0 %2092
  %v2095 = vmul.f32 %v2090, %v2093
  %2097 = vrot.lane.b32.xlu0 %v2095, 64
  %v2098 = vpop.permute.xlu0 %2097
  %v2100 = vadd.f32 %v2081, %v2098
  %v2101 = vtanh.pop %v2100
  %v2102 = vsub.f32 1.0, %v2089
  %2104 = vrot.lane.b32.xlu0 %v2101, 96
  %v2105 = vpop.permute.xlu0 %2104
  %v2107 = vmul.f32 %v2102, %v2105
  %v2108 = vmul.f32 %v2089, %v1338
  %v2109 = vadd.f32 %v2107, %v2108
  %v2110 = vtanh.pop %v2109
  %v2111 = vpack.c.bf16 %v2110, %v2110
  %2113 = vrot.lane.b32.xlu0 %v2111, 96
  %v2114 = vpop.permute.xlu0 %2113
  %v2116 = vsel %vm115, %v2114, 0
  %2118 = vmatprep.subr.bf16.mxu0 0
  %2119 = vmatpush1.bf16.msra.mxu0 %v537
  %2120 = vmatprep.subr.bf16.mxu0 0
  %2121 = vmatpush1.bf16.msra.mxu0 %v538
  %2122 = vmatprep.subr.bf16.mxu0 0
  %2123 = vmatpush1.bf16.msra.mxu0 0
  %2124 = vmatprep.subr.bf16.mxu0 0
  %2125 = vmatpush1.bf16.msra.mxu0 0
  %2126 = vmatprep.subr.bf16.mxu0 0
  %2127 = vmatpush1.bf16.msra.mxu0 0
  %2128 = vmatprep.subr.bf16.mxu0 0
  %2129 = vmatpush1.bf16.msra.mxu0 0
  %2130 = vmatprep.subr.bf16.mxu0 0
  %2131 = vmatpush1.bf16.msra.mxu0 0
  %2132 = vmatprep.subr.bf16.mxu0 0
  %2133 = vmatpush1.bf16.msra.mxu0 0
  %2134 = vmatprep.subr.bf16.mxu0 0
  %2135 = vmatpush1.bf16.msra.mxu0 0
  %2136 = vmatprep.subr.bf16.mxu0 0
  %2137 = vmatpush1.bf16.msra.mxu0 0
  %2138 = vmatprep.subr.bf16.mxu0 0
  %2139 = vmatpush1.bf16.msra.mxu0 0
  %2140 = vmatprep.subr.bf16.mxu0 0
  %2141 = vmatpush1.bf16.msra.mxu0 0
  %2142 = vmatprep.subr.bf16.mxu0 0
  %2143 = vmatpush1.bf16.msra.mxu0 0
  %2144 = vmatprep.subr.bf16.mxu0 0
  %2145 = vmatpush1.bf16.msra.mxu0 0
  %2146 = vmatprep.subr.bf16.mxu0 0
  %2147 = vmatpush1.bf16.msra.mxu0 0
  %2148 = vmatprep.subr.bf16.mxu0 0
  %2149 = vmatpush1.bf16.msra.mxu0 0
  %2150 = vmatprep.mubr.bf16.mxu0 0
  %2151 = vmatmul.mubr.bf16.gmra.mrb[0].mxu0 %v2116
  %v2152 = vpop.f32.mrb[0].mxu0
  %v2153 = vadd.f32 %v524, %v2152
  %v2154 = vpop.f32.mrb[0].mxu0
  %v2155 = vpop.f32.mrb[0].mxu0
  %v2156 = vpop.f32.mrb[0].mxu0
  %2157 = vdwg.mxu0
  %2158 = vmatprep.subr.mxu0 0.0
  %2159 = vmatpush1.msra.mxu0 %v2153
  %2160 = vmatprep.subr.mxu0 0.0
  %2161 = vmatpush1.msra.mxu0 0.0
  %2162 = vmatprep.subr.mxu0 0.0
  %2163 = vmatpush1.msra.mxu0 0.0
  %2164 = vmatprep.subr.mxu0 0.0
  %2165 = vmatpush1.msra.mxu0 0.0
  %2166 = vmatprep.subr.mxu0 0.0
  %2167 = vmatpush1.msra.mxu0 0.0
  %2168 = vmatprep.subr.mxu0 0.0
  %2169 = vmatpush1.msra.mxu0 0.0
  %2170 = vmatprep.subr.mxu0 0.0
  %2171 = vmatpush1.msra.mxu0 0.0
  %2172 = vmatprep.subr.mxu0 0.0
  %2173 = vmatpush1.msra.mxu0 0.0
  %2174 = vmatprep.subr.mxu0 0.0
  %2175 = vmatpush1.msra.mxu0 0.0
  %2176 = vmatprep.subr.mxu0 0.0
  %2177 = vmatpush1.msra.mxu0 0.0
  %2178 = vmatprep.subr.mxu0 0.0
  %2179 = vmatpush1.msra.mxu0 0.0
  %2180 = vmatprep.subr.mxu0 0.0
  %2181 = vmatpush1.msra.mxu0 0.0
  %2182 = vmatprep.subr.mxu0 0.0
  %2183 = vmatpush1.msra.mxu0 0.0
  %2184 = vmatprep.subr.mxu0 0.0
  %2185 = vmatpush1.msra.mxu0 0.0
  %2186 = vmatprep.subr.mxu0 0.0
  %2187 = vmatpush1.msra.mxu0 0.0
  %2188 = vmatprep.subr.mxu0 0.0
  %2189 = vmatpush1.msra.mxu0 0.0
  %2190 = vmatprep.subr.mxu0 0.0
  %2191 = vmatpush1.msra.mxu0 0.0
  %2192 = vmatprep.subr.mxu0 0.0
  %2193 = vmatpush1.msra.mxu0 0.0
  %2194 = vmatprep.subr.mxu0 0.0
  %2195 = vmatpush1.msra.mxu0 0.0
  %2196 = vmatprep.subr.mxu0 0.0
  %2197 = vmatpush1.msra.mxu0 0.0
  %2198 = vmatprep.subr.mxu0 0.0
  %2199 = vmatpush1.msra.mxu0 0.0
  %2200 = vmatprep.subr.mxu0 0.0
  %2201 = vmatpush1.msra.mxu0 0.0
  %2202 = vmatprep.subr.mxu0 0.0
  %2203 = vmatpush1.msra.mxu0 0.0
  %2204 = vmatprep.subr.mxu0 0.0
  %2205 = vmatpush1.msra.mxu0 0.0
  %2206 = vmatprep.subr.mxu0 0.0
  %2207 = vmatpush1.msra.mxu0 0.0
  %2208 = vmatprep.subr.mxu0 0.0
  %2209 = vmatpush1.msra.mxu0 0.0
  %2210 = vmatprep.subr.mxu0 0.0
  %2211 = vmatpush1.msra.mxu0 0.0
  %2212 = vmatprep.subr.mxu0 0.0
  %2213 = vmatpush1.msra.mxu0 0.0
  %2214 = vmatprep.subr.mxu0 0.0
  %2215 = vmatpush1.msra.mxu0 0.0
  %2216 = vmatprep.subr.mxu0 0.0
  %2217 = vmatpush1.msra.mxu0 0.0
  %2218 = vmatprep.subr.mxu0 0.0
  %2219 = vmatpush1.msra.mxu0 0.0
  %2220 = vmatprep.subr.mxu0 0.0
  %2221 = vmatpush1.msra.mxu0 0.0
  %2222 = vmatprep.mubr.f32.mxu0 0.0
  %2223 = vmatmul.mubr.f32.gmra.mrb[0].mxu0 %v586
  %v2224 = vpop.f32.mrb[0].mxu0
  %v2225 = vadd.f32 0.0, %v2224
  %v2226 = vpop.f32.mrb[0].mxu0
  %2227 = vdwg.mxu0
  %2229 = vrot.lane.b32.xlu0 %v2153, 112
  %v2230 = vpop.permute.xlu0 %2229
  %2232 = vmatprep.subr.mxu0 0.0
  %2233 = vmatpush1.msra.mxu0 %v2230
  %2234 = vmatprep.subr.mxu0 0.0
  %2235 = vmatpush1.msra.mxu0 0.0
  %2236 = vmatprep.subr.mxu0 0.0
  %2237 = vmatpush1.msra.mxu0 0.0
  %2238 = vmatprep.subr.mxu0 0.0
  %2239 = vmatpush1.msra.mxu0 0.0
  %2240 = vmatprep.subr.mxu0 0.0
  %2241 = vmatpush1.msra.mxu0 0.0
  %2242 = vmatprep.subr.mxu0 0.0
  %2243 = vmatpush1.msra.mxu0 0.0
  %2244 = vmatprep.subr.mxu0 0.0
  %2245 = vmatpush1.msra.mxu0 0.0
  %2246 = vmatprep.subr.mxu0 0.0
  %2247 = vmatpush1.msra.mxu0 0.0
  %2248 = vmatprep.subr.mxu0 0.0
  %2249 = vmatpush1.msra.mxu0 0.0
  %2250 = vmatprep.subr.mxu0 0.0
  %2251 = vmatpush1.msra.mxu0 0.0
  %2252 = vmatprep.subr.mxu0 0.0
  %2253 = vmatpush1.msra.mxu0 0.0
  %2254 = vmatprep.subr.mxu0 0.0
  %2255 = vmatpush1.msra.mxu0 0.0
  %2256 = vmatprep.subr.mxu0 0.0
  %2257 = vmatpush1.msra.mxu0 0.0
  %2258 = vmatprep.subr.mxu0 0.0
  %2259 = vmatpush1.msra.mxu0 0.0
  %2260 = vmatprep.subr.mxu0 0.0
  %2261 = vmatpush1.msra.mxu0 0.0
  %2262 = vmatprep.subr.mxu0 0.0
  %2263 = vmatpush1.msra.mxu0 0.0
  %2264 = vmatprep.subr.mxu0 0.0
  %2265 = vmatpush1.msra.mxu0 0.0
  %2266 = vmatprep.subr.mxu0 0.0
  %2267 = vmatpush1.msra.mxu0 0.0
  %2268 = vmatprep.subr.mxu0 0.0
  %2269 = vmatpush1.msra.mxu0 0.0
  %2270 = vmatprep.subr.mxu0 0.0
  %2271 = vmatpush1.msra.mxu0 0.0
  %2272 = vmatprep.subr.mxu0 0.0
  %2273 = vmatpush1.msra.mxu0 0.0
  %2274 = vmatprep.subr.mxu0 0.0
  %2275 = vmatpush1.msra.mxu0 0.0
  %2276 = vmatprep.subr.mxu0 0.0
  %2277 = vmatpush1.msra.mxu0 0.0
  %2278 = vmatprep.subr.mxu0 0.0
  %2279 = vmatpush1.msra.mxu0 0.0
  %2280 = vmatprep.subr.mxu0 0.0
  %2281 = vmatpush1.msra.mxu0 0.0
  %2282 = vmatprep.subr.mxu0 0.0
  %2283 = vmatpush1.msra.mxu0 0.0
  %2284 = vmatprep.subr.mxu0 0.0
  %2285 = vmatpush1.msra.mxu0 0.0
  %2286 = vmatprep.subr.mxu0 0.0
  %2287 = vmatpush1.msra.mxu0 0.0
  %2288 = vmatprep.subr.mxu0 0.0
  %2289 = vmatpush1.msra.mxu0 0.0
  %2290 = vmatprep.subr.mxu0 0.0
  %2291 = vmatpush1.msra.mxu0 0.0
  %2292 = vmatprep.subr.mxu0 0.0
  %2293 = vmatpush1.msra.mxu0 0.0
  %2294 = vmatprep.subr.mxu0 0.0
  %2295 = vmatpush1.msra.mxu0 0.0
  %2296 = vmatprep.mubr.f32.mxu0 0.0
  %2297 = vmatmul.mubr.f32.gmra.mrb[0].mxu0 %v664
  %v2298 = vpop.f32.mrb[0].mxu0
  %v2299 = vadd.f32 0.0, %v2298
  %v2300 = vpop.f32.mrb[0].mxu0
  %2301 = vdwg.mxu0
  %2303 = vrot.lane.b32.xlu0 %v2299, 16
  %v2304 = vpop.permute.xlu0 %2303
  %v2306 = vsel %vm740, %v2225, %v2304
  %v2307 = vtanh.pop %v2306
  %v2308 = vpack.c.bf16 %v2307, %v2307
  %v2310 = vsel %vm115, %v2308, 0
  %2312 = vmatprep.subr.bf16.mxu0 0
  %2313 = vmatpush1.bf16.msra.mxu0 %v758
  %2314 = vmatprep.subr.bf16.mxu0 0
  %2315 = vmatpush1.bf16.msra.mxu0 %v759
  %2316 = vmatprep.subr.bf16.mxu0 0
  %2317 = vmatpush1.bf16.msra.mxu0 0
  %2318 = vmatprep.subr.bf16.mxu0 0
  %2319 = vmatpush1.bf16.msra.mxu0 0
  %2320 = vmatprep.subr.bf16.mxu0 0
  %2321 = vmatpush1.bf16.msra.mxu0 0
  %2322 = vmatprep.subr.bf16.mxu0 0
  %2323 = vmatpush1.bf16.msra.mxu0 0
  %2324 = vmatprep.subr.bf16.mxu0 0
  %2325 = vmatpush1.bf16.msra.mxu0 0
  %2326 = vmatprep.subr.bf16.mxu0 0
  %2327 = vmatpush1.bf16.msra.mxu0 0
  %2328 = vmatprep.subr.bf16.mxu0 0
  %2329 = vmatpush1.bf16.msra.mxu0 0
  %2330 = vmatprep.subr.bf16.mxu0 0
  %2331 = vmatpush1.bf16.msra.mxu0 0
  %2332 = vmatprep.subr.bf16.mxu0 0
  %2333 = vmatpush1.bf16.msra.mxu0 0
  %2334 = vmatprep.subr.bf16.mxu0 0
  %2335 = vmatpush1.bf16.msra.mxu0 0
  %2336 = vmatprep.subr.bf16.mxu0 0
  %2337 = vmatpush1.bf16.msra.mxu0 0
  %2338 = vmatprep.subr.bf16.mxu0 0
  %2339 = vmatpush1.bf16.msra.mxu0 0
  %2340 = vmatprep.subr.bf16.mxu0 0
  %2341 = vmatpush1.bf16.msra.mxu0 0
  %2342 = vmatprep.subr.bf16.mxu0 0
  %2343 = vmatpush1.bf16.msra.mxu0 0
  %2344 = vmatprep.mubr.bf16.mxu0 0
  %2345 = vmatmul.mubr.bf16.gmra.mrb[0].mxu0 %v2310
  %v2346 = vpop.f32.mrb[0].mxu0
  %v2347 = vadd.f32 %v748, %v2346
  %v2348 = vpop.f32.mrb[0].mxu0
  %v2349 = vpop.f32.mrb[0].mxu0
  %v2350 = vpop.f32.mrb[0].mxu0
  %2351 = vdwg.mxu0
  %v2352 = vmul.f32 %v2347, %v2347
  %v2353 = vsel %vm806, %v2352, 0.0
  %2354 = vadd.xlane.f32.xlu0 %v2353
  %v2355 = vpop.xlane.xlu0 %2354
  %v2356 = vrsqrt.pop %v2355
  %v2357 = vmul.f32 %v2355, %v2356
  %vm2358 = vcmp.eq.f32.partialorder %v2355, inf
  %v2359 = vsel %vm2358, %v2355, %v2357
  %vm2360 = vcmp.eq.f32.partialorder %v2355, 0.0
  %v2361 = vand.u32 %v2355, 2147483648
  %v2362 = vsel %vm2360, %v2361, %v2359
  %v2363 = vmul.f32 %v2362, 0.5
  %v2364 = vand.u32 2147483647, %v2363
  %vm2365 = vcmp.le.f32.partialorder %v2364, 0.7853982
  %vm2366 = vcmp.lt.s32.totalorder %v2363, 0
  %v2367 = vand.u32 %v2363, 2139095040
  %v2368 = vshrl.u32 %v2367, 23
  %v2369 = vsub.s32 %v2368, 127
  %v2370 = vand.u32 2147483647, %v2363
  %v2371 = vand.u32 %v2370, 8388607
  %v2372 = vor.u32 %v2371, 8388608
  %v2373 = vsub.s32 0, %v2372
  %v2374 = vadd.s32 %v2369, 1
  %vm2375 = vcmp.gt.s32.totalorder %v2374, 0
  %v2376 = vsel %vm2375, %v2374, 0
  %v2377 = vshrl.u32 %v2376, 5
  %v2378 = vand.u32 %v2376, 31
  %v2379 = vsub.s32 32, %v2378
  %v2380 = vshrl.u32 683565275, %v2379
  %v2381 = vshll.u32 683565275, %v2378
  %v2382 = vshrl.u32 2475754826, %v2379
  %v2383 = vor.u32 %v2381, %v2382
  %v2384 = vshll.u32 2475754826, %v2378
  %v2385 = vshrl.u32 2131351028, %v2379
  %v2386 = vor.u32 %v2384, %v2385
  %v2387 = vshll.u32 2131351028, %v2378
  %v2388 = vshrl.u32 2102212464, %v2379
  %v2389 = vor.u32 %v2387, %v2388
  %v2390 = vshll.u32 2102212464, %v2378
  %v2391 = vshrl.u32 920167782, %v2379
  %v2392 = vor.u32 %v2390, %v2391
  %v2393 = vshll.u32 920167782, %v2378
  %v2394 = vshrl.u32 1326507024, %v2379
  %v2395 = vor.u32 %v2393, %v2394
  %vm2396 = vcmp.lt.s32.totalorder %v2377, 1
  %vm2397 = vcmp.lt.s32.totalorder %v2377, 2
  %vm2398 = vcmp.lt.s32.totalorder %v2377, 3
  %vm2399 = vcmp.lt.s32.totalorder %v2377, 4
  %v2400 = vsel %vm2396, %v2380, %v2383
  %v2401 = vsel %vm2399, %v2389, 2102212464
  %v2402 = vsel %vm2398, %v2386, %v2401
  %v2403 = vsel %vm2397, %v2400, %v2402
  %v2404 = vsel %vm2396, %v2383, %v2386
  %v2405 = vsel %vm2399, %v2392, 920167782
  %v2406 = vsel %vm2398, %v2389, %v2405
  %v2407 = vsel %vm2397, %v2404, %v2406
  %v2408 = vsel %vm2396, %v2386, %v2389
  %v2409 = vsel %vm2399, %v2395, 1326507024
  %v2410 = vsel %vm2398, %v2392, %v2409
  %v2411 = vsel %vm2397, %v2408, %v2410
  %v2412 = vshll.u32 %v2372, 8
  %v2413 = vmul.u32.u64.compose %v2412, %v2411
  %v2414 = vextract.low.u32 %v2413
  %v2415 = vextract.high.u32 %v2413
  %v2416 = vmul.u32.u64.compose %v2412, %v2407
  %v2417 = vextract.low.u32 %v2416
  %v2418 = vextract.high.u32 %v2416
  %v2419 = vmul.u32 %v2412, %v2403
  %v2420 = vadd.s32 %v2415, %v2417
  %vm2421 = vc.u32 %v2415, %v2417
  %v2422 = vadd.s32 %v2418, 1
  %v2423 = vsel %vm2421, %v2422, %v2418
  %v2424 = vadd.s32 %v2419, %v2423
  %v2425 = vadd.s32 %v2424, 536870912
  %v2426 = vshrl.u32 %v2425, 30
  %v2427 = vshll.u32 %v2426, 30
  %v2428 = vsub.s32 %v2424, %v2427
  %vm2429 = vcmp.lt.s32.totalorder %v2428, 0
  %v2430 = vsub.s32 0, %v2428
  %v2431 = vsel %vm2429, %v2430, %v2428
  %v2432 = vclz %v2431
  %v2433 = vsub.s32 %v2432, 2
  %vm2434 = vcmp.gt.s32.totalorder 0, %v2433
  %v2435 = vsel %vm2434, 0, %v2433
  %v2436 = vsub.s32 32, %v2435
  %v2437 = vshll.u32 %v2428, %v2435
  %v2438 = vshrl.u32 %v2420, %v2436
  %v2439 = vor.u32 %v2437, %v2438
  %v2440 = vsub.s32 4294967266, %v2435
  %v2441 = vadd.s32 %v2440, 127
  %v2442 = vshll.u32 %v2441, 23
  %v2443 = vor.u32 4788187, %v2442
  %v2444 = vand.u32 2147483647, %v2443
  %v2446 = vcvt.s32.f32 %v2439
  %v2447 = vmul.f32 %v2446, %v2444
  %v2448 = vxor.u32 %v2447, 2147483648
  %v2449 = vsel %vm2366, %v2448, %v2447
  %v2450 = vsub.s32 4, %v2426
  %v2451 = vsel %vm2366, %v2450, %v2426
  %v2452 = vsel %vm2365, %v2363, %v2449
  %v2453 = vsel %vm2365, 0, %v2451
  %v2454 = vcosq.f32.pop %v2452
  %v2455 = vsinq.f32.pop %v2452
  %vm2456 = vweird.f32 %v2363
  %v2457 = vand.u32 %v2453, 3
  %vm2458 = vcmp.lt.s32.totalorder %v2457, 2
  %vm2459 = vcmp.eq.s32.totalorder %v2457, 0
  %v2460 = vxor.u32 %v2455, 2147483648
  %v2461 = vsel %vm2459, %v2454, %v2460
  %vm2462 = vcmp.eq.s32.totalorder %v2457, 2
  %v2463 = vxor.u32 %v2454, 2147483648
  %v2464 = vsel %vm2462, %v2463, %v2455
  %v2465 = vsel %vm2458, %v2461, %v2464
  %v2466 = vsel %vm2456, nan, %v2465
  %vm2467 = vcmp.gt.f32.partialorder %v2362, 1e-08
  %v2468 = vand.u32 2147483647, %v2363
  %vm2469 = vcmp.le.f32.partialorder %v2468, 0.7853982
  %vm2470 = vcmp.lt.s32.totalorder %v2363, 0
  %v2471 = vand.u32 %v2363, 2139095040
  %v2472 = vshrl.u32 %v2471, 23
  %v2473 = vsub.s32 %v2472, 127
  %v2474 = vand.u32 2147483647, %v2363
  %v2475 = vand.u32 %v2474, 8388607
  %v2476 = vor.u32 %v2475, 8388608
  %v2477 = vsub.s32 0, %v2476
  %v2478 = vadd.s32 %v2473, 1
  %vm2479 = vcmp.gt.s32.totalorder %v2478, 0
  %v2480 = vsel %vm2479, %v2478, 0
  %v2481 = vshrl.u32 %v2480, 5
  %v2482 = vand.u32 %v2480, 31
  %v2483 = vsub.s32 32, %v2482
  %v2484 = vshrl.u32 683565275, %v2483
  %v2485 = vshll.u32 683565275, %v2482
  %v2486 = vshrl.u32 2475754826, %v2483
  %v2487 = vor.u32 %v2485, %v2486
  %v2488 = vshll.u32 2475754826, %v2482
  %v2489 = vshrl.u32 2131351028, %v2483
  %v2490 = vor.u32 %v2488, %v2489
  %v2491 = vshll.u32 2131351028, %v2482
  %v2492 = vshrl.u32 2102212464, %v2483
  %v2493 = vor.u32 %v2491, %v2492
  %v2494 = vshll.u32 2102212464, %v2482
  %v2495 = vshrl.u32 920167782, %v2483
  %v2496 = vor.u32 %v2494, %v2495
  %v2497 = vshll.u32 920167782, %v2482
  %v2498 = vshrl.u32 1326507024, %v2483
  %v2499 = vor.u32 %v2497, %v2498
  %vm2500 = vcmp.lt.s32.totalorder %v2481, 1
  %vm2501 = vcmp.lt.s32.totalorder %v2481, 2
  %vm2502 = vcmp.lt.s32.totalorder %v2481, 3
  %vm2503 = vcmp.lt.s32.totalorder %v2481, 4
  %v2504 = vsel %vm2500, %v2484, %v2487
  %v2505 = vsel %vm2503, %v2493, 2102212464
  %v2506 = vsel %vm2502, %v2490, %v2505
  %v2507 = vsel %vm2501, %v2504, %v2506
  %v2508 = vsel %vm2500, %v2487, %v2490
  %v2509 = vsel %vm2503, %v2496, 920167782
  %v2510 = vsel %vm2502, %v2493, %v2509
  %v2511 = vsel %vm2501, %v2508, %v2510
  %v2512 = vsel %vm2500, %v2490, %v2493
  %v2513 = vsel %vm2503, %v2499, 1326507024
  %v2514 = vsel %vm2502, %v2496, %v2513
  %v2515 = vsel %vm2501, %v2512, %v2514
  %v2516 = vshll.u32 %v2476, 8
  %v2517 = vmul.u32.u64.compose %v2516, %v2515
  %v2518 = vextract.low.u32 %v2517
  %v2519 = vextract.high.u32 %v2517
  %v2520 = vmul.u32.u64.compose %v2516, %v2511
  %v2521 = vextract.low.u32 %v2520
  %v2522 = vextract.high.u32 %v2520
  %v2523 = vmul.u32 %v2516, %v2507
  %v2524 = vadd.s32 %v2519, %v2521
  %vm2525 = vc.u32 %v2519, %v2521
  %v2526 = vadd.s32 %v2522, 1
  %v2527 = vsel %vm2525, %v2526, %v2522
  %v2528 = vadd.s32 %v2523, %v2527
  %v2529 = vadd.s32 %v2528, 536870912
  %v2530 = vshrl.u32 %v2529, 30
  %v2531 = vshll.u32 %v2530, 30
  %v2532 = vsub.s32 %v2528, %v2531
  %vm2533 = vcmp.lt.s32.totalorder %v2532, 0
  %v2534 = vsub.s32 0, %v2532
  %v2535 = vsel %vm2533, %v2534, %v2532
  %v2536 = vclz %v2535
  %v2537 = vsub.s32 %v2536, 2
  %vm2538 = vcmp.gt.s32.totalorder 0, %v2537
  %v2539 = vsel %vm2538, 0, %v2537
  %v2540 = vsub.s32 32, %v2539
  %v2541 = vshll.u32 %v2532, %v2539
  %v2542 = vshrl.u32 %v2524, %v2540
  %v2543 = vor.u32 %v2541, %v2542
  %v2544 = vsub.s32 4294967266, %v2539
  %v2545 = vadd.s32 %v2544, 127
  %v2546 = vshll.u32 %v2545, 23
  %v2547 = vor.u32 4788187, %v2546
  %v2548 = vand.u32 2147483647, %v2547
  %v2550 = vcvt.s32.f32 %v2543
  %v2551 = vmul.f32 %v2550, %v2548
  %v2552 = vxor.u32 %v2551, 2147483648
  %v2553 = vsel %vm2470, %v2552, %v2551
  %v2554 = vsub.s32 4, %v2530
  %v2555 = vsel %vm2470, %v2554, %v2530
  %v2556 = vsel %vm2469, %v2363, %v2553
  %v2557 = vsel %vm2469, 0, %v2555
  %v2558 = vcosq.f32.pop %v2556
  %v2559 = vsinq.f32.pop %v2556
  %vm2560 = vweird.f32 %v2363
  %v2561 = vadd.s32 %v2557, 3
  %v2562 = vand.u32 %v2561, 3
  %vm2563 = vcmp.lt.s32.totalorder %v2562, 2
  %vm2564 = vcmp.eq.s32.totalorder %v2562, 0
  %v2565 = vxor.u32 %v2559, 2147483648
  %v2566 = vsel %vm2564, %v2558, %v2565
  %vm2567 = vcmp.eq.s32.totalorder %v2562, 2
  %v2568 = vxor.u32 %v2558, 2147483648
  %v2569 = vsel %vm2567, %v2568, %v2559
  %v2570 = vsel %vm2563, %v2566, %v2569
  %v2571 = vsel %vm2560, nan, %v2570
  %v2572 = vmax.f32 %v2362, 1e-08
  %v2573 = vrcp.pop %v2572
  %v2574 = vmul.f32 %v2571, %v2573
  %v2575 = vsel %vm2467, %v2574, 0.5
  %v2576 = vmul.f32 %v2347, %v2575
  %2578 = vrot.lane.b32.xlu0 %v2576, 1
  %v2579 = vpop.permute.xlu0 %2578
  %v2581 = vsel %vm1035, %v2466, %v2579
  %2583 = vrot.lane.b32.xlu0 %v2347, 1
  %v2584 = vpop.permute.xlu0 %2583
  %v2586 = vsel %vm1137, %v2581, %v2584
  %v2587 = vsel %vm1139, %v2586, 0.0
  %2589 = vrot.lane.b32.xlu0 %v1911, 16
  %v2590 = vpop.permute.xlu0 %2589
  %2593 = vrot.lane.b32.xlu0 %v2587, 32
  %v2594 = vpop.permute.xlu0 %2593
  %v2596 = vsel %vm740, %v1140, %v2590
  %v2597 = vsel %vm115, %v2596, %v2594
  %vm2598 = vcmask 392192
  %v2599 = vsel %vm2598, %v2597, 0.0
  %2600 = vst [vmem:[%s19] sm:$0xff] %v2599
  // Predicated region
  $region78: #{decoder_forward.1} parent=0 // pred_check
    _
  $region79: #{decoder_forward.1} parent=0 // pred_check_branch
    %2602 = sbr.rel (0) target = $region81
  $region80: #{decoder_forward.1} parent=0 // pred_region
    _
  $region81: #{decoder_forward.1} parent=0 // pred_fallthru
    _
  // Predicated region
  $region82: #{decoder_forward.1} parent=0 // pred_check
    _
  $region83: #{decoder_forward.1} parent=0 // pred_check_branch
    %2604 = sbr.rel (0) target = $region85
  $region84: #{decoder_forward.1} parent=0 // pred_region
    _
  $region85: #{decoder_forward.1} parent=0 // pred_fallthru
    _

</llo_original>
